<compile_context>
chip_gen: v5e
topology: v5e:2x2
jax: 0.10.0
libtpu: 0.0.40
codegen_flags: <defaults>
</compile_context>

<pallas_src>
import functools

import jax
import jax.numpy as jnp
from jax import lax
from jax.experimental import pallas as pl
from jax.experimental.pallas import tpu as pltpu
import numpy as np


def _round_up(v, m):
    return ((v + m - 1) // m) * m


def _cdiv(a, b):
    return (a + b - 1) // b


def _softplus(z):
    # numerically stable softplus, shared by kernel and reference
    return jnp.maximum(z, 0.0) + jnp.log1p(jnp.exp(-jnp.abs(z)))


def _selective_ssm_kernel(x_ref, wt_ref, lb_ref, at_ref, bt_ref, ct_ref,
                          dvec_ref, out_ref, dat_scr, state_scr, y_scr,
                          *, bb, tl, dp, precision):
    # x_ref:     (BB, TL, Dp)  one (batch block, sequence chunk)
    # wt_ref:    (Dp, Dp)      time_projection weight, pre-transposed (in, out)
    # lb_ref:    (1, Dp)       time_projection bias
    # at/bt/ct:  (Dp, Dp)      A^T / B^T / C^T (state index n on sublanes)
    # dvec_ref:  (1, Dp)       D skip vector
    # dat_scr:   (BB, TL, Dp, Dp)  exp(delta ⊗ A)^T for this chunk
    # state_scr: (BB, Dp, Dp)  transposed SSM state, carried across seq chunks
    # y_scr:     (BB, TL, Dp)  per-chunk output rows

    # Zero the carried state on the first sequence chunk of each batch block.
    @pl.when(pl.program_id(1) == 0)
    def _():
        state_scr[...] = jnp.zeros_like(state_scr)

    x_chunk = x_ref[...]                                      # (BB, TL, Dp)

    # -------- per-chunk precompute, kept OFF the serial recurrence ----------
    # delta = softplus(time_projection(x)): one MXU matmul for the whole chunk
    z = jnp.dot(x_chunk.reshape(bb * tl, dp), wt_ref[...],
                preferred_element_type=jnp.float32, precision=precision)
    delta = _softplus(z + lb_ref[...]).reshape(bb, tl, dp)

    at = at_ref[...]                                          # (Dp, Dp)
    for b in range(bb):                                       # static loop
        # dA^T[t, n, k] = exp(delta[t, k] * A^T[n, k]); the delta row is
        # broadcast along sublanes (cheap), and the write is contiguous per b.
        dat_scr[b] = jnp.exp(delta[b][:, None, :] * at[None, :, :]
                             ).astype(dat_scr.dtype)

    bt = bt_ref[...]                                          # (Dp, Dp)
    ct = ct_ref[...]                                          # (Dp, Dp)

    # -------- serial scan: one matmul + broadcast-add per step on the chain -
    #   state^T <- dA_t^T @ state^T + x_t(row) * B^T        (MXU + VPU)
    #   y_t      = sum_n (state^T * C^T)[n, :]              (sublane reduce)
    # y rows come out lane-dense and are stored 8 at a time as (8, Dp) slabs.
    n_groups = tl // 8

    def group(g, carry):
        t0 = pl.multiple_of(g * 8, 8)
        for b in range(bb):                                   # independent chains
            st = state_scr[b]                                 # (Dp, Dp)
            rows = []
            for u in range(8):                                # static unroll
                da_t = dat_scr[b, t0 + u]                     # (Dp, Dp)
                x_row = x_ref[b, pl.ds(t0 + u, 1), :]         # (1, Dp) lane row
                st = (jnp.dot(da_t, st.astype(da_t.dtype),
                              preferred_element_type=jnp.float32,
                              precision=precision)
                      + x_row * bt)                           # sublane broadcast
                rows.append(jnp.sum(st * ct, axis=0, keepdims=True))  # (1, Dp)
            state_scr[b] = st
            y_scr[b, pl.ds(t0, 8), :] = jnp.concatenate(rows, axis=0)  # (8, Dp)
        return carry

    lax.fori_loop(0, n_groups, group, 0, unroll=False)

    # D-skip added as a slab + one lane-dense slab store for the whole chunk.
    out_ref[...] = y_scr[...] + x_chunk * dvec_ref[...]


def selective_ssm(x, w_proj, b_proj, a_log, b_mat, c_mat, d_vec, *,
                  block_b=2, block_l=32, mxu_operand_dtype=jnp.float32,
                  precision=None):
    """Pallas wrapper.  x: (B, L, D) f32.  Returns y: (B, L, D) f32.

    `mxu_operand_dtype=jnp.bfloat16` enables the bf16-operand / f32-accumulate
    scan matmul (faster, looser numerics).  `precision` is threaded to every
    matmul in the kernel; the pure-JAX reference accepts the same knob so both
    sides can be pinned (e.g. lax.Precision.HIGHEST) for tight comparisons.
    """
    B, L, D = x.shape
    N = a_log.shape[1]
    assert D == N, "reference torch.bmm contraction requires d_state == d_model"

    x = x.astype(jnp.float32)

    # ---- lane padding: pad feature/state dims to a multiple of 128 ----------
    Dp = _round_up(D, 128)
    pad_d = Dp - D
    # A = -exp(A_log) hoisted out of the kernel (computed once) and transposed
    # so the state index n lives on sublanes.  Padded entries of A^T get a
    # large negative value so exp(delta_pad * A_pad) underflows to exactly 0
    # (delta in padded dims is softplus(0) > 0): padded state rows/lanes can
    # never leak into real ones.  Padded B/C/D/W/bias are zero.
    A = -jnp.exp(a_log.astype(jnp.float32))
    At = jnp.pad(A.T, ((0, pad_d), (0, pad_d)), constant_values=-1e4)
    Bt = jnp.pad(b_mat.astype(jnp.float32).T, ((0, pad_d), (0, pad_d)))
    Ct = jnp.pad(c_mat.astype(jnp.float32).T, ((0, pad_d), (0, pad_d)))
    dv = jnp.pad(d_vec.astype(jnp.float32), (0, pad_d)).reshape(1, Dp)
    wt = jnp.pad(w_proj.astype(jnp.float32).T, ((0, pad_d), (0, pad_d)))
    lb = jnp.pad(b_proj.astype(jnp.float32), (0, pad_d)).reshape(1, Dp)

    # ---- batch / sequence tiling --------------------------------------------
    BB = max(1, min(block_b, B))
    # v7x megacore: keep >= 2 blocks on the "parallel" batch axis when possible
    if B >= 2 and _cdiv(B, BB) < 2:
        BB = max(1, (B + 1) // 2)
    Bp = _round_up(B, BB)
    TL = max(8, _round_up(min(block_l, L), 8))
    Lp = _round_up(L, TL)
    xp = jnp.pad(x, ((0, Bp - B), (0, Lp - L), (0, pad_d)))

    grid = (Bp // BB, Lp // TL)

    kernel = functools.partial(_selective_ssm_kernel,
                               bb=BB, tl=TL, dp=Dp, precision=precision)

    grid_spec = pltpu.PrefetchScalarGridSpec(
        num_scalar_prefetch=0,
        grid=grid,
        in_specs=[
            pl.BlockSpec((BB, TL, Dp), lambda b, l: (b, l, 0)),   # x
            pl.BlockSpec((Dp, Dp), lambda b, l: (0, 0)),          # W^T
            pl.BlockSpec((1, Dp), lambda b, l: (0, 0)),           # proj bias
            pl.BlockSpec((Dp, Dp), lambda b, l: (0, 0)),          # A^T
            pl.BlockSpec((Dp, Dp), lambda b, l: (0, 0)),          # B^T
            pl.BlockSpec((Dp, Dp), lambda b, l: (0, 0)),          # C^T
            pl.BlockSpec((1, Dp), lambda b, l: (0, 0)),           # D skip
        ],
        out_specs=pl.BlockSpec((BB, TL, Dp), lambda b, l: (b, l, 0)),
        scratch_shapes=[
            pltpu.VMEM((BB, TL, Dp, Dp), mxu_operand_dtype),  # exp(delta*A)^T
            pltpu.VMEM((BB, Dp, Dp), jnp.float32),            # carried state^T
            pltpu.VMEM((BB, TL, Dp), jnp.float32),            # y chunk rows
        ],
    )

    # VMEM budget: derived from the actual blocks/scratch, generous headroom,
    # never clamped below the requirement.  (v5e/v6e: 128 MiB physical VMEM,
    # v7x: 64 MiB -- shrink block_l / block_b if `need` exceeds the part.)
    f32b = 4
    op_b = jnp.dtype(mxu_operand_dtype).itemsize
    scratch_bytes = (BB * TL * Dp * Dp * op_b
                     + BB * Dp * Dp * f32b
                     + BB * TL * Dp * f32b)
    block_bytes = 2 * (2 * BB * TL * Dp * f32b)          # x / out, 2-buffered
    param_bytes = 2 * (4 * Dp * Dp + 2 * Dp) * f32b      # constant params
    need = scratch_bytes + block_bytes + param_bytes
    vmem_limit = int(min(max(need * 5 // 4, 32 << 20), 100 << 20))
    vmem_limit = max(vmem_limit, need + (4 << 20))

    yp = pl.pallas_call(
        kernel,
        grid_spec=grid_spec,
        out_shape=jax.ShapeDtypeStruct((Bp, Lp, Dp), jnp.float32),
        compiler_params=pltpu.CompilerParams(
            dimension_semantics=("parallel", "arbitrary"),
            vmem_limit_bytes=vmem_limit),
    )(xp, wt, lb, At, Bt, Ct, dv)

    return yp[:B, :L, :D]


def selective_ssm_ref(x, w_proj, b_proj, a_log, b_mat, c_mat, d_vec, *,
                      precision=None):
    """Pure-JAX reference mirroring the PyTorch forward (for validation)."""
    delta = _softplus(jnp.einsum('bld,ed->ble', x, w_proj,
                                 precision=precision) + b_proj)     # (B, L, D)
    A = -jnp.exp(a_log)                                             # (D, N)
    deltaA = jnp.exp(jnp.einsum('bld,dn->bldn', delta, A))          # (B, L, D, N)

    def step(state, inp):
        x_t, dA_t = inp
        state = (jnp.einsum('bdk,bkn->bdn', state, dA_t, precision=precision)
                 + x_t[:, :, None] * b_mat)
        y_t = jnp.einsum('bdn,dn->bd', state, c_mat,
                         precision=precision) + d_vec * x_t
        return state, y_t

    state0 = jnp.zeros((x.shape[0], a_log.shape[0], a_log.shape[1]), jnp.float32)
    xs = (jnp.moveaxis(x, 1, 0), jnp.moveaxis(deltaA, 1, 0))
    _, ys = lax.scan(step, state0, xs)
    return jnp.moveaxis(ys, 0, 1)


if __name__ == "__main__":
    key = jax.random.PRNGKey(0)
    Bsz, L, D, N = 3, 32, 32, 32       # d_state must equal d_model (see note)
    ks = jax.random.split(key, 8)

    x = jax.random.normal(ks[0], (Bsz, L, D), jnp.float32)

    # SSMParams deterministic init (mirrors reset_parameters shapes / ranges)
    a_log = jax.random.uniform(ks[1], (D, N), jnp.float32, -4.0, -1.0)
    std_bc = 0.5 * (1.0 / N) ** 0.5    # lecun-normal with gain=0.5, fan_in=N
    b_mat = jax.random.normal(ks[2], (D, N), jnp.float32) * std_bc
    c_mat = jax.random.normal(ks[3], (D, N), jnp.float32) * std_bc
    d_vec = jax.random.uniform(ks[4], (D,), jnp.float32, 0.9, 1.1)

    # time_projection = nn.Linear(d_model, d_model)
    bound = (1.0 / D) ** 0.5
    w_proj = jax.random.uniform(ks[5], (D, D), jnp.float32, -bound, bound)
    b_proj = jax.random.uniform(ks[6], (D,), jnp.float32, -bound, bound)

    y = selective_ssm(x, w_proj, b_proj, a_log, b_mat, c_mat, d_vec,
                      block_b=2, block_l=16)
    y = jax.block_until_ready(y)

    y_ref = selective_ssm_ref(x, w_proj, b_proj, a_log, b_mat, c_mat, d_vec)
    y_np, yr_np = np.asarray(y), np.asarray(y_ref)

    # The reference recurrence is exponentially unstable for this module's
    # parameter ranges (state magnitudes reach ~1e27 by t=31), so tiny per-step
    # f32-on-MXU rounding differences between the Mosaic kernel and the XLA
    # reference compound roughly linearly in t.  Early timesteps are checked
    # tightly; the full sequence uses a bound sized to that compounding (any
    # genuine bug in the recurrence would produce O(1)+ relative errors).
    np.testing.assert_allclose(y_np[:, :8], yr_np[:, :8], rtol=3e-3, atol=3e-3)
    np.testing.assert_allclose(y_np, yr_np, rtol=1e-2, atol=1e-2)
    print("KERNEL_OK")
</pallas_src>

<mosaic_0001>
module attributes {stable_mosaic.version = 11 : i64} {
  func.func @_selective_ssm_kernel(%arg0: i32, %arg1: i32, %arg2: memref<2x16x128xf32, #tpu.memory_space<vmem>>, %arg3: memref<128x128xf32, #tpu.memory_space<vmem>>, %arg4: memref<1x128xf32, #tpu.memory_space<vmem>>, %arg5: memref<128x128xf32, #tpu.memory_space<vmem>>, %arg6: memref<128x128xf32, #tpu.memory_space<vmem>>, %arg7: memref<128x128xf32, #tpu.memory_space<vmem>>, %arg8: memref<1x128xf32, #tpu.memory_space<vmem>>, %arg9: memref<2x16x128xf32, #tpu.memory_space<vmem>>, %arg10: memref<2x16x128x128xf32, #tpu.memory_space<vmem>>, %arg11: memref<2x128x128xf32, #tpu.memory_space<vmem>>, %arg12: memref<2x16x128xf32, #tpu.memory_space<vmem>>) attributes {dimension_semantics = [#tpu.dimension_semantics<parallel>, #tpu.dimension_semantics<arbitrary>], iteration_bounds = array<i64: 2, 2>, scalar_prefetch = 0 : i64, scratch_operands = 3 : i64, tpu.core_type = #tpu.core_type<tc>, window_params = [{transform_indices = @transform_0, window_bounds = array<i64: 2, 16, 128>}, {pipeline_mode = #tpu.pipeline_mode<synchronous>, transform_indices = @transform_1, window_bounds = array<i64: 128, 128>}, {pipeline_mode = #tpu.pipeline_mode<synchronous>, transform_indices = @transform_2, window_bounds = array<i64: 1, 128>}, {pipeline_mode = #tpu.pipeline_mode<synchronous>, transform_indices = @transform_3, window_bounds = array<i64: 128, 128>}, {pipeline_mode = #tpu.pipeline_mode<synchronous>, transform_indices = @transform_4, window_bounds = array<i64: 128, 128>}, {pipeline_mode = #tpu.pipeline_mode<synchronous>, transform_indices = @transform_5, window_bounds = array<i64: 128, 128>}, {pipeline_mode = #tpu.pipeline_mode<synchronous>, transform_indices = @transform_6, window_bounds = array<i64: 1, 128>}, {transform_indices = @transform_7, window_bounds = array<i64: 2, 16, 128>}]} {
    %c0_i32 = arith.constant 0 : i32
    %0 = arith.cmpi eq, %arg1, %c0_i32 : i32
    %1 = arith.extui %0 : i1 to i32
    %c0_i32_0 = arith.constant 0 : i32
    %2 = arith.cmpi ne, %1, %c0_i32_0 : i32
    scf.if %2 {
      %cst_32 = arith.constant 0.000000e+00 : f32
      %52 = vector.broadcast %cst_32 : f32 to vector<2x128x128xf32>
      %c0_33 = arith.constant 0 : index
      %c0_34 = arith.constant 0 : index
      %c0_35 = arith.constant 0 : index
      %53 = vector.load %arg11[%c0_33, %c0_34, %c0_35] : memref<2x128x128xf32, #tpu.memory_space<vmem>>, vector<2x128x128xf32>
      tpu.vector_store %arg11[%c0_33, %c0_34, %c0_35], %52 {strides = array<i32>} : memref<2x128x128xf32, #tpu.memory_space<vmem>>, vector<2x128x128xf32>,
    } else {
    }
    %c0 = arith.constant 0 : index
    %c0_1 = arith.constant 0 : index
    %c0_2 = arith.constant 0 : index
    %3 = vector.load %arg2[%c0, %c0_1, %c0_2] : memref<2x16x128xf32, #tpu.memory_space<vmem>>, vector<2x16x128xf32>
    %4 = vector.shape_cast %3 : vector<2x16x128xf32> to vector<32x128xf32>
    %c0_3 = arith.constant 0 : index
    %c0_4 = arith.constant 0 : index
    %5 = vector.load %arg3[%c0_3, %c0_4] : memref<128x128xf32, #tpu.memory_space<vmem>>, vector<128x128xf32>
    %cst = arith.constant dense<0.000000e+00> : vector<32x128xf32>
    %6 = tpu.matmul %4, %5, %cst {dimension_numbers = #tpu.dot_dimension_numbers<[1], [0], [0], [1], [0, 0, 1, 1], [], []>} : vector<32x128xf32>, vector<128x128xf32>, vector<32x128xf32> -> vector<32x128xf32>
    %c0_5 = arith.constant 0 : index
    %c0_6 = arith.constant 0 : index
    %7 = vector.load %arg4[%c0_5, %c0_6] : memref<1x128xf32, #tpu.memory_space<vmem>>, vector<1x128xf32>
    %8 = vector.broadcast %7 : vector<1x128xf32> to vector<32x128xf32>
    %9 = arith.addf %6, %8 : vector<32x128xf32>
    %cst_7 = arith.constant 0.000000e+00 : f32
    %10 = vector.broadcast %cst_7 : f32 to vector<32x128xf32>
    %11 = arith.maximumf %9, %10 : vector<32x128xf32>
    %12 = math.absf %9 : vector<32x128xf32>
    %cst_8 = arith.constant 0.000000e+00 : f32
    %13 = vector.broadcast %cst_8 : f32 to vector<32x128xf32>
    %14 = arith.subf %13, %12 : vector<32x128xf32>
    %15 = math.exp %14 : vector<32x128xf32>
    %16 = math.log1p %15 : vector<32x128xf32>
    %17 = arith.addf %11, %16 : vector<32x128xf32>
    %18 = vector.shape_cast %17 : vector<32x128xf32> to vector<2x16x128xf32>
    %c0_9 = arith.constant 0 : index
    %c0_10 = arith.constant 0 : index
    %19 = vector.load %arg5[%c0_9, %c0_10] : memref<128x128xf32, #tpu.memory_space<vmem>>, vector<128x128xf32>
    %20 = vector.extract_strided_slice %18 {offsets = [0, 0, 0], sizes = [1, 16, 128], strides = [1, 1, 1]} : vector<2x16x128xf32> to vector<1x16x128xf32>
    %21 = vector.shape_cast %20 : vector<1x16x128xf32> to vector<16x128xf32>
    %22 = vector.shape_cast %21 : vector<16x128xf32> to vector<16x1x128xf32>
    %23 = vector.shape_cast %19 : vector<128x128xf32> to vector<1x128x128xf32>
    %24 = vector.broadcast %22 : vector<16x1x128xf32> to vector<16x128x128xf32>
    %25 = vector.broadcast %23 : vector<1x128x128xf32> to vector<16x128x128xf32>
    %26 = arith.mulf %24, %25 : vector<16x128x128xf32>
    %27 = math.exp %26 : vector<16x128x128xf32>
    %c0_11 = arith.constant 0 : index
    %c0_12 = arith.constant 0 : index
    %c0_13 = arith.constant 0 : index
    %c0_14 = arith.constant 0 : index
    %28 = vector.load %arg10[%c0_11, %c0_12, %c0_13, %c0_14] : memref<2x16x128x128xf32, #tpu.memory_space<vmem>>, vector<1x16x128x128xf32>
    %29 = vector.shape_cast %28 : vector<1x16x128x128xf32> to vector<16x128x128xf32>
    %30 = vector.shape_cast %27 : vector<16x128x128xf32> to vector<1x16x128x128xf32>
    tpu.vector_store %arg10[%c0_11, %c0_12, %c0_13, %c0_14], %30 {strides = array<i32>} : memref<2x16x128x128xf32, #tpu.memory_space<vmem>>, vector<1x16x128x128xf32>,
    %31 = vector.extract_strided_slice %18 {offsets = [1, 0, 0], sizes = [1, 16, 128], strides = [1, 1, 1]} : vector<2x16x128xf32> to vector<1x16x128xf32>
    %32 = vector.shape_cast %31 : vector<1x16x128xf32> to vector<16x128xf32>
    %33 = vector.shape_cast %32 : vector<16x128xf32> to vector<16x1x128xf32>
    %34 = vector.shape_cast %19 : vector<128x128xf32> to vector<1x128x128xf32>
    %35 = vector.broadcast %33 : vector<16x1x128xf32> to vector<16x128x128xf32>
    %36 = vector.broadcast %34 : vector<1x128x128xf32> to vector<16x128x128xf32>
    %37 = arith.mulf %35, %36 : vector<16x128x128xf32>
    %38 = math.exp %37 : vector<16x128x128xf32>
    %c1 = arith.constant 1 : index
    %c0_15 = arith.constant 0 : index
    %c0_16 = arith.constant 0 : index
    %c0_17 = arith.constant 0 : index
    %39 = vector.load %arg10[%c1, %c0_15, %c0_16, %c0_17] : memref<2x16x128x128xf32, #tpu.memory_space<vmem>>, vector<1x16x128x128xf32>
    %40 = vector.shape_cast %39 : vector<1x16x128x128xf32> to vector<16x128x128xf32>
    %41 = vector.shape_cast %38 : vector<16x128x128xf32> to vector<1x16x128x128xf32>
    tpu.vector_store %arg10[%c1, %c0_15, %c0_16, %c0_17], %41 {strides = array<i32>} : memref<2x16x128x128xf32, #tpu.memory_space<vmem>>, vector<1x16x128x128xf32>,
    %c0_18 = arith.constant 0 : index
    %c0_19 = arith.constant 0 : index
    %42 = vector.load %arg6[%c0_18, %c0_19] : memref<128x128xf32, #tpu.memory_space<vmem>>, vector<128x128xf32>
    %c0_20 = arith.constant 0 : index
    %c0_21 = arith.constant 0 : index
    %43 = vector.load %arg7[%c0_20, %c0_21] : memref<128x128xf32, #tpu.memory_space<vmem>>, vector<128x128xf32>
    %c0_i32_22 = arith.constant 0 : i32
    %c2_i32 = arith.constant 2 : i32
    %44 = arith.addi %c0_i32_22, %c2_i32 : i32
    %c1_i32 = arith.constant 1 : i32
    scf.for %arg13 = %c0_i32_22 to %44 step %c1_i32  : i32 {
      %c8_i32 = arith.constant 8 : i32
      %52 = arith.muli %arg13, %c8_i32 : i32
      %53 = tpu.assume_multiple %52, 8 : i32
      %c0_32 = arith.constant 0 : index
      %c0_33 = arith.constant 0 : index
      %c0_34 = arith.constant 0 : index
      %54 = vector.load %arg11[%c0_32, %c0_33, %c0_34] : memref<2x128x128xf32, #tpu.memory_space<vmem>>, vector<1x128x128xf32>
      %55 = vector.shape_cast %54 : vector<1x128x128xf32> to vector<128x128xf32>
      %c0_i32_35 = arith.constant 0 : i32
      %56 = arith.addi %53, %c0_i32_35 : i32
      %c0_36 = arith.constant 0 : index
      %57 = arith.index_cast %56 : i32 to index
      %c0_37 = arith.constant 0 : index
      %c0_38 = arith.constant 0 : index
      %58 = vector.load %arg10[%c0_36, %57, %c0_37, %c0_38] : memref<2x16x128x128xf32, #tpu.memory_space<vmem>>, vector<1x1x128x128xf32>
      %59 = vector.shape_cast %58 : vector<1x1x128x128xf32> to vector<128x128xf32>
      %c0_i32_39 = arith.constant 0 : i32
      %60 = arith.addi %53, %c0_i32_39 : i32
      %c0_40 = arith.constant 0 : index
      %61 = arith.index_cast %60 : i32 to index
      %c0_41 = arith.constant 0 : index
      %62 = vector.load %arg2[%c0_40, %61, %c0_41] : memref<2x16x128xf32, #tpu.memory_space<vmem>>, vector<1x1x128xf32>
      %63 = vector.shape_cast %62 : vector<1x1x128xf32> to vector<1x128xf32>
      %cst_42 = arith.constant dense<0.000000e+00> : vector<128x128xf32>
      %64 = tpu.matmul %59, %55, %cst_42 {dimension_numbers = #tpu.dot_dimension_numbers<[1], [0], [0], [1], [0, 0, 1, 1], [], []>} : vector<128x128xf32>, vector<128x128xf32>, vector<128x128xf32> -> vector<128x128xf32>
      %65 = vector.broadcast %63 : vector<1x128xf32> to vector<128x128xf32>
      %66 = arith.mulf %65, %42 : vector<128x128xf32>
      %67 = arith.addf %64, %66 : vector<128x128xf32>
      %68 = arith.mulf %67, %43 : vector<128x128xf32>
      %cst_43 = arith.constant dense<0.000000e+00> : vector<128xf32>
      %69 = vector.multi_reduction <add>, %68, %cst_43 [0] : vector<128x128xf32> to vector<128xf32>
      %70 = vector.shape_cast %69 : vector<128xf32> to vector<1x128xf32>
      %c1_i32_44 = arith.constant 1 : i32
      %71 = arith.addi %53, %c1_i32_44 : i32
      %c0_45 = arith.constant 0 : index
      %72 = arith.index_cast %71 : i32 to index
      %c0_46 = arith.constant 0 : index
      %c0_47 = arith.constant 0 : index
      %73 = vector.load %arg10[%c0_45, %72, %c0_46, %c0_47] : memref<2x16x128x128xf32, #tpu.memory_space<vmem>>, vector<1x1x128x128xf32>
      %74 = vector.shape_cast %73 : vector<1x1x128x128xf32> to vector<128x128xf32>
      %c1_i32_48 = arith.constant 1 : i32
      %75 = arith.addi %53, %c1_i32_48 : i32
      %c0_49 = arith.constant 0 : index
      %76 = arith.index_cast %75 : i32 to index
      %c0_50 = arith.constant 0 : index
      %77 = vector.load %arg2[%c0_49, %76, %c0_50] : memref<2x16x128xf32, #tpu.memory_space<vmem>>, vector<1x1x128xf32>
      %78 = vector.shape_cast %77 : vector<1x1x128xf32> to vector<1x128xf32>
      %cst_51 = arith.constant dense<0.000000e+00> : vector<128x128xf32>
      %79 = tpu.matmul %74, %67, %cst_51 {dimension_numbers = #tpu.dot_dimension_numbers<[1], [0], [0], [1], [0, 0, 1, 1], [], []>} : vector<128x128xf32>, vector<128x128xf32>, vector<128x128xf32> -> vector<128x128xf32>
      %80 = vector.broadcast %78 : vector<1x128xf32> to vector<128x128xf32>
      %81 = arith.mulf %80, %42 : vector<128x128xf32>
      %82 = arith.addf %79, %81 : vector<128x128xf32>
      %83 = arith.mulf %82, %43 : vector<128x128xf32>
      %cst_52 = arith.constant dense<0.000000e+00> : vector<128xf32>
      %84 = vector.multi_reduction <add>, %83, %cst_52 [0] : vector<128x128xf32> to vector<128xf32>
      %85 = vector.shape_cast %84 : vector<128xf32> to vector<1x128xf32>
      %c2_i32_53 = arith.constant 2 : i32
      %86 = arith.addi %53, %c2_i32_53 : i32
      %c0_54 = arith.constant 0 : index
      %87 = arith.index_cast %86 : i32 to index
      %c0_55 = arith.constant 0 : index
      %c0_56 = arith.constant 0 : index
      %88 = vector.load %arg10[%c0_54, %87, %c0_55, %c0_56] : memref<2x16x128x128xf32, #tpu.memory_space<vmem>>, vector<1x1x128x128xf32>
      %89 = vector.shape_cast %88 : vector<1x1x128x128xf32> to vector<128x128xf32>
      %c2_i32_57 = arith.constant 2 : i32
      %90 = arith.addi %53, %c2_i32_57 : i32
      %c0_58 = arith.constant 0 : index
      %91 = arith.index_cast %90 : i32 to index
      %c0_59 = arith.constant 0 : index
      %92 = vector.load %arg2[%c0_58, %91, %c0_59] : memref<2x16x128xf32, #tpu.memory_space<vmem>>, vector<1x1x128xf32>
      %93 = vector.shape_cast %92 : vector<1x1x128xf32> to vector<1x128xf32>
      %cst_60 = arith.constant dense<0.000000e+00> : vector<128x128xf32>
      %94 = tpu.matmul %89, %82, %cst_60 {dimension_numbers = #tpu.dot_dimension_numbers<[1], [0], [0], [1], [0, 0, 1, 1], [], []>} : vector<128x128xf32>, vector<128x128xf32>, vector<128x128xf32> -> vector<128x128xf32>
      %95 = vector.broadcast %93 : vector<1x128xf32> to vector<128x128xf32>
      %96 = arith.mulf %95, %42 : vector<128x128xf32>
      %97 = arith.addf %94, %96 : vector<128x128xf32>
      %98 = arith.mulf %97, %43 : vector<128x128xf32>
      %cst_61 = arith.constant dense<0.000000e+00> : vector<128xf32>
      %99 = vector.multi_reduction <add>, %98, %cst_61 [0] : vector<128x128xf32> to vector<128xf32>
      %100 = vector.shape_cast %99 : vector<128xf32> to vector<1x128xf32>
      %c3_i32 = arith.constant 3 : i32
      %101 = arith.addi %53, %c3_i32 : i32
      %c0_62 = arith.constant 0 : index
      %102 = arith.index_cast %101 : i32 to index
      %c0_63 = arith.constant 0 : index
      %c0_64 = arith.constant 0 : index
      %103 = vector.load %arg10[%c0_62, %102, %c0_63, %c0_64] : memref<2x16x128x128xf32, #tpu.memory_space<vmem>>, vector<1x1x128x128xf32>
      %104 = vector.shape_cast %103 : vector<1x1x128x128xf32> to vector<128x128xf32>
      %c3_i32_65 = arith.constant 3 : i32
      %105 = arith.addi %53, %c3_i32_65 : i32
      %c0_66 = arith.constant 0 : index
      %106 = arith.index_cast %105 : i32 to index
      %c0_67 = arith.constant 0 : index
      %107 = vector.load %arg2[%c0_66, %106, %c0_67] : memref<2x16x128xf32, #tpu.memory_space<vmem>>, vector<1x1x128xf32>
      %108 = vector.shape_cast %107 : vector<1x1x128xf32> to vector<1x128xf32>
      %cst_68 = arith.constant dense<0.000000e+00> : vector<128x128xf32>
      %109 = tpu.matmul %104, %97, %cst_68 {dimension_numbers = #tpu.dot_dimension_numbers<[1], [0], [0], [1], [0, 0, 1, 1], [], []>} : vector<128x128xf32>, vector<128x128xf32>, vector<128x128xf32> -> vector<128x128xf32>
      %110 = vector.broadcast %108 : vector<1x128xf32> to vector<128x128xf32>
      %111 = arith.mulf %110, %42 : vector<128x128xf32>
      %112 = arith.addf %109, %111 : vector<128x128xf32>
      %113 = arith.mulf %112, %43 : vector<128x128xf32>
      %cst_69 = arith.constant dense<0.000000e+00> : vector<128xf32>
      %114 = vector.multi_reduction <add>, %113, %cst_69 [0] : vector<128x128xf32> to vector<128xf32>
      %115 = vector.shape_cast %114 : vector<128xf32> to vector<1x128xf32>
      %c4_i32 = arith.constant 4 : i32
      %116 = arith.addi %53, %c4_i32 : i32
      %c0_70 = arith.constant 0 : index
      %117 = arith.index_cast %116 : i32 to index
      %c0_71 = arith.constant 0 : index
      %c0_72 = arith.constant 0 : index
      %118 = vector.load %arg10[%c0_70, %117, %c0_71, %c0_72] : memref<2x16x128x128xf32, #tpu.memory_space<vmem>>, vector<1x1x128x128xf32>
      %119 = vector.shape_cast %118 : vector<1x1x128x128xf32> to vector<128x128xf32>
      %c4_i32_73 = arith.constant 4 : i32
      %120 = arith.addi %53, %c4_i32_73 : i32
      %c0_74 = arith.constant 0 : index
      %121 = arith.index_cast %120 : i32 to index
      %c0_75 = arith.constant 0 : index
      %122 = vector.load %arg2[%c0_74, %121, %c0_75] : memref<2x16x128xf32, #tpu.memory_space<vmem>>, vector<1x1x128xf32>
      %123 = vector.shape_cast %122 : vector<1x1x128xf32> to vector<1x128xf32>
      %cst_76 = arith.constant dense<0.000000e+00> : vector<128x128xf32>
      %124 = tpu.matmul %119, %112, %cst_76 {dimension_numbers = #tpu.dot_dimension_numbers<[1], [0], [0], [1], [0, 0, 1, 1], [], []>} : vector<128x128xf32>, vector<128x128xf32>, vector<128x128xf32> -> vector<128x128xf32>
      %125 = vector.broadcast %123 : vector<1x128xf32> to vector<128x128xf32>
      %126 = arith.mulf %125, %42 : vector<128x128xf32>
      %127 = arith.addf %124, %126 : vector<128x128xf32>
      %128 = arith.mulf %127, %43 : vector<128x128xf32>
      %cst_77 = arith.constant dense<0.000000e+00> : vector<128xf32>
      %129 = vector.multi_reduction <add>, %128, %cst_77 [0] : vector<128x128xf32> to vector<128xf32>
      %130 = vector.shape_cast %129 : vector<128xf32> to vector<1x128xf32>
      %c5_i32 = arith.constant 5 : i32
      %131 = arith.addi %53, %c5_i32 : i32
      %c0_78 = arith.constant 0 : index
      %132 = arith.index_cast %131 : i32 to index
      %c0_79 = arith.constant 0 : index
      %c0_80 = arith.constant 0 : index
      %133 = vector.load %arg10[%c0_78, %132, %c0_79, %c0_80] : memref<2x16x128x128xf32, #tpu.memory_space<vmem>>, vector<1x1x128x128xf32>
      %134 = vector.shape_cast %133 : vector<1x1x128x128xf32> to vector<128x128xf32>
      %c5_i32_81 = arith.constant 5 : i32
      %135 = arith.addi %53, %c5_i32_81 : i32
      %c0_82 = arith.constant 0 : index
      %136 = arith.index_cast %135 : i32 to index
      %c0_83 = arith.constant 0 : index
      %137 = vector.load %arg2[%c0_82, %136, %c0_83] : memref<2x16x128xf32, #tpu.memory_space<vmem>>, vector<1x1x128xf32>
      %138 = vector.shape_cast %137 : vector<1x1x128xf32> to vector<1x128xf32>
      %cst_84 = arith.constant dense<0.000000e+00> : vector<128x128xf32>
      %139 = tpu.matmul %134, %127, %cst_84 {dimension_numbers = #tpu.dot_dimension_numbers<[1], [0], [0], [1], [0, 0, 1, 1], [], []>} : vector<128x128xf32>, vector<128x128xf32>, vector<128x128xf32> -> vector<128x128xf32>
      %140 = vector.broadcast %138 : vector<1x128xf32> to vector<128x128xf32>
      %141 = arith.mulf %140, %42 : vector<128x128xf32>
      %142 = arith.addf %139, %141 : vector<128x128xf32>
      %143 = arith.mulf %142, %43 : vector<128x128xf32>
      %cst_85 = arith.constant dense<0.000000e+00> : vector<128xf32>
      %144 = vector.multi_reduction <add>, %143, %cst_85 [0] : vector<128x128xf32> to vector<128xf32>
      %145 = vector.shape_cast %144 : vector<128xf32> to vector<1x128xf32>
      %c6_i32 = arith.constant 6 : i32
      %146 = arith.addi %53, %c6_i32 : i32
      %c0_86 = arith.constant 0 : index
      %147 = arith.index_cast %146 : i32 to index
      %c0_87 = arith.constant 0 : index
      %c0_88 = arith.constant 0 : index
      %148 = vector.load %arg10[%c0_86, %147, %c0_87, %c0_88] : memref<2x16x128x128xf32, #tpu.memory_space<vmem>>, vector<1x1x128x128xf32>
      %149 = vector.shape_cast %148 : vector<1x1x128x128xf32> to vector<128x128xf32>
      %c6_i32_89 = arith.constant 6 : i32
      %150 = arith.addi %53, %c6_i32_89 : i32
      %c0_90 = arith.constant 0 : index
      %151 = arith.index_cast %150 : i32 to index
      %c0_91 = arith.constant 0 : index
      %152 = vector.load %arg2[%c0_90, %151, %c0_91] : memref<2x16x128xf32, #tpu.memory_space<vmem>>, vector<1x1x128xf32>
      %153 = vector.shape_cast %152 : vector<1x1x128xf32> to vector<1x128xf32>
      %cst_92 = arith.constant dense<0.000000e+00> : vector<128x128xf32>
      %154 = tpu.matmul %149, %142, %cst_92 {dimension_numbers = #tpu.dot_dimension_numbers<[1], [0], [0], [1], [0, 0, 1, 1], [], []>} : vector<128x128xf32>, vector<128x128xf32>, vector<128x128xf32> -> vector<128x128xf32>
      %155 = vector.broadcast %153 : vector<1x128xf32> to vector<128x128xf32>
      %156 = arith.mulf %155, %42 : vector<128x128xf32>
      %157 = arith.addf %154, %156 : vector<128x128xf32>
      %158 = arith.mulf %157, %43 : vector<128x128xf32>
      %cst_93 = arith.constant dense<0.000000e+00> : vector<128xf32>
      %159 = vector.multi_reduction <add>, %158, %cst_93 [0] : vector<128x128xf32> to vector<128xf32>
      %160 = vector.shape_cast %159 : vector<128xf32> to vector<1x128xf32>
      %c7_i32 = arith.constant 7 : i32
      %161 = arith.addi %53, %c7_i32 : i32
      %c0_94 = arith.constant 0 : index
      %162 = arith.index_cast %161 : i32 to index
      %c0_95 = arith.constant 0 : index
      %c0_96 = arith.constant 0 : index
      %163 = vector.load %arg10[%c0_94, %162, %c0_95, %c0_96] : memref<2x16x128x128xf32, #tpu.memory_space<vmem>>, vector<1x1x128x128xf32>
      %164 = vector.shape_cast %163 : vector<1x1x128x128xf32> to vector<128x128xf32>
      %c7_i32_97 = arith.constant 7 : i32
      %165 = arith.addi %53, %c7_i32_97 : i32
      %c0_98 = arith.constant 0 : index
      %166 = arith.index_cast %165 : i32 to index
      %c0_99 = arith.constant 0 : index
      %167 = vector.load %arg2[%c0_98, %166, %c0_99] : memref<2x16x128xf32, #tpu.memory_space<vmem>>, vector<1x1x128xf32>
      %168 = vector.shape_cast %167 : vector<1x1x128xf32> to vector<1x128xf32>
      %cst_100 = arith.constant dense<0.000000e+00> : vector<128x128xf32>
      %169 = tpu.matmul %164, %157, %cst_100 {dimension_numbers = #tpu.dot_dimension_numbers<[1], [0], [0], [1], [0, 0, 1, 1], [], []>} : vector<128x128xf32>, vector<128x128xf32>, vector<128x128xf32> -> vector<128x128xf32>
      %170 = vector.broadcast %168 : vector<1x128xf32> to vector<128x128xf32>
      %171 = arith.mulf %170, %42 : vector<128x128xf32>
      %172 = arith.addf %169, %171 : vector<128x128xf32>
      %173 = arith.mulf %172, %43 : vector<128x128xf32>
      %cst_101 = arith.constant dense<0.000000e+00> : vector<128xf32>
      %174 = vector.multi_reduction <add>, %173, %cst_101 [0] : vector<128x128xf32> to vector<128xf32>
      %175 = vector.shape_cast %174 : vector<128xf32> to vector<1x128xf32>
      %c0_102 = arith.constant 0 : index
      %c0_103 = arith.constant 0 : index
      %c0_104 = arith.constant 0 : index
      %176 = vector.load %arg11[%c0_102, %c0_103, %c0_104] : memref<2x128x128xf32, #tpu.memory_space<vmem>>, vector<1x128x128xf32>
      %177 = vector.shape_cast %176 : vector<1x128x128xf32> to vector<128x128xf32>
      %178 = vector.shape_cast %172 : vector<128x128xf32> to vector<1x128x128xf32>
      tpu.vector_store %arg11[%c0_102, %c0_103, %c0_104], %178 {strides = array<i32>} : memref<2x128x128xf32, #tpu.memory_space<vmem>>, vector<1x128x128xf32>,
      %179 = tpu.concatenate %70, %85, %100, %115, %130, %145, %160, %175 in 0 : vector<1x128xf32>, vector<1x128xf32>, vector<1x128xf32>, vector<1x128xf32>, vector<1x128xf32>, vector<1x128xf32>, vector<1x128xf32>, vector<1x128xf32> -> vector<8x128xf32>
      %c0_105 = arith.constant 0 : index
      %180 = arith.index_cast %53 : i32 to index
      %c0_106 = arith.constant 0 : index
      %181 = vector.load %arg12[%c0_105, %180, %c0_106] : memref<2x16x128xf32, #tpu.memory_space<vmem>>, vector<1x8x128xf32>
      %182 = vector.shape_cast %181 : vector<1x8x128xf32> to vector<8x128xf32>
      %183 = vector.shape_cast %179 : vector<8x128xf32> to vector<1x8x128xf32>
      tpu.vector_store %arg12[%c0_105, %180, %c0_106], %183 {strides = array<i32>} : memref<2x16x128xf32, #tpu.memory_space<vmem>>, vector<1x8x128xf32>,
      %c1_107 = arith.constant 1 : index
      %c0_108 = arith.constant 0 : index
      %c0_109 = arith.constant 0 : index
      %184 = vector.load %arg11[%c1_107, %c0_108, %c0_109] : memref<2x128x128xf32, #tpu.memory_space<vmem>>, vector<1x128x128xf32>
      %185 = vector.shape_cast %184 : vector<1x128x128xf32> to vector<128x128xf32>
      %c0_i32_110 = arith.constant 0 : i32
      %186 = arith.addi %53, %c0_i32_110 : i32
      %c1_111 = arith.constant 1 : index
      %187 = arith.index_cast %186 : i32 to index
      %c0_112 = arith.constant 0 : index
      %c0_113 = arith.constant 0 : index
      %188 = vector.load %arg10[%c1_111, %187, %c0_112, %c0_113] : memref<2x16x128x128xf32, #tpu.memory_space<vmem>>, vector<1x1x128x128xf32>
      %189 = vector.shape_cast %188 : vector<1x1x128x128xf32> to vector<128x128xf32>
      %c0_i32_114 = arith.constant 0 : i32
      %190 = arith.addi %53, %c0_i32_114 : i32
      %c1_115 = arith.constant 1 : index
      %191 = arith.index_cast %190 : i32 to index
      %c0_116 = arith.constant 0 : index
      %192 = vector.load %arg2[%c1_115, %191, %c0_116] : memref<2x16x128xf32, #tpu.memory_space<vmem>>, vector<1x1x128xf32>
      %193 = vector.shape_cast %192 : vector<1x1x128xf32> to vector<1x128xf32>
      %cst_117 = arith.constant dense<0.000000e+00> : vector<128x128xf32>
      %194 = tpu.matmul %189, %185, %cst_117 {dimension_numbers = #tpu.dot_dimension_numbers<[1], [0], [0], [1], [0, 0, 1, 1], [], []>} : vector<128x128xf32>, vector<128x128xf32>, vector<128x128xf32> -> vector<128x128xf32>
      %195 = vector.broadcast %193 : vector<1x128xf32> to vector<128x128xf32>
      %196 = arith.mulf %195, %42 : vector<128x128xf32>
      %197 = arith.addf %194, %196 : vector<128x128xf32>
      %198 = arith.mulf %197, %43 : vector<128x128xf32>
      %cst_118 = arith.constant dense<0.000000e+00> : vector<128xf32>
      %199 = vector.multi_reduction <add>, %198, %cst_118 [0] : vector<128x128xf32> to vector<128xf32>
      %200 = vector.shape_cast %199 : vector<128xf32> to vector<1x128xf32>
      %c1_i32_119 = arith.constant 1 : i32
      %201 = arith.addi %53, %c1_i32_119 : i32
      %c1_120 = arith.constant 1 : index
      %202 = arith.index_cast %201 : i32 to index
      %c0_121 = arith.constant 0 : index
      %c0_122 = arith.constant 0 : index
      %203 = vector.load %arg10[%c1_120, %202, %c0_121, %c0_122] : memref<2x16x128x128xf32, #tpu.memory_space<vmem>>, vector<1x1x128x128xf32>
      %204 = vector.shape_cast %203 : vector<1x1x128x128xf32> to vector<128x128xf32>
      %c1_i32_123 = arith.constant 1 : i32
      %205 = arith.addi %53, %c1_i32_123 : i32
      %c1_124 = arith.constant 1 : index
      %206 = arith.index_cast %205 : i32 to index
      %c0_125 = arith.constant 0 : index
      %207 = vector.load %arg2[%c1_124, %206, %c0_125] : memref<2x16x128xf32, #tpu.memory_space<vmem>>, vector<1x1x128xf32>
      %208 = vector.shape_cast %207 : vector<1x1x128xf32> to vector<1x128xf32>
      %cst_126 = arith.constant dense<0.000000e+00> : vector<128x128xf32>
      %209 = tpu.matmul %204, %197, %cst_126 {dimension_numbers = #tpu.dot_dimension_numbers<[1], [0], [0], [1], [0, 0, 1, 1], [], []>} : vector<128x128xf32>, vector<128x128xf32>, vector<128x128xf32> -> vector<128x128xf32>
      %210 = vector.broadcast %208 : vector<1x128xf32> to vector<128x128xf32>
      %211 = arith.mulf %210, %42 : vector<128x128xf32>
      %212 = arith.addf %209, %211 : vector<128x128xf32>
      %213 = arith.mulf %212, %43 : vector<128x128xf32>
      %cst_127 = arith.constant dense<0.000000e+00> : vector<128xf32>
      %214 = vector.multi_reduction <add>, %213, %cst_127 [0] : vector<128x128xf32> to vector<128xf32>
      %215 = vector.shape_cast %214 : vector<128xf32> to vector<1x128xf32>
      %c2_i32_128 = arith.constant 2 : i32
      %216 = arith.addi %53, %c2_i32_128 : i32
      %c1_129 = arith.constant 1 : index
      %217 = arith.index_cast %216 : i32 to index
      %c0_130 = arith.constant 0 : index
      %c0_131 = arith.constant 0 : index
      %218 = vector.load %arg10[%c1_129, %217, %c0_130, %c0_131] : memref<2x16x128x128xf32, #tpu.memory_space<vmem>>, vector<1x1x128x128xf32>
      %219 = vector.shape_cast %218 : vector<1x1x128x128xf32> to vector<128x128xf32>
      %c2_i32_132 = arith.constant 2 : i32
      %220 = arith.addi %53, %c2_i32_132 : i32
      %c1_133 = arith.constant 1 : index
      %221 = arith.index_cast %220 : i32 to index
      %c0_134 = arith.constant 0 : index
      %222 = vector.load %arg2[%c1_133, %221, %c0_134] : memref<2x16x128xf32, #tpu.memory_space<vmem>>, vector<1x1x128xf32>
      %223 = vector.shape_cast %222 : vector<1x1x128xf32> to vector<1x128xf32>
      %cst_135 = arith.constant dense<0.000000e+00> : vector<128x128xf32>
      %224 = tpu.matmul %219, %212, %cst_135 {dimension_numbers = #tpu.dot_dimension_numbers<[1], [0], [0], [1], [0, 0, 1, 1], [], []>} : vector<128x128xf32>, vector<128x128xf32>, vector<128x128xf32> -> vector<128x128xf32>
      %225 = vector.broadcast %223 : vector<1x128xf32> to vector<128x128xf32>
      %226 = arith.mulf %225, %42 : vector<128x128xf32>
      %227 = arith.addf %224, %226 : vector<128x128xf32>
      %228 = arith.mulf %227, %43 : vector<128x128xf32>
      %cst_136 = arith.constant dense<0.000000e+00> : vector<128xf32>
      %229 = vector.multi_reduction <add>, %228, %cst_136 [0] : vector<128x128xf32> to vector<128xf32>
      %230 = vector.shape_cast %229 : vector<128xf32> to vector<1x128xf32>
      %c3_i32_137 = arith.constant 3 : i32
      %231 = arith.addi %53, %c3_i32_137 : i32
      %c1_138 = arith.constant 1 : index
      %232 = arith.index_cast %231 : i32 to index
      %c0_139 = arith.constant 0 : index
      %c0_140 = arith.constant 0 : index
      %233 = vector.load %arg10[%c1_138, %232, %c0_139, %c0_140] : memref<2x16x128x128xf32, #tpu.memory_space<vmem>>, vector<1x1x128x128xf32>
      %234 = vector.shape_cast %233 : vector<1x1x128x128xf32> to vector<128x128xf32>
      %c3_i32_141 = arith.constant 3 : i32
      %235 = arith.addi %53, %c3_i32_141 : i32
      %c1_142 = arith.constant 1 : index
      %236 = arith.index_cast %235 : i32 to index
      %c0_143 = arith.constant 0 : index
      %237 = vector.load %arg2[%c1_142, %236, %c0_143] : memref<2x16x128xf32, #tpu.memory_space<vmem>>, vector<1x1x128xf32>
      %238 = vector.shape_cast %237 : vector<1x1x128xf32> to vector<1x128xf32>
      %cst_144 = arith.constant dense<0.000000e+00> : vector<128x128xf32>
      %239 = tpu.matmul %234, %227, %cst_144 {dimension_numbers = #tpu.dot_dimension_numbers<[1], [0], [0], [1], [0, 0, 1, 1], [], []>} : vector<128x128xf32>, vector<128x128xf32>, vector<128x128xf32> -> vector<128x128xf32>
      %240 = vector.broadcast %238 : vector<1x128xf32> to vector<128x128xf32>
      %241 = arith.mulf %240, %42 : vector<128x128xf32>
      %242 = arith.addf %239, %241 : vector<128x128xf32>
      %243 = arith.mulf %242, %43 : vector<128x128xf32>
      %cst_145 = arith.constant dense<0.000000e+00> : vector<128xf32>
      %244 = vector.multi_reduction <add>, %243, %cst_145 [0] : vector<128x128xf32> to vector<128xf32>
      %245 = vector.shape_cast %244 : vector<128xf32> to vector<1x128xf32>
      %c4_i32_146 = arith.constant 4 : i32
      %246 = arith.addi %53, %c4_i32_146 : i32
      %c1_147 = arith.constant 1 : index
      %247 = arith.index_cast %246 : i32 to index
      %c0_148 = arith.constant 0 : index
      %c0_149 = arith.constant 0 : index
      %248 = vector.load %arg10[%c1_147, %247, %c0_148, %c0_149] : memref<2x16x128x128xf32, #tpu.memory_space<vmem>>, vector<1x1x128x128xf32>
      %249 = vector.shape_cast %248 : vector<1x1x128x128xf32> to vector<128x128xf32>
      %c4_i32_150 = arith.constant 4 : i32
      %250 = arith.addi %53, %c4_i32_150 : i32
      %c1_151 = arith.constant 1 : index
      %251 = arith.index_cast %250 : i32 to index
      %c0_152 = arith.constant 0 : index
      %252 = vector.load %arg2[%c1_151, %251, %c0_152] : memref<2x16x128xf32, #tpu.memory_space<vmem>>, vector<1x1x128xf32>
      %253 = vector.shape_cast %252 : vector<1x1x128xf32> to vector<1x128xf32>
      %cst_153 = arith.constant dense<0.000000e+00> : vector<128x128xf32>
      %254 = tpu.matmul %249, %242, %cst_153 {dimension_numbers = #tpu.dot_dimension_numbers<[1], [0], [0], [1], [0, 0, 1, 1], [], []>} : vector<128x128xf32>, vector<128x128xf32>, vector<128x128xf32> -> vector<128x128xf32>
      %255 = vector.broadcast %253 : vector<1x128xf32> to vector<128x128xf32>
      %256 = arith.mulf %255, %42 : vector<128x128xf32>
      %257 = arith.addf %254, %256 : vector<128x128xf32>
      %258 = arith.mulf %257, %43 : vector<128x128xf32>
      %cst_154 = arith.constant dense<0.000000e+00> : vector<128xf32>
      %259 = vector.multi_reduction <add>, %258, %cst_154 [0] : vector<128x128xf32> to vector<128xf32>
      %260 = vector.shape_cast %259 : vector<128xf32> to vector<1x128xf32>
      %c5_i32_155 = arith.constant 5 : i32
      %261 = arith.addi %53, %c5_i32_155 : i32
      %c1_156 = arith.constant 1 : index
      %262 = arith.index_cast %261 : i32 to index
      %c0_157 = arith.constant 0 : index
      %c0_158 = arith.constant 0 : index
      %263 = vector.load %arg10[%c1_156, %262, %c0_157, %c0_158] : memref<2x16x128x128xf32, #tpu.memory_space<vmem>>, vector<1x1x128x128xf32>
      %264 = vector.shape_cast %263 : vector<1x1x128x128xf32> to vector<128x128xf32>
      %c5_i32_159 = arith.constant 5 : i32
      %265 = arith.addi %53, %c5_i32_159 : i32
      %c1_160 = arith.constant 1 : index
      %266 = arith.index_cast %265 : i32 to index
      %c0_161 = arith.constant 0 : index
      %267 = vector.load %arg2[%c1_160, %266, %c0_161] : memref<2x16x128xf32, #tpu.memory_space<vmem>>, vector<1x1x128xf32>
      %268 = vector.shape_cast %267 : vector<1x1x128xf32> to vector<1x128xf32>
      %cst_162 = arith.constant dense<0.000000e+00> : vector<128x128xf32>
      %269 = tpu.matmul %264, %257, %cst_162 {dimension_numbers = #tpu.dot_dimension_numbers<[1], [0], [0], [1], [0, 0, 1, 1], [], []>} : vector<128x128xf32>, vector<128x128xf32>, vector<128x128xf32> -> vector<128x128xf32>
      %270 = vector.broadcast %268 : vector<1x128xf32> to vector<128x128xf32>
      %271 = arith.mulf %270, %42 : vector<128x128xf32>
      %272 = arith.addf %269, %271 : vector<128x128xf32>
      %273 = arith.mulf %272, %43 : vector<128x128xf32>
      %cst_163 = arith.constant dense<0.000000e+00> : vector<128xf32>
      %274 = vector.multi_reduction <add>, %273, %cst_163 [0] : vector<128x128xf32> to vector<128xf32>
      %275 = vector.shape_cast %274 : vector<128xf32> to vector<1x128xf32>
      %c6_i32_164 = arith.constant 6 : i32
      %276 = arith.addi %53, %c6_i32_164 : i32
      %c1_165 = arith.constant 1 : index
      %277 = arith.index_cast %276 : i32 to index
      %c0_166 = arith.constant 0 : index
      %c0_167 = arith.constant 0 : index
      %278 = vector.load %arg10[%c1_165, %277, %c0_166, %c0_167] : memref<2x16x128x128xf32, #tpu.memory_space<vmem>>, vector<1x1x128x128xf32>
      %279 = vector.shape_cast %278 : vector<1x1x128x128xf32> to vector<128x128xf32>
      %c6_i32_168 = arith.constant 6 : i32
      %280 = arith.addi %53, %c6_i32_168 : i32
      %c1_169 = arith.constant 1 : index
      %281 = arith.index_cast %280 : i32 to index
      %c0_170 = arith.constant 0 : index
      %282 = vector.load %arg2[%c1_169, %281, %c0_170] : memref<2x16x128xf32, #tpu.memory_space<vmem>>, vector<1x1x128xf32>
      %283 = vector.shape_cast %282 : vector<1x1x128xf32> to vector<1x128xf32>
      %cst_171 = arith.constant dense<0.000000e+00> : vector<128x128xf32>
      %284 = tpu.matmul %279, %272, %cst_171 {dimension_numbers = #tpu.dot_dimension_numbers<[1], [0], [0], [1], [0, 0, 1, 1], [], []>} : vector<128x128xf32>, vector<128x128xf32>, vector<128x128xf32> -> vector<128x128xf32>
      %285 = vector.broadcast %283 : vector<1x128xf32> to vector<128x128xf32>
      %286 = arith.mulf %285, %42 : vector<128x128xf32>
      %287 = arith.addf %284, %286 : vector<128x128xf32>
      %288 = arith.mulf %287, %43 : vector<128x128xf32>
      %cst_172 = arith.constant dense<0.000000e+00> : vector<128xf32>
      %289 = vector.multi_reduction <add>, %288, %cst_172 [0] : vector<128x128xf32> to vector<128xf32>
      %290 = vector.shape_cast %289 : vector<128xf32> to vector<1x128xf32>
      %c7_i32_173 = arith.constant 7 : i32
      %291 = arith.addi %53, %c7_i32_173 : i32
      %c1_174 = arith.constant 1 : index
      %292 = arith.index_cast %291 : i32 to index
      %c0_175 = arith.constant 0 : index
      %c0_176 = arith.constant 0 : index
      %293 = vector.load %arg10[%c1_174, %292, %c0_175, %c0_176] : memref<2x16x128x128xf32, #tpu.memory_space<vmem>>, vector<1x1x128x128xf32>
      %294 = vector.shape_cast %293 : vector<1x1x128x128xf32> to vector<128x128xf32>
      %c7_i32_177 = arith.constant 7 : i32
      %295 = arith.addi %53, %c7_i32_177 : i32
      %c1_178 = arith.constant 1 : index
      %296 = arith.index_cast %295 : i32 to index
      %c0_179 = arith.constant 0 : index
      %297 = vector.load %arg2[%c1_178, %296, %c0_179] : memref<2x16x128xf32, #tpu.memory_space<vmem>>, vector<1x1x128xf32>
      %298 = vector.shape_cast %297 : vector<1x1x128xf32> to vector<1x128xf32>
      %cst_180 = arith.constant dense<0.000000e+00> : vector<128x128xf32>
      %299 = tpu.matmul %294, %287, %cst_180 {dimension_numbers = #tpu.dot_dimension_numbers<[1], [0], [0], [1], [0, 0, 1, 1], [], []>} : vector<128x128xf32>, vector<128x128xf32>, vector<128x128xf32> -> vector<128x128xf32>
      %300 = vector.broadcast %298 : vector<1x128xf32> to vector<128x128xf32>
      %301 = arith.mulf %300, %42 : vector<128x128xf32>
      %302 = arith.addf %299, %301 : vector<128x128xf32>
      %303 = arith.mulf %302, %43 : vector<128x128xf32>
      %cst_181 = arith.constant dense<0.000000e+00> : vector<128xf32>
      %304 = vector.multi_reduction <add>, %303, %cst_181 [0] : vector<128x128xf32> to vector<128xf32>
      %305 = vector.shape_cast %304 : vector<128xf32> to vector<1x128xf32>
      %c1_182 = arith.constant 1 : index
      %c0_183 = arith.constant 0 : index
      %c0_184 = arith.constant 0 : index
      %306 = vector.load %arg11[%c1_182, %c0_183, %c0_184] : memref<2x128x128xf32, #tpu.memory_space<vmem>>, vector<1x128x128xf32>
      %307 = vector.shape_cast %306 : vector<1x128x128xf32> to vector<128x128xf32>
      %308 = vector.shape_cast %302 : vector<128x128xf32> to vector<1x128x128xf32>
      tpu.vector_store %arg11[%c1_182, %c0_183, %c0_184], %308 {strides = array<i32>} : memref<2x128x128xf32, #tpu.memory_space<vmem>>, vector<1x128x128xf32>,
      %309 = tpu.concatenate %200, %215, %230, %245, %260, %275, %290, %305 in 0 : vector<1x128xf32>, vector<1x128xf32>, vector<1x128xf32>, vector<1x128xf32>, vector<1x128xf32>, vector<1x128xf32>, vector<1x128xf32>, vector<1x128xf32> -> vector<8x128xf32>
      %c1_185 = arith.constant 1 : index
      %310 = arith.index_cast %53 : i32 to index
      %c0_186 = arith.constant 0 : index
      %311 = vector.load %arg12[%c1_185, %310, %c0_186] : memref<2x16x128xf32, #tpu.memory_space<vmem>>, vector<1x8x128xf32>
      %312 = vector.shape_cast %311 : vector<1x8x128xf32> to vector<8x128xf32>
      %313 = vector.shape_cast %309 : vector<8x128xf32> to vector<1x8x128xf32>
      tpu.vector_store %arg12[%c1_185, %310, %c0_186], %313 {strides = array<i32>} : memref<2x16x128xf32, #tpu.memory_space<vmem>>, vector<1x8x128xf32>,
    }
    %c2_i32_23 = arith.constant 2 : i32
    %c0_24 = arith.constant 0 : index
    %c0_25 = arith.constant 0 : index
    %c0_26 = arith.constant 0 : index
    %45 = vector.load %arg12[%c0_24, %c0_25, %c0_26] : memref<2x16x128xf32, #tpu.memory_space<vmem>>, vector<2x16x128xf32>
    %c0_27 = arith.constant 0 : index
    %c0_28 = arith.constant 0 : index
    %46 = vector.load %arg8[%c0_27, %c0_28] : memref<1x128xf32, #tpu.memory_space<vmem>>, vector<1x128xf32>
    %47 = vector.shape_cast %46 : vector<1x128xf32> to vector<1x1x128xf32>
    %48 = vector.broadcast %47 : vector<1x1x128xf32> to vector<2x16x128xf32>
    %49 = arith.mulf %3, %48 : vector<2x16x128xf32>
    %50 = arith.addf %45, %49 : vector<2x16x128xf32>
    %c0_29 = arith.constant 0 : index
    %c0_30 = arith.constant 0 : index
    %c0_31 = arith.constant 0 : index
    %51 = vector.load %arg9[%c0_29, %c0_30, %c0_31] : memref<2x16x128xf32, #tpu.memory_space<vmem>>, vector<2x16x128xf32>
    tpu.vector_store %arg9[%c0_29, %c0_30, %c0_31], %50 {strides = array<i32>} : memref<2x16x128xf32, #tpu.memory_space<vmem>>, vector<2x16x128xf32>,
    return
  }
  func.func @transform_0(%arg0: i32, %arg1: i32) -> (i32, i32, i32) {
    %c0_i32 = arith.constant 0 : i32
    %c0_i32_0 = arith.constant 0 : i32
    return %arg0, %arg1, %c0_i32 : i32, i32, i32
  }
  func.func @transform_1(%arg0: i32, %arg1: i32) -> (i32, i32) {
    %c0_i32 = arith.constant 0 : i32
    %c0_i32_0 = arith.constant 0 : i32
    %c0_i32_1 = arith.constant 0 : i32
    return %c0_i32, %c0_i32_0 : i32, i32
  }
  func.func @transform_2(%arg0: i32, %arg1: i32) -> (i32, i32) {
    %c0_i32 = arith.constant 0 : i32
    %c0_i32_0 = arith.constant 0 : i32
    %c0_i32_1 = arith.constant 0 : i32
    return %c0_i32, %c0_i32_0 : i32, i32
  }
  func.func @transform_3(%arg0: i32, %arg1: i32) -> (i32, i32) {
    %c0_i32 = arith.constant 0 : i32
    %c0_i32_0 = arith.constant 0 : i32
    %c0_i32_1 = arith.constant 0 : i32
    return %c0_i32, %c0_i32_0 : i32, i32
  }
  func.func @transform_4(%arg0: i32, %arg1: i32) -> (i32, i32) {
    %c0_i32 = arith.constant 0 : i32
    %c0_i32_0 = arith.constant 0 : i32
    %c0_i32_1 = arith.constant 0 : i32
    return %c0_i32, %c0_i32_0 : i32, i32
  }
  func.func @transform_5(%arg0: i32, %arg1: i32) -> (i32, i32) {
    %c0_i32 = arith.constant 0 : i32
    %c0_i32_0 = arith.constant 0 : i32
    %c0_i32_1 = arith.constant 0 : i32
    return %c0_i32, %c0_i32_0 : i32, i32
  }
  func.func @transform_6(%arg0: i32, %arg1: i32) -> (i32, i32) {
    %c0_i32 = arith.constant 0 : i32
    %c0_i32_0 = arith.constant 0 : i32
    %c0_i32_1 = arith.constant 0 : i32
    return %c0_i32, %c0_i32_0 : i32, i32
  }
  func.func @transform_7(%arg0: i32, %arg1: i32) -> (i32, i32, i32) {
    %c0_i32 = arith.constant 0 : i32
    %c0_i32_0 = arith.constant 0 : i32
    return %arg0, %arg1, %c0_i32 : i32, i32, i32
  }
}

</mosaic_0001>

<llo_original>
// kernel: tpu_custom_call.1
$region0: #{tpu_custom_call.1}
  #allocation0 [shape = 'u32[]', space=smem, size = 0x4, offset = 0x4, fixed_abs, tag = 'smem constant byte address 0x4 - core index']
  #allocation1 [shape = 'u32[72,128]{1,0:T(1,128)}', space=vmem, size = 0x9000, scoped, tag = 'internal scratch']
  #allocation2 [shape = 'f32[2,16,128,128]{3,2,1,0:T(8,128)}', space=vmem, size = 0x200000, scoped, tag = 'scratch operand']
  #allocation3 [shape = 'f32[2,128,128]{2,1,0:T(8,128)}', space=vmem, size = 0x20000, scoped, tag = 'scratch operand']
  #allocation4 [shape = 'f32[2,16,128]{2,1,0:T(8,128)}', space=vmem, size = 0x4000, scoped, tag = 'scratch operand']
  #allocation15 [shape = 's32[]', space=sflag, size = 0x4, offset = 0, fixed_abs, tag = 'sflag constant byte address 0x0 - dummy sync flag']
  #allocation17 [shape = 's32[]', space=sflag, size = 0x4, offset = 0, fixed_abs, tag = 'sflag constant byte address 0x0 - dummy sync flag']
  %s0 = inlined_call_operand.hbm [shape: f32[4,32,128], index: 0, kind: input, shape index: {}]
  %s1 = inlined_call_operand.hbm [shape: f32[128,128], index: 1, kind: input, shape index: {}]
  %s2 = inlined_call_operand.vmem [shape: f32[1,128], index: 2, kind: input, shape index: {}]
  %s3 = inlined_call_operand.hbm [shape: f32[128,128], index: 3, kind: input, shape index: {}]
  %s4 = inlined_call_operand.hbm [shape: f32[128,128], index: 4, kind: input, shape index: {}]
  %s5 = inlined_call_operand.hbm [shape: f32[128,128], index: 5, kind: input, shape index: {}]
  %s6 = inlined_call_operand.vmem [shape: f32[1,128], index: 6, kind: input, shape index: {}]
  %s7 = inlined_call_operand.hbm [shape: f32[4,32,128], index: 7, kind: output, shape index: {}]
  %s8 = sld [smem:[#allocation0]]
  $region92: #{tpu_custom_call.1} parent=0
    _
  %s10 = ssub.s32 1, %s8
  %s11 = scalar_select 0, %s10, %s8
  $region1: #{tpu_custom_call.1} parent=0
    #allocation5 [shape = 'u8[32768]{0}', space=vmem, size = 0x8000, scoped, tag = 'input window, operand 0']
    #allocation6 [shape = 's32[2]{0}', space=sflag, size = 0x8, scoped, tag = 'scoped memory for tpu_custom_call.1']
    #allocation7 [shape = 's32[2]{0}', space=sflag, size = 0x8, scoped, tag = 'scoped memory for tpu_custom_call.1']
    #allocation8 [shape = 'u8[65536]{0}', space=vmem, size = 0x10000, scoped, tag = 'input window, operand 1, single buffered']
    #allocation9 [shape = 's32[1]{0}', space=sflag, size = 0x4, scoped, tag = 'scoped memory for tpu_custom_call.1']
    #allocation10 [shape = 'u8[65536]{0}', space=vmem, size = 0x10000, scoped, tag = 'input window, operand 3, single buffered']
    #allocation11 [shape = 'u8[65536]{0}', space=vmem, size = 0x10000, scoped, tag = 'input window, operand 4, single buffered']
    #allocation12 [shape = 's32[1]{0}', space=sflag, size = 0x4, scoped, tag = 'scoped memory for tpu_custom_call.1']
    #allocation13 [shape = 'u8[65536]{0}', space=vmem, size = 0x10000, scoped, tag = 'input window, operand 5, single buffered']
    #allocation14 [shape = 'u8[32768]{0}', space=vmem, size = 0x8000, scoped, tag = 'output window, operand 0']
    %12 = vsyncpa [#allocation6], 0
    %s13 = scalar_lea.sflag [#allocation6], 1
    %14 = vsyncpa %s13, 0
    %15 = vsyncpa [#allocation9], 0
    %16 = vsyncpa [#allocation12], 0
    %17 = vsyncpa [#allocation7], 0
    %s18 = scalar_lea.sflag [#allocation7], 1
    %19 = vsyncpa %s18, 0
    loop: start=0, step=1, limit=6
    $region2: #{tpu_custom_call.1} parent=1 // loop_pre_header
      _
    $region3: #{tpu_custom_call.1} parent=1 // loop_header
      %s21 = sphi 0, %s25
      %p22 = scmp.ge.s32.totalorder %s21, 6
      %s28 = sphi 0, %s40
      %s29 = sphi 0, %s36
      %s30 = sphi 0, %s28
      %s31 = sphi 0, %s29
      %s32 = sphi 0, %s30
      %s33 = sphi 0, %s31
      %s45 = sphi 0, %s47
      %s48 = sphi 0, %s45
      %s49 = sphi 0, %s48
      %s65 = sphi 0, %s49
      %s69 = sphi 0, %s69
      %s71 = sphi 0, %s69
      %s72 = sphi 0, %s71
      %s86 = sphi 0, %s72
      %s90 = sphi 0, %s90
      %s92 = sphi 0, %s90
      %s93 = sphi 0, %s92
      %s107 = sphi 0, %s93
      %s111 = sphi 0, %s111
      %s113 = sphi 0, %s111
      %s114 = sphi 0, %s113
      %s128 = sphi 0, %s114
      %s132 = sphi 0, %s132
      %s134 = sphi 0, %s132
      %s135 = sphi 0, %s134
      %s149 = sphi 0, %s135
      %s153 = sphi 0, %s153
      %s155 = sphi 0, %s153
      %s156 = sphi 0, %s155
      %s170 = sphi 0, %s156
      %s174 = sphi 0, %s174
      %s176 = sphi 0, %s174
      %s177 = sphi 0, %s176
      %s191 = sphi 0, %s177
      %s199 = sphi 0, %s201
      %s202 = sphi 0, %s199
      %s203 = sphi 0, %s202
      %s219 = sphi 0, %s203
    $region4: #{tpu_custom_call.1} parent=1 // loop_header_branch
      %24 = sbr.rel (%p22) target = $region8
    $region5: #{tpu_custom_call.1} parent=1 // loop_body
      %s26 = ssub.s32 %s21, 1
      %s27 = ssub.s32 %s21, 2
      %s34 = sadd.s32 1, %s29
      %p35 = scmp.ge.s32.totalorder %s34, 2
      %s36 = scalar_select %p35, 0, %s34
      %s37 = sadd.s32 1, %s28
      %s38 = scalar_select %p35, %s37, %s28
      %p39 = scmp.ge.s32.totalorder %s38, 2
      %s40 = scalar_select %p39, 0, %s38
      %s41 = ssub.s32 %s28, %s40
      %s42 = ssub.s32 %s29, %s36
      %s43 = sor.u32 %s41, %s42
      %p44 = scmp.eq.s32.totalorder %s43, 0
      %s46 = sadd.s32 %s45, 1
      %s47 = scalar_select %p44, %s45, %s46
      %p50 = pneg %p44
      %p51 = scmp.eq.s32.totalorder %s21, 3
      %p52 = por %p50, %p51
      %p53 = scmp.ne.s32.totalorder %s45, %s48
      %p54 = scmp.eq.s32.totalorder %s21, 0
      %p55 = por %p53, %p54
      %p56 = scmp.ne.s32.totalorder %s45, %s48
      %p57 = scmp.eq.s32.totalorder %s26, 3
      %p58 = por %p56, %p57
      %p59 = scmp.ne.s32.totalorder %s48, %s49
      %p60 = scmp.eq.s32.totalorder %s26, 0
      %p61 = por %p59, %p60
      %p62 = scmp.ne.s32.totalorder %s48, %s49
      %p63 = scmp.eq.s32.totalorder %s27, 3
      %p64 = por %p62, %p63
      %p66 = scmp.ne.s32.totalorder %s49, %s65
      %p67 = scmp.eq.s32.totalorder %s27, 0
      %p68 = por %p66, %p67
      %s70 = sadd.s32 %s69, 1
      %p73 = scmp.eq.s32.totalorder %s21, 3
      %p74 = scmp.ne.s32.totalorder %s69, %s71
      %p75 = scmp.eq.s32.totalorder %s21, 0
      %p76 = por %p74, %p75
      %p77 = scmp.ne.s32.totalorder %s69, %s71
      %p78 = scmp.eq.s32.totalorder %s26, 3
      %p79 = por %p77, %p78
      %p80 = scmp.ne.s32.totalorder %s71, %s72
      %p81 = scmp.eq.s32.totalorder %s26, 0
      %p82 = por %p80, %p81
      %p83 = scmp.ne.s32.totalorder %s71, %s72
      %p84 = scmp.eq.s32.totalorder %s27, 3
      %p85 = por %p83, %p84
      %p87 = scmp.ne.s32.totalorder %s72, %s86
      %p88 = scmp.eq.s32.totalorder %s27, 0
      %p89 = por %p87, %p88
      %s91 = sadd.s32 %s90, 1
      %p94 = scmp.eq.s32.totalorder %s21, 3
      %p95 = scmp.ne.s32.totalorder %s90, %s92
      %p96 = scmp.eq.s32.totalorder %s21, 0
      %p97 = por %p95, %p96
      %p98 = scmp.ne.s32.totalorder %s90, %s92
      %p99 = scmp.eq.s32.totalorder %s26, 3
      %p100 = por %p98, %p99
      %p101 = scmp.ne.s32.totalorder %s92, %s93
      %p102 = scmp.eq.s32.totalorder %s26, 0
      %p103 = por %p101, %p102
      %p104 = scmp.ne.s32.totalorder %s92, %s93
      %p105 = scmp.eq.s32.totalorder %s27, 3
      %p106 = por %p104, %p105
      %p108 = scmp.ne.s32.totalorder %s93, %s107
      %p109 = scmp.eq.s32.totalorder %s27, 0
      %p110 = por %p108, %p109
      %s112 = sadd.s32 %s111, 1
      %p115 = scmp.eq.s32.totalorder %s21, 3
      %p116 = scmp.ne.s32.totalorder %s111, %s113
      %p117 = scmp.eq.s32.totalorder %s21, 0
      %p118 = por %p116, %p117
      %p119 = scmp.ne.s32.totalorder %s111, %s113
      %p120 = scmp.eq.s32.totalorder %s26, 3
      %p121 = por %p119, %p120
      %p122 = scmp.ne.s32.totalorder %s113, %s114
      %p123 = scmp.eq.s32.totalorder %s26, 0
      %p124 = por %p122, %p123
      %p125 = scmp.ne.s32.totalorder %s113, %s114
      %p126 = scmp.eq.s32.totalorder %s27, 3
      %p127 = por %p125, %p126
      %p129 = scmp.ne.s32.totalorder %s114, %s128
      %p130 = scmp.eq.s32.totalorder %s27, 0
      %p131 = por %p129, %p130
      %s133 = sadd.s32 %s132, 1
      %p136 = scmp.eq.s32.totalorder %s21, 3
      %p137 = scmp.ne.s32.totalorder %s132, %s134
      %p138 = scmp.eq.s32.totalorder %s21, 0
      %p139 = por %p137, %p138
      %p140 = scmp.ne.s32.totalorder %s132, %s134
      %p141 = scmp.eq.s32.totalorder %s26, 3
      %p142 = por %p140, %p141
      %p143 = scmp.ne.s32.totalorder %s134, %s135
      %p144 = scmp.eq.s32.totalorder %s26, 0
      %p145 = por %p143, %p144
      %p146 = scmp.ne.s32.totalorder %s134, %s135
      %p147 = scmp.eq.s32.totalorder %s27, 3
      %p148 = por %p146, %p147
      %p150 = scmp.ne.s32.totalorder %s135, %s149
      %p151 = scmp.eq.s32.totalorder %s27, 0
      %p152 = por %p150, %p151
      %s154 = sadd.s32 %s153, 1
      %p157 = scmp.eq.s32.totalorder %s21, 3
      %p158 = scmp.ne.s32.totalorder %s153, %s155
      %p159 = scmp.eq.s32.totalorder %s21, 0
      %p160 = por %p158, %p159
      %p161 = scmp.ne.s32.totalorder %s153, %s155
      %p162 = scmp.eq.s32.totalorder %s26, 3
      %p163 = por %p161, %p162
      %p164 = scmp.ne.s32.totalorder %s155, %s156
      %p165 = scmp.eq.s32.totalorder %s26, 0
      %p166 = por %p164, %p165
      %p167 = scmp.ne.s32.totalorder %s155, %s156
      %p168 = scmp.eq.s32.totalorder %s27, 3
      %p169 = por %p167, %p168
      %p171 = scmp.ne.s32.totalorder %s156, %s170
      %p172 = scmp.eq.s32.totalorder %s27, 0
      %p173 = por %p171, %p172
      %s175 = sadd.s32 %s174, 1
      %p178 = scmp.eq.s32.totalorder %s21, 3
      %p179 = scmp.ne.s32.totalorder %s174, %s176
      %p180 = scmp.eq.s32.totalorder %s21, 0
      %p181 = por %p179, %p180
      %p182 = scmp.ne.s32.totalorder %s174, %s176
      %p183 = scmp.eq.s32.totalorder %s26, 3
      %p184 = por %p182, %p183
      %p185 = scmp.ne.s32.totalorder %s176, %s177
      %p186 = scmp.eq.s32.totalorder %s26, 0
      %p187 = por %p185, %p186
      %p188 = scmp.ne.s32.totalorder %s176, %s177
      %p189 = scmp.eq.s32.totalorder %s27, 3
      %p190 = por %p188, %p189
      %p192 = scmp.ne.s32.totalorder %s177, %s191
      %p193 = scmp.eq.s32.totalorder %s27, 0
      %p194 = por %p192, %p193
      %s195 = ssub.s32 %s28, %s40
      %s196 = ssub.s32 %s29, %s36
      %s197 = sor.u32 %s195, %s196
      %p198 = scmp.eq.s32.totalorder %s197, 0
      %s200 = sadd.s32 %s199, 1
      %s201 = scalar_select %p198, %s199, %s200
      %p204 = pneg %p198
      %p205 = scmp.eq.s32.totalorder %s21, 3
      %p206 = por %p204, %p205
      %p207 = scmp.ne.s32.totalorder %s199, %s202
      %p208 = scmp.eq.s32.totalorder %s21, 0
      %p209 = por %p207, %p208
      %p210 = scmp.ne.s32.totalorder %s199, %s202
      %p211 = scmp.eq.s32.totalorder %s26, 3
      %p212 = por %p210, %p211
      %p213 = scmp.ne.s32.totalorder %s202, %s203
      %p214 = scmp.eq.s32.totalorder %s26, 0
      %p215 = por %p213, %p214
      %p216 = scmp.ne.s32.totalorder %s202, %s203
      %p217 = scmp.eq.s32.totalorder %s27, 3
      %p218 = por %p216, %p217
      %p220 = scmp.ne.s32.totalorder %s203, %s219
      %p221 = scmp.eq.s32.totalorder %s27, 0
      %p222 = por %p220, %p221
      %p223 = scmp.le.s32.totalorder 1, %s21
      %p224 = scmp.lt.s32.totalorder %s21, 5
      %p225 = pnand %p223, %p224
      %p226 = pneg %p225
      // Predicated region
      $region9: #{tpu_custom_call.1} parent=5 // pred_check
        _
      $region10: #{tpu_custom_call.1} parent=5 // pred_check_branch
        %228 = sbr.rel (%p225) target = $region12
      $region11: #{tpu_custom_call.1} parent=5 // pred_region
        %s229 = ssub.s32 %s21, 1
        // Predicated region
        $region13: #{tpu_custom_call.1} parent=11 // pred_check
          %p230 = pneg %p82
        $region14: #{tpu_custom_call.1} parent=11 // pred_check_branch
          %232 = sbr.rel (%p230) target = $region16
        $region15: #{tpu_custom_call.1} parent=11 // pred_region
          %234 = vsyncadd [#allocation9], 0
          %s235 = sshll.u32 %s1, 4
          %s236 = int_to_ptr.hbm [resolvable:$true] %s235
          %s237 = sshll.u32 [#allocation8], 4
          %s238 = int_to_ptr.vmem [resolvable:$true] %s237
          %243 = dma.hbm_to_vmem [thread:$0]  %s236, 2048, %s238, [#allocation9], 128, 128, 8
        $region16: #{tpu_custom_call.1} parent=11 // pred_fallthru
          _
        // Predicated region
        $region17: #{tpu_custom_call.1} parent=11 // pred_check
          %p244 = pneg %p103
        $region18: #{tpu_custom_call.1} parent=11 // pred_check_branch
          %246 = sbr.rel (%p244) target = $region20
        $region19: #{tpu_custom_call.1} parent=11 // pred_region
          _
        $region20: #{tpu_custom_call.1} parent=11 // pred_fallthru
          _
        // Predicated region
        $region21: #{tpu_custom_call.1} parent=11 // pred_check
          %p247 = pneg %p124
        $region22: #{tpu_custom_call.1} parent=11 // pred_check_branch
          %249 = sbr.rel (%p247) target = $region24
        $region23: #{tpu_custom_call.1} parent=11 // pred_region
          %251 = vsyncadd [#allocation9], 0
          %s252 = sshll.u32 %s3, 4
          %s253 = int_to_ptr.hbm [resolvable:$true] %s252
          %s254 = sshll.u32 [#allocation10], 4
          %s255 = int_to_ptr.vmem [resolvable:$true] %s254
          %260 = dma.hbm_to_vmem [thread:$0]  %s253, 2048, %s255, [#allocation9], 128, 128, 8
        $region24: #{tpu_custom_call.1} parent=11 // pred_fallthru
          _
        // Predicated region
        $region25: #{tpu_custom_call.1} parent=11 // pred_check
          %p261 = pneg %p145
        $region26: #{tpu_custom_call.1} parent=11 // pred_check_branch
          %263 = sbr.rel (%p261) target = $region28
        $region27: #{tpu_custom_call.1} parent=11 // pred_region
          %265 = vsyncadd [#allocation12], 0
          %s266 = sshll.u32 %s4, 4
          %s267 = int_to_ptr.hbm [resolvable:$true] %s266
          %s268 = sshll.u32 [#allocation11], 4
          %s269 = int_to_ptr.vmem [resolvable:$true] %s268
          %274 = dma.hbm_to_vmem [thread:$0]  %s267, 2048, %s269, [#allocation12], 128, 128, 8
        $region28: #{tpu_custom_call.1} parent=11 // pred_fallthru
          _
        // Predicated region
        $region29: #{tpu_custom_call.1} parent=11 // pred_check
          %p275 = pneg %p166
        $region30: #{tpu_custom_call.1} parent=11 // pred_check_branch
          %277 = sbr.rel (%p275) target = $region32
        $region31: #{tpu_custom_call.1} parent=11 // pred_region
          %279 = vsyncadd [#allocation12], 0
          %s280 = sshll.u32 %s5, 4
          %s281 = int_to_ptr.hbm [resolvable:$true] %s280
          %s282 = sshll.u32 [#allocation13], 4
          %s283 = int_to_ptr.vmem [resolvable:$true] %s282
          %288 = dma.hbm_to_vmem [thread:$0]  %s281, 2048, %s283, [#allocation12], 128, 128, 8
        $region32: #{tpu_custom_call.1} parent=11 // pred_fallthru
          _
        // Predicated region
        $region33: #{tpu_custom_call.1} parent=11 // pred_check
          %p289 = pneg %p187
        $region34: #{tpu_custom_call.1} parent=11 // pred_check_branch
          %291 = sbr.rel (%p289) target = $region36
        $region35: #{tpu_custom_call.1} parent=11 // pred_region
          _
        $region36: #{tpu_custom_call.1} parent=11 // pred_fallthru
          _
      $region12: #{tpu_custom_call.1} parent=5 // pred_fallthru
        _
      %p292 = scmp.lt.s32.totalorder %s21, 4
      // Predicated region
      $region37: #{tpu_custom_call.1} parent=5 // pred_check
        %p293 = pneg %p292
      $region38: #{tpu_custom_call.1} parent=5 // pred_check_branch
        %295 = sbr.rel (%p293) target = $region40
      $region39: #{tpu_custom_call.1} parent=5 // pred_region
        // Predicated region
        $region41: #{tpu_custom_call.1} parent=39 // pred_check
          %p296 = pneg %p55
        $region42: #{tpu_custom_call.1} parent=39 // pred_check_branch
          %298 = sbr.rel (%p296) target = $region44
        $region43: #{tpu_custom_call.1} parent=39 // pred_region
          #allocation16 [shape = 'u32[6]{0}', space=smem, size = 0x18, scoped, tag = 'DMA stride descriptor']
          %s299 = sand.u32 %s45, 1
          %s300 = scalar_lea.sflag [#allocation6], %s299
          %s301 = sand.u32 %s45, 1
          %s302 = smul.addr %s301, 32
          %s303 = scalar_lea.vmem [#allocation5], %s302
          %s304 = smul.u32 2, %s28
          %s305 = smul.u32 2, %s29
          %307 = vsyncadd %s300, 0
          %s308 = smul.addr %s304, 4
          %s309 = sadd.s32 %s305, %s308
          %s310 = smul.addr %s309, 8
          %s311 = scalar_lea.hbm %s0, %s310
          %s313 = sshll.u32 1, 14
          %s314 = sxor.u32 4294967295, %s313
          %s316 = sld [smem:[#allocation0]]
          %s317 = sadd.s32 2, %s316
          %s319 = sshll.u32 7, 26
          %s320 = sxor.u32 4294967295, %s319
          %s321 = sand.u32 0, %s320
          %s322 = sshll.u32 %s317, 26
          %s323 = sor.u32 %s321, %s322
          %s324 = sshll.u32 %s311, 4
          %s325 = int_to_ptr.hbm [resolvable:$true] %s324
          %s326 = sshll.u32 %s303, 4
          %s327 = int_to_ptr.vmem [resolvable:$true] %s326
          %333 = sst [smem:[#allocation16]] 512
          %s334 = scalar_lea.smem [#allocation16], 1
          %335 = sst [smem:[%s334]] 256
          %s336 = scalar_lea.smem [#allocation16], 2
          %337 = sst [smem:[%s336]] 2
          %s338 = scalar_lea.smem [#allocation16], 3
          %339 = sst [smem:[%s338]] 128
          %s340 = scalar_lea.smem [#allocation16], 4
          %341 = sst [smem:[%s340]] 128
          %s342 = scalar_lea.smem [#allocation16], 5
          %343 = sst [smem:[%s342]] 8
          %345 = dma.general %s325, 512, %s327, %s300, [#allocation15], [#allocation16], %s323, 0
        $region44: #{tpu_custom_call.1} parent=39 // pred_fallthru
          _
      $region40: #{tpu_custom_call.1} parent=5 // pred_fallthru
        _
      %p346 = scmp.le.s32.totalorder 1, %s21
      %p347 = scmp.lt.s32.totalorder %s21, 5
      %p348 = pnand %p346, %p347
      %p349 = pneg %p348
      // Predicated region
      $region45: #{tpu_custom_call.1} parent=5 // pred_check
        _
      $region46: #{tpu_custom_call.1} parent=5 // pred_check_branch
        %351 = sbr.rel (%p348) target = $region48
      $region47: #{tpu_custom_call.1} parent=5 // pred_region
        %s352 = ssub.s32 %s21, 1
        %s353 = sand.u32 %s48, 1
        %s354 = scalar_lea.sflag [#allocation6], %s353
        %s355 = sand.u32 %s48, 1
        %s356 = smul.addr %s355, 32
        %s357 = scalar_lea.vmem [#allocation5], %s356
        // Predicated region
        $region49: #{tpu_custom_call.1} parent=47 // pred_check
          %p358 = pneg %p61
        $region50: #{tpu_custom_call.1} parent=47 // pred_check_branch
          %360 = sbr.rel (%p358) target = $region52
        $region51: #{tpu_custom_call.1} parent=47 // pred_region
          %362 = dma.done %s354, 512
        $region52: #{tpu_custom_call.1} parent=47 // pred_fallthru
          _
        // Predicated region
        $region53: #{tpu_custom_call.1} parent=47 // pred_check
          %p363 = pneg %p82
        $region54: #{tpu_custom_call.1} parent=47 // pred_check_branch
          %365 = sbr.rel (%p363) target = $region56
        $region55: #{tpu_custom_call.1} parent=47 // pred_region
          %367 = dma.done [#allocation9], 2048
        $region56: #{tpu_custom_call.1} parent=47 // pred_fallthru
          _
        // Predicated region
        $region57: #{tpu_custom_call.1} parent=47 // pred_check
          %p368 = pneg %p124
        $region58: #{tpu_custom_call.1} parent=47 // pred_check_branch
          %370 = sbr.rel (%p368) target = $region60
        $region59: #{tpu_custom_call.1} parent=47 // pred_region
          %372 = dma.done [#allocation9], 2048
        $region60: #{tpu_custom_call.1} parent=47 // pred_fallthru
          _
        // Predicated region
        $region61: #{tpu_custom_call.1} parent=47 // pred_check
          %p373 = pneg %p145
        $region62: #{tpu_custom_call.1} parent=47 // pred_check_branch
          %375 = sbr.rel (%p373) target = $region64
        $region63: #{tpu_custom_call.1} parent=47 // pred_region
          %377 = dma.done [#allocation12], 2048
        $region64: #{tpu_custom_call.1} parent=47 // pred_fallthru
          _
        // Predicated region
        $region65: #{tpu_custom_call.1} parent=47 // pred_check
          %p378 = pneg %p166
        $region66: #{tpu_custom_call.1} parent=47 // pred_check_branch
          %380 = sbr.rel (%p378) target = $region68
        $region67: #{tpu_custom_call.1} parent=47 // pred_region
          %382 = dma.done [#allocation12], 2048
        $region68: #{tpu_custom_call.1} parent=47 // pred_fallthru
          _
        %s383 = sand.u32 %s48, 1
        %s384 = scalar_lea.sflag [#allocation6], %s383
        %s385 = sand.u32 %s48, 1
        %s386 = smul.addr %s385, 32
        %s387 = scalar_lea.vmem [#allocation5], %s386
        %p388 = pneg %p61
        %p389 = pneg %p58
        %p390 = pneg %p82
        %p391 = pneg %p79
        %p392 = pneg %p103
        %p393 = pneg %p100
        %p394 = pneg %p124
        %p395 = pneg %p121
        %p396 = pneg %p145
        %p397 = pneg %p142
        %p398 = pneg %p166
        %p399 = pneg %p163
        %p400 = pneg %p187
        %p401 = pneg %p184
        %p402 = pneg %p215
        %p403 = pneg %p212
        %s404 = sand.u32 %s202, 1
        %s405 = scalar_lea.sflag [#allocation7], %s404
        %s406 = sand.u32 %s202, 1
        %s407 = smul.addr %s406, 32
        %s408 = scalar_lea.vmem [#allocation14], %s407
        %s409 = smul.u32 2, %s30
        %s410 = smul.u32 2, %s31
        %s411 = smul.u32 2, %s30
        %s412 = smul.u32 2, %s31
        %p413 = scmp.eq.s32.totalorder %s31, 0
        // Predicated region
        $region69: #{tpu_custom_call.1} parent=47 // pred_check
          %p414 = pneg %p413
        $region70: #{tpu_custom_call.1} parent=47 // pred_check_branch
          %416 = sbr.rel (%p414) target = $region72
        $region71: #{tpu_custom_call.1} parent=47 // pred_region
          %417 = vst [vmem:[#allocation3] sm:$0xff] 0.0
          %418 = vst [vmem:[#allocation3 + $0x8] sm:$0xff] 0.0
          %419 = vst [vmem:[#allocation3 + $0x10] sm:$0xff] 0.0
          %420 = vst [vmem:[#allocation3 + $0x18] sm:$0xff] 0.0
          %421 = vst [vmem:[#allocation3 + $0x20] sm:$0xff] 0.0
          %422 = vst [vmem:[#allocation3 + $0x28] sm:$0xff] 0.0
          %423 = vst [vmem:[#allocation3 + $0x30] sm:$0xff] 0.0
          %424 = vst [vmem:[#allocation3 + $0x38] sm:$0xff] 0.0
          %425 = vst [vmem:[#allocation3 + $0x40] sm:$0xff] 0.0
          %426 = vst [vmem:[#allocation3 + $0x48] sm:$0xff] 0.0
          %427 = vst [vmem:[#allocation3 + $0x50] sm:$0xff] 0.0
          %428 = vst [vmem:[#allocation3 + $0x58] sm:$0xff] 0.0
          %429 = vst [vmem:[#allocation3 + $0x60] sm:$0xff] 0.0
          %430 = vst [vmem:[#allocation3 + $0x68] sm:$0xff] 0.0
          %431 = vst [vmem:[#allocation3 + $0x70] sm:$0xff] 0.0
          %432 = vst [vmem:[#allocation3 + $0x78] sm:$0xff] 0.0
          %433 = vst [vmem:[#allocation3 + $0x80] sm:$0xff] 0.0
          %434 = vst [vmem:[#allocation3 + $0x88] sm:$0xff] 0.0
          %435 = vst [vmem:[#allocation3 + $0x90] sm:$0xff] 0.0
          %436 = vst [vmem:[#allocation3 + $0x98] sm:$0xff] 0.0
          %437 = vst [vmem:[#allocation3 + $0xa0] sm:$0xff] 0.0
          %438 = vst [vmem:[#allocation3 + $0xa8] sm:$0xff] 0.0
          %439 = vst [vmem:[#allocation3 + $0xb0] sm:$0xff] 0.0
          %440 = vst [vmem:[#allocation3 + $0xb8] sm:$0xff] 0.0
          %441 = vst [vmem:[#allocation3 + $0xc0] sm:$0xff] 0.0
          %442 = vst [vmem:[#allocation3 + $0xc8] sm:$0xff] 0.0
          %443 = vst [vmem:[#allocation3 + $0xd0] sm:$0xff] 0.0
          %444 = vst [vmem:[#allocation3 + $0xd8] sm:$0xff] 0.0
          %445 = vst [vmem:[#allocation3 + $0xe0] sm:$0xff] 0.0
          %446 = vst [vmem:[#allocation3 + $0xe8] sm:$0xff] 0.0
          %447 = vst [vmem:[#allocation3 + $0xf0] sm:$0xff] 0.0
          %448 = vst [vmem:[#allocation3 + $0xf8] sm:$0xff] 0.0
        $region72: #{tpu_custom_call.1} parent=47 // pred_fallthru
          _
        %v449 = vld [vmem:[%s357] sm:$0xff]
        %v450 = vld [vmem:[%s357 + $0x8] sm:$0xff]
        %v451 = vld [vmem:[%s357 + $0x10] sm:$0xff]
        %v452 = vld [vmem:[%s357 + $0x18] sm:$0xff]
        %v453 = vld [vmem:[#allocation8] sm:$0xff]
        %v454 = vld [vmem:[#allocation8 + $0x8] sm:$0xff]
        %v455 = vld [vmem:[#allocation8 + $0x10] sm:$0xff]
        %v456 = vld [vmem:[#allocation8 + $0x18] sm:$0xff]
        %v457 = vld [vmem:[#allocation8 + $0x20] sm:$0xff]
        %v458 = vld [vmem:[#allocation8 + $0x28] sm:$0xff]
        %v459 = vld [vmem:[#allocation8 + $0x30] sm:$0xff]
        %v460 = vld [vmem:[#allocation8 + $0x38] sm:$0xff]
        %v461 = vld [vmem:[#allocation8 + $0x40] sm:$0xff]
        %v462 = vld [vmem:[#allocation8 + $0x48] sm:$0xff]
        %v463 = vld [vmem:[#allocation8 + $0x50] sm:$0xff]
        %v464 = vld [vmem:[#allocation8 + $0x58] sm:$0xff]
        %v465 = vld [vmem:[#allocation8 + $0x60] sm:$0xff]
        %v466 = vld [vmem:[#allocation8 + $0x68] sm:$0xff]
        %v467 = vld [vmem:[#allocation8 + $0x70] sm:$0xff]
        %v468 = vld [vmem:[#allocation8 + $0x78] sm:$0xff]
        %v469 = vld [vmem:[%s2] sm:$0x1]
        %v471 = vperm.slane %v469, 0
        %473 = vmatpush.msra.mxu0 %v468
        %474 = vmatpush.msra.mxu0 %v467
        %475 = vmatpush.msra.mxu0 %v466
        %476 = vmatpush.msra.mxu0 %v465
        %477 = vmatpush.msra.mxu0 %v464
        %478 = vmatpush.msra.mxu0 %v463
        %479 = vmatpush.msra.mxu0 %v462
        %480 = vmatpush.msra.mxu0 %v461
        %481 = vmatpush.msra.mxu0 %v460
        %482 = vmatpush.msra.mxu0 %v459
        %483 = vmatpush.msra.mxu0 %v458
        %484 = vmatpush.msra.mxu0 %v457
        %485 = vmatpush.msra.mxu0 %v456
        %486 = vmatpush.msra.mxu0 %v455
        %487 = vmatpush.msra.mxu0 %v454
        %488 = vmatpush.msra.mxu0 %v453
        %489 = vmatmul.f32.gmra.mxu0 %v449
        %v490 = vpop.f32.mrf.mxu0
        %v491 = vadd.f32 %v471, %v490
        %492 = vmatmul.f32.gmra.mxu0 %v450
        %v493 = vpop.f32.mrf.mxu0
        %v494 = vadd.f32 %v471, %v493
        %495 = vmatmul.f32.gmra.mxu0 %v451
        %v496 = vpop.f32.mrf.mxu0
        %v497 = vadd.f32 %v471, %v496
        %498 = vmatmul.f32.gmra.mxu0 %v452
        %v499 = vpop.f32.mrf.mxu0
        %v500 = vadd.f32 %v471, %v499
        %501 = vdwg.mxu0
        %v502 = vmax.f32 %v491, 0.0
        %v503 = vmax.f32 %v494, 0.0
        %v504 = vmax.f32 %v497, 0.0
        %v505 = vmax.f32 %v500, 0.0
        %v506 = vand.u32 2147483647, %v491
        %v507 = vand.u32 2147483647, %v494
        %v508 = vand.u32 2147483647, %v497
        %v509 = vand.u32 2147483647, %v500
        %v510 = vsub.f32 0.0, %v506
        %v511 = vsub.f32 0.0, %v507
        %v512 = vsub.f32 0.0, %v508
        %v513 = vsub.f32 0.0, %v509
        %v514 = vmul.f32 %v510, 1.442695
        %v515 = vpow.pop %v514
        %v516 = vmul.f32 %v511, 1.442695
        %v517 = vpow.pop %v516
        %v518 = vmul.f32 %v512, 1.442695
        %v519 = vpow.pop %v518
        %v520 = vmul.f32 %v513, 1.442695
        %v521 = vpow.pop %v520
        %v522 = vadd.f32 %v515, 1.0
        %v523 = vlog2.pop %v522
        %v524 = vmul.f32 %v523, 0.6931472
        %v525 = vmul.f32 -0.5, %v515
        %v526 = vadd.f32 %v525, 1.0
        %v527 = vmul.f32 %v526, %v515
        %v528 = vand.u32 2147483647, %v515
        %vm529 = vcmp.lt.f32.partialorder %v528, 0.0004427343
        %v530 = vsel %vm529, %v527, %v524
        %v531 = vadd.f32 %v517, 1.0
        %v532 = vlog2.pop %v531
        %v533 = vmul.f32 %v532, 0.6931472
        %v534 = vmul.f32 -0.5, %v517
        %v535 = vadd.f32 %v534, 1.0
        %v536 = vmul.f32 %v535, %v517
        %v537 = vand.u32 2147483647, %v517
        %vm538 = vcmp.lt.f32.partialorder %v537, 0.0004427343
        %v539 = vsel %vm538, %v536, %v533
        %v540 = vadd.f32 %v519, 1.0
        %v541 = vlog2.pop %v540
        %v542 = vmul.f32 %v541, 0.6931472
        %v543 = vmul.f32 -0.5, %v519
        %v544 = vadd.f32 %v543, 1.0
        %v545 = vmul.f32 %v544, %v519
        %v546 = vand.u32 2147483647, %v519
        %vm547 = vcmp.lt.f32.partialorder %v546, 0.0004427343
        %v548 = vsel %vm547, %v545, %v542
        %v549 = vadd.f32 %v521, 1.0
        %v550 = vlog2.pop %v549
        %v551 = vmul.f32 %v550, 0.6931472
        %v552 = vmul.f32 -0.5, %v521
        %v553 = vadd.f32 %v552, 1.0
        %v554 = vmul.f32 %v553, %v521
        %v555 = vand.u32 2147483647, %v521
        %vm556 = vcmp.lt.f32.partialorder %v555, 0.0004427343
        %v557 = vsel %vm556, %v554, %v551
        %v558 = vadd.f32 %v502, %v530
        %v559 = vadd.f32 %v503, %v539
        %v560 = vadd.f32 %v504, %v548
        %v561 = vadd.f32 %v505, %v557
        %v562 = vld [vmem:[#allocation10] sm:$0xff]
        %v563 = vld [vmem:[#allocation10 + $0x8] sm:$0xff]
        %v564 = vld [vmem:[#allocation10 + $0x10] sm:$0xff]
        %v565 = vld [vmem:[#allocation10 + $0x18] sm:$0xff]
        %v566 = vld [vmem:[#allocation10 + $0x20] sm:$0xff]
        %v567 = vld [vmem:[#allocation10 + $0x28] sm:$0xff]
        %v568 = vld [vmem:[#allocation10 + $0x30] sm:$0xff]
        %v569 = vld [vmem:[#allocation10 + $0x38] sm:$0xff]
        %v570 = vld [vmem:[#allocation10 + $0x40] sm:$0xff]
        %v571 = vld [vmem:[#allocation10 + $0x48] sm:$0xff]
        %v572 = vld [vmem:[#allocation10 + $0x50] sm:$0xff]
        %v573 = vld [vmem:[#allocation10 + $0x58] sm:$0xff]
        %v574 = vld [vmem:[#allocation10 + $0x60] sm:$0xff]
        %v575 = vld [vmem:[#allocation10 + $0x68] sm:$0xff]
        %v576 = vld [vmem:[#allocation10 + $0x70] sm:$0xff]
        %v577 = vld [vmem:[#allocation10 + $0x78] sm:$0xff]
        %v580 = vrot.slane %v558, 1
        %v581 = vrot.slane %v558, 2
        %v582 = vrot.slane %v558, 3
        %v583 = vrot.slane %v558, 4
        %v584 = vrot.slane %v558, 5
        %v585 = vrot.slane %v558, 6
        %v586 = vrot.slane %v558, 7
        %v587 = vrot.slane %v559, 1
        %v588 = vrot.slane %v559, 2
        %v589 = vrot.slane %v559, 3
        %v590 = vrot.slane %v559, 4
        %v591 = vrot.slane %v559, 5
        %v592 = vrot.slane %v559, 6
        %v593 = vrot.slane %v559, 7
        %v594 = vperm.slane %v558, 0
        %v595 = vperm.slane %v580, 0
        %v596 = vperm.slane %v581, 0
        %v597 = vperm.slane %v582, 0
        %v598 = vperm.slane %v583, 0
        %v599 = vperm.slane %v584, 0
        %v600 = vperm.slane %v585, 0
        %v601 = vperm.slane %v586, 0
        %v602 = vperm.slane %v559, 0
        %v603 = vperm.slane %v587, 0
        %v604 = vperm.slane %v588, 0
        %v605 = vperm.slane %v589, 0
        %v606 = vperm.slane %v590, 0
        %v607 = vperm.slane %v591, 0
        %v608 = vperm.slane %v592, 0
        %v609 = vperm.slane %v593, 0
        %v626 = vmul.f32 %v594, %v562
        %v627 = vmul.f32 %v594, %v563
        %v628 = vmul.f32 %v594, %v564
        %v629 = vmul.f32 %v594, %v565
        %v630 = vmul.f32 %v594, %v566
        %v631 = vmul.f32 %v594, %v567
        %v632 = vmul.f32 %v594, %v568
        %v633 = vmul.f32 %v594, %v569
        %v634 = vmul.f32 %v594, %v570
        %v635 = vmul.f32 %v594, %v571
        %v636 = vmul.f32 %v594, %v572
        %v637 = vmul.f32 %v594, %v573
        %v638 = vmul.f32 %v594, %v574
        %v639 = vmul.f32 %v594, %v575
        %v640 = vmul.f32 %v594, %v576
        %v641 = vmul.f32 %v594, %v577
        %v642 = vmul.f32 %v595, %v562
        %v643 = vmul.f32 %v595, %v563
        %v644 = vmul.f32 %v595, %v564
        %v645 = vmul.f32 %v595, %v565
        %v646 = vmul.f32 %v595, %v566
        %v647 = vmul.f32 %v595, %v567
        %v648 = vmul.f32 %v595, %v568
        %v649 = vmul.f32 %v595, %v569
        %v650 = vmul.f32 %v595, %v570
        %v651 = vmul.f32 %v595, %v571
        %v652 = vmul.f32 %v595, %v572
        %v653 = vmul.f32 %v595, %v573
        %v654 = vmul.f32 %v595, %v574
        %v655 = vmul.f32 %v595, %v575
        %v656 = vmul.f32 %v595, %v576
        %v657 = vmul.f32 %v595, %v577
        %v658 = vmul.f32 %v596, %v562
        %v659 = vmul.f32 %v596, %v563
        %v660 = vmul.f32 %v596, %v564
        %v661 = vmul.f32 %v596, %v565
        %v662 = vmul.f32 %v596, %v566
        %v663 = vmul.f32 %v596, %v567
        %v664 = vmul.f32 %v596, %v568
        %v665 = vmul.f32 %v596, %v569
        %v666 = vmul.f32 %v596, %v570
        %v667 = vmul.f32 %v596, %v571
        %v668 = vmul.f32 %v596, %v572
        %v669 = vmul.f32 %v596, %v573
        %v670 = vmul.f32 %v596, %v574
        %v671 = vmul.f32 %v596, %v575
        %v672 = vmul.f32 %v596, %v576
        %v673 = vmul.f32 %v596, %v577
        %v674 = vmul.f32 %v597, %v562
        %v675 = vmul.f32 %v597, %v563
        %v676 = vmul.f32 %v597, %v564
        %v677 = vmul.f32 %v597, %v565
        %v678 = vmul.f32 %v597, %v566
        %v679 = vmul.f32 %v597, %v567
        %v680 = vmul.f32 %v597, %v568
        %v681 = vmul.f32 %v597, %v569
        %v682 = vmul.f32 %v597, %v570
        %v683 = vmul.f32 %v597, %v571
        %v684 = vmul.f32 %v597, %v572
        %v685 = vmul.f32 %v597, %v573
        %v686 = vmul.f32 %v597, %v574
        %v687 = vmul.f32 %v597, %v575
        %v688 = vmul.f32 %v597, %v576
        %v689 = vmul.f32 %v597, %v577
        %v690 = vmul.f32 %v598, %v562
        %v691 = vmul.f32 %v598, %v563
        %v692 = vmul.f32 %v598, %v564
        %v693 = vmul.f32 %v598, %v565
        %v694 = vmul.f32 %v598, %v566
        %v695 = vmul.f32 %v598, %v567
        %v696 = vmul.f32 %v598, %v568
        %v697 = vmul.f32 %v598, %v569
        %v698 = vmul.f32 %v598, %v570
        %v699 = vmul.f32 %v598, %v571
        %v700 = vmul.f32 %v598, %v572
        %v701 = vmul.f32 %v598, %v573
        %v702 = vmul.f32 %v598, %v574
        %v703 = vmul.f32 %v598, %v575
        %v704 = vmul.f32 %v598, %v576
        %v705 = vmul.f32 %v598, %v577
        %v706 = vmul.f32 %v599, %v562
        %v707 = vmul.f32 %v599, %v563
        %v708 = vmul.f32 %v599, %v564
        %v709 = vmul.f32 %v599, %v565
        %v710 = vmul.f32 %v599, %v566
        %v711 = vmul.f32 %v599, %v567
        %v712 = vmul.f32 %v599, %v568
        %v713 = vmul.f32 %v599, %v569
        %v714 = vmul.f32 %v599, %v570
        %v715 = vmul.f32 %v599, %v571
        %v716 = vmul.f32 %v599, %v572
        %v717 = vmul.f32 %v599, %v573
        %v718 = vmul.f32 %v599, %v574
        %v719 = vmul.f32 %v599, %v575
        %v720 = vmul.f32 %v599, %v576
        %v721 = vmul.f32 %v599, %v577
        %v722 = vmul.f32 %v600, %v562
        %v723 = vmul.f32 %v600, %v563
        %v724 = vmul.f32 %v600, %v564
        %v725 = vmul.f32 %v600, %v565
        %v726 = vmul.f32 %v600, %v566
        %v727 = vmul.f32 %v600, %v567
        %v728 = vmul.f32 %v600, %v568
        %v729 = vmul.f32 %v600, %v569
        %v730 = vmul.f32 %v600, %v570
        %v731 = vmul.f32 %v600, %v571
        %v732 = vmul.f32 %v600, %v572
        %v733 = vmul.f32 %v600, %v573
        %v734 = vmul.f32 %v600, %v574
        %v735 = vmul.f32 %v600, %v575
        %v736 = vmul.f32 %v600, %v576
        %v737 = vmul.f32 %v600, %v577
        %v738 = vmul.f32 %v601, %v562
        %v739 = vmul.f32 %v601, %v563
        %v740 = vmul.f32 %v601, %v564
        %v741 = vmul.f32 %v601, %v565
        %v742 = vmul.f32 %v601, %v566
        %v743 = vmul.f32 %v601, %v567
        %v744 = vmul.f32 %v601, %v568
        %v745 = vmul.f32 %v601, %v569
        %v746 = vmul.f32 %v601, %v570
        %v747 = vmul.f32 %v601, %v571
        %v748 = vmul.f32 %v601, %v572
        %v749 = vmul.f32 %v601, %v573
        %v750 = vmul.f32 %v601, %v574
        %v751 = vmul.f32 %v601, %v575
        %v752 = vmul.f32 %v601, %v576
        %v753 = vmul.f32 %v601, %v577
        %v754 = vmul.f32 %v602, %v562
        %v755 = vmul.f32 %v602, %v563
        %v756 = vmul.f32 %v602, %v564
        %v757 = vmul.f32 %v602, %v565
        %v758 = vmul.f32 %v602, %v566
        %v759 = vmul.f32 %v602, %v567
        %v760 = vmul.f32 %v602, %v568
        %v761 = vmul.f32 %v602, %v569
        %v762 = vmul.f32 %v602, %v570
        %v763 = vmul.f32 %v602, %v571
        %v764 = vmul.f32 %v602, %v572
        %v765 = vmul.f32 %v602, %v573
        %v766 = vmul.f32 %v602, %v574
        %v767 = vmul.f32 %v602, %v575
        %v768 = vmul.f32 %v602, %v576
        %v769 = vmul.f32 %v602, %v577
        %v770 = vmul.f32 %v603, %v562
        %v771 = vmul.f32 %v603, %v563
        %v772 = vmul.f32 %v603, %v564
        %v773 = vmul.f32 %v603, %v565
        %v774 = vmul.f32 %v603, %v566
        %v775 = vmul.f32 %v603, %v567
        %v776 = vmul.f32 %v603, %v568
        %v777 = vmul.f32 %v603, %v569
        %v778 = vmul.f32 %v603, %v570
        %v779 = vmul.f32 %v603, %v571
        %v780 = vmul.f32 %v603, %v572
        %v781 = vmul.f32 %v603, %v573
        %v782 = vmul.f32 %v603, %v574
        %v783 = vmul.f32 %v603, %v575
        %v784 = vmul.f32 %v603, %v576
        %v785 = vmul.f32 %v603, %v577
        %v786 = vmul.f32 %v604, %v562
        %v787 = vmul.f32 %v604, %v563
        %v788 = vmul.f32 %v604, %v564
        %v789 = vmul.f32 %v604, %v565
        %v790 = vmul.f32 %v604, %v566
        %v791 = vmul.f32 %v604, %v567
        %v792 = vmul.f32 %v604, %v568
        %v793 = vmul.f32 %v604, %v569
        %v794 = vmul.f32 %v604, %v570
        %v795 = vmul.f32 %v604, %v571
        %v796 = vmul.f32 %v604, %v572
        %v797 = vmul.f32 %v604, %v573
        %v798 = vmul.f32 %v604, %v574
        %v799 = vmul.f32 %v604, %v575
        %v800 = vmul.f32 %v604, %v576
        %v801 = vmul.f32 %v604, %v577
        %v802 = vmul.f32 %v605, %v562
        %v803 = vmul.f32 %v605, %v563
        %v804 = vmul.f32 %v605, %v564
        %v805 = vmul.f32 %v605, %v565
        %v806 = vmul.f32 %v605, %v566
        %v807 = vmul.f32 %v605, %v567
        %v808 = vmul.f32 %v605, %v568
        %v809 = vmul.f32 %v605, %v569
        %v810 = vmul.f32 %v605, %v570
        %v811 = vmul.f32 %v605, %v571
        %v812 = vmul.f32 %v605, %v572
        %v813 = vmul.f32 %v605, %v573
        %v814 = vmul.f32 %v605, %v574
        %v815 = vmul.f32 %v605, %v575
        %v816 = vmul.f32 %v605, %v576
        %v817 = vmul.f32 %v605, %v577
        %v818 = vmul.f32 %v606, %v562
        %v819 = vmul.f32 %v606, %v563
        %v820 = vmul.f32 %v606, %v564
        %v821 = vmul.f32 %v606, %v565
        %v822 = vmul.f32 %v606, %v566
        %v823 = vmul.f32 %v606, %v567
        %v824 = vmul.f32 %v606, %v568
        %v825 = vmul.f32 %v606, %v569
        %v826 = vmul.f32 %v606, %v570
        %v827 = vmul.f32 %v606, %v571
        %v828 = vmul.f32 %v606, %v572
        %v829 = vmul.f32 %v606, %v573
        %v830 = vmul.f32 %v606, %v574
        %v831 = vmul.f32 %v606, %v575
        %v832 = vmul.f32 %v606, %v576
        %v833 = vmul.f32 %v606, %v577
        %v834 = vmul.f32 %v607, %v562
        %v835 = vmul.f32 %v607, %v563
        %v836 = vmul.f32 %v607, %v564
        %v837 = vmul.f32 %v607, %v565
        %v838 = vmul.f32 %v607, %v566
        %v839 = vmul.f32 %v607, %v567
        %v840 = vmul.f32 %v607, %v568
        %v841 = vmul.f32 %v607, %v569
        %v842 = vmul.f32 %v607, %v570
        %v843 = vmul.f32 %v607, %v571
        %v844 = vmul.f32 %v607, %v572
        %v845 = vmul.f32 %v607, %v573
        %v846 = vmul.f32 %v607, %v574
        %v847 = vmul.f32 %v607, %v575
        %v848 = vmul.f32 %v607, %v576
        %v849 = vmul.f32 %v607, %v577
        %v850 = vmul.f32 %v608, %v562
        %v851 = vmul.f32 %v608, %v563
        %v852 = vmul.f32 %v608, %v564
        %v853 = vmul.f32 %v608, %v565
        %v854 = vmul.f32 %v608, %v566
        %v855 = vmul.f32 %v608, %v567
        %v856 = vmul.f32 %v608, %v568
        %v857 = vmul.f32 %v608, %v569
        %v858 = vmul.f32 %v608, %v570
        %v859 = vmul.f32 %v608, %v571
        %v860 = vmul.f32 %v608, %v572
        %v861 = vmul.f32 %v608, %v573
        %v862 = vmul.f32 %v608, %v574
        %v863 = vmul.f32 %v608, %v575
        %v864 = vmul.f32 %v608, %v576
        %v865 = vmul.f32 %v608, %v577
        %v866 = vmul.f32 %v609, %v562
        %v867 = vmul.f32 %v609, %v563
        %v868 = vmul.f32 %v609, %v564
        %v869 = vmul.f32 %v609, %v565
        %v870 = vmul.f32 %v609, %v566
        %v871 = vmul.f32 %v609, %v567
        %v872 = vmul.f32 %v609, %v568
        %v873 = vmul.f32 %v609, %v569
        %v874 = vmul.f32 %v609, %v570
        %v875 = vmul.f32 %v609, %v571
        %v876 = vmul.f32 %v609, %v572
        %v877 = vmul.f32 %v609, %v573
        %v878 = vmul.f32 %v609, %v574
        %v879 = vmul.f32 %v609, %v575
        %v880 = vmul.f32 %v609, %v576
        %v881 = vmul.f32 %v609, %v577
        %v882 = vmul.f32 %v626, 1.442695
        %v883 = vpow.pop %v882
        %v884 = vmul.f32 %v627, 1.442695
        %v885 = vpow.pop %v884
        %v886 = vmul.f32 %v628, 1.442695
        %v887 = vpow.pop %v886
        %v888 = vmul.f32 %v629, 1.442695
        %v889 = vpow.pop %v888
        %v890 = vmul.f32 %v630, 1.442695
        %v891 = vpow.pop %v890
        %v892 = vmul.f32 %v631, 1.442695
        %v893 = vpow.pop %v892
        %v894 = vmul.f32 %v632, 1.442695
        %v895 = vpow.pop %v894
        %v896 = vmul.f32 %v633, 1.442695
        %v897 = vpow.pop %v896
        %v898 = vmul.f32 %v634, 1.442695
        %v899 = vpow.pop %v898
        %v900 = vmul.f32 %v635, 1.442695
        %v901 = vpow.pop %v900
        %v902 = vmul.f32 %v636, 1.442695
        %v903 = vpow.pop %v902
        %v904 = vmul.f32 %v637, 1.442695
        %v905 = vpow.pop %v904
        %v906 = vmul.f32 %v638, 1.442695
        %v907 = vpow.pop %v906
        %v908 = vmul.f32 %v639, 1.442695
        %v909 = vpow.pop %v908
        %v910 = vmul.f32 %v640, 1.442695
        %v911 = vpow.pop %v910
        %v912 = vmul.f32 %v641, 1.442695
        %v913 = vpow.pop %v912
        %v914 = vmul.f32 %v642, 1.442695
        %v915 = vpow.pop %v914
        %v916 = vmul.f32 %v643, 1.442695
        %v917 = vpow.pop %v916
        %v918 = vmul.f32 %v644, 1.442695
        %v919 = vpow.pop %v918
        %v920 = vmul.f32 %v645, 1.442695
        %v921 = vpow.pop %v920
        %v922 = vmul.f32 %v646, 1.442695
        %v923 = vpow.pop %v922
        %v924 = vmul.f32 %v647, 1.442695
        %v925 = vpow.pop %v924
        %v926 = vmul.f32 %v648, 1.442695
        %v927 = vpow.pop %v926
        %v928 = vmul.f32 %v649, 1.442695
        %v929 = vpow.pop %v928
        %v930 = vmul.f32 %v650, 1.442695
        %v931 = vpow.pop %v930
        %v932 = vmul.f32 %v651, 1.442695
        %v933 = vpow.pop %v932
        %v934 = vmul.f32 %v652, 1.442695
        %v935 = vpow.pop %v934
        %v936 = vmul.f32 %v653, 1.442695
        %v937 = vpow.pop %v936
        %v938 = vmul.f32 %v654, 1.442695
        %v939 = vpow.pop %v938
        %v940 = vmul.f32 %v655, 1.442695
        %v941 = vpow.pop %v940
        %v942 = vmul.f32 %v656, 1.442695
        %v943 = vpow.pop %v942
        %v944 = vmul.f32 %v657, 1.442695
        %v945 = vpow.pop %v944
        %v946 = vmul.f32 %v658, 1.442695
        %v947 = vpow.pop %v946
        %v948 = vmul.f32 %v659, 1.442695
        %v949 = vpow.pop %v948
        %v950 = vmul.f32 %v660, 1.442695
        %v951 = vpow.pop %v950
        %v952 = vmul.f32 %v661, 1.442695
        %v953 = vpow.pop %v952
        %v954 = vmul.f32 %v662, 1.442695
        %v955 = vpow.pop %v954
        %v956 = vmul.f32 %v663, 1.442695
        %v957 = vpow.pop %v956
        %v958 = vmul.f32 %v664, 1.442695
        %v959 = vpow.pop %v958
        %v960 = vmul.f32 %v665, 1.442695
        %v961 = vpow.pop %v960
        %v962 = vmul.f32 %v666, 1.442695
        %v963 = vpow.pop %v962
        %v964 = vmul.f32 %v667, 1.442695
        %v965 = vpow.pop %v964
        %v966 = vmul.f32 %v668, 1.442695
        %v967 = vpow.pop %v966
        %v968 = vmul.f32 %v669, 1.442695
        %v969 = vpow.pop %v968
        %v970 = vmul.f32 %v670, 1.442695
        %v971 = vpow.pop %v970
        %v972 = vmul.f32 %v671, 1.442695
        %v973 = vpow.pop %v972
        %v974 = vmul.f32 %v672, 1.442695
        %v975 = vpow.pop %v974
        %v976 = vmul.f32 %v673, 1.442695
        %v977 = vpow.pop %v976
        %v978 = vmul.f32 %v674, 1.442695
        %v979 = vpow.pop %v978
        %v980 = vmul.f32 %v675, 1.442695
        %v981 = vpow.pop %v980
        %v982 = vmul.f32 %v676, 1.442695
        %v983 = vpow.pop %v982
        %v984 = vmul.f32 %v677, 1.442695
        %v985 = vpow.pop %v984
        %v986 = vmul.f32 %v678, 1.442695
        %v987 = vpow.pop %v986
        %v988 = vmul.f32 %v679, 1.442695
        %v989 = vpow.pop %v988
        %v990 = vmul.f32 %v680, 1.442695
        %v991 = vpow.pop %v990
        %v992 = vmul.f32 %v681, 1.442695
        %v993 = vpow.pop %v992
        %v994 = vmul.f32 %v682, 1.442695
        %v995 = vpow.pop %v994
        %v996 = vmul.f32 %v683, 1.442695
        %v997 = vpow.pop %v996
        %v998 = vmul.f32 %v684, 1.442695
        %v999 = vpow.pop %v998
        %v1000 = vmul.f32 %v685, 1.442695
        %v1001 = vpow.pop %v1000
        %v1002 = vmul.f32 %v686, 1.442695
        %v1003 = vpow.pop %v1002
        %v1004 = vmul.f32 %v687, 1.442695
        %v1005 = vpow.pop %v1004
        %v1006 = vmul.f32 %v688, 1.442695
        %v1007 = vpow.pop %v1006
        %v1008 = vmul.f32 %v689, 1.442695
        %v1009 = vpow.pop %v1008
        %v1010 = vmul.f32 %v690, 1.442695
        %v1011 = vpow.pop %v1010
        %v1012 = vmul.f32 %v691, 1.442695
        %v1013 = vpow.pop %v1012
        %v1014 = vmul.f32 %v692, 1.442695
        %v1015 = vpow.pop %v1014
        %v1016 = vmul.f32 %v693, 1.442695
        %v1017 = vpow.pop %v1016
        %v1018 = vmul.f32 %v694, 1.442695
        %v1019 = vpow.pop %v1018
        %v1020 = vmul.f32 %v695, 1.442695
        %v1021 = vpow.pop %v1020
        %v1022 = vmul.f32 %v696, 1.442695
        %v1023 = vpow.pop %v1022
        %v1024 = vmul.f32 %v697, 1.442695
        %v1025 = vpow.pop %v1024
        %v1026 = vmul.f32 %v698, 1.442695
        %v1027 = vpow.pop %v1026
        %v1028 = vmul.f32 %v699, 1.442695
        %v1029 = vpow.pop %v1028
        %v1030 = vmul.f32 %v700, 1.442695
        %v1031 = vpow.pop %v1030
        %v1032 = vmul.f32 %v701, 1.442695
        %v1033 = vpow.pop %v1032
        %v1034 = vmul.f32 %v702, 1.442695
        %v1035 = vpow.pop %v1034
        %v1036 = vmul.f32 %v703, 1.442695
        %v1037 = vpow.pop %v1036
        %v1038 = vmul.f32 %v704, 1.442695
        %v1039 = vpow.pop %v1038
        %v1040 = vmul.f32 %v705, 1.442695
        %v1041 = vpow.pop %v1040
        %v1042 = vmul.f32 %v706, 1.442695
        %v1043 = vpow.pop %v1042
        %v1044 = vmul.f32 %v707, 1.442695
        %v1045 = vpow.pop %v1044
        %v1046 = vmul.f32 %v708, 1.442695
        %v1047 = vpow.pop %v1046
        %v1048 = vmul.f32 %v709, 1.442695
        %v1049 = vpow.pop %v1048
        %v1050 = vmul.f32 %v710, 1.442695
        %v1051 = vpow.pop %v1050
        %v1052 = vmul.f32 %v711, 1.442695
        %v1053 = vpow.pop %v1052
        %v1054 = vmul.f32 %v712, 1.442695
        %v1055 = vpow.pop %v1054
        %v1056 = vmul.f32 %v713, 1.442695
        %v1057 = vpow.pop %v1056
        %v1058 = vmul.f32 %v714, 1.442695
        %v1059 = vpow.pop %v1058
        %v1060 = vmul.f32 %v715, 1.442695
        %v1061 = vpow.pop %v1060
        %v1062 = vmul.f32 %v716, 1.442695
        %v1063 = vpow.pop %v1062
        %v1064 = vmul.f32 %v717, 1.442695
        %v1065 = vpow.pop %v1064
        %v1066 = vmul.f32 %v718, 1.442695
        %v1067 = vpow.pop %v1066
        %v1068 = vmul.f32 %v719, 1.442695
        %v1069 = vpow.pop %v1068
        %v1070 = vmul.f32 %v720, 1.442695
        %v1071 = vpow.pop %v1070
        %v1072 = vmul.f32 %v721, 1.442695
        %v1073 = vpow.pop %v1072
        %v1074 = vmul.f32 %v722, 1.442695
        %v1075 = vpow.pop %v1074
        %v1076 = vmul.f32 %v723, 1.442695
        %v1077 = vpow.pop %v1076
        %v1078 = vmul.f32 %v724, 1.442695
        %v1079 = vpow.pop %v1078
        %v1080 = vmul.f32 %v725, 1.442695
        %v1081 = vpow.pop %v1080
        %v1082 = vmul.f32 %v726, 1.442695
        %v1083 = vpow.pop %v1082
        %v1084 = vmul.f32 %v727, 1.442695
        %v1085 = vpow.pop %v1084
        %v1086 = vmul.f32 %v728, 1.442695
        %v1087 = vpow.pop %v1086
        %v1088 = vmul.f32 %v729, 1.442695
        %v1089 = vpow.pop %v1088
        %v1090 = vmul.f32 %v730, 1.442695
        %v1091 = vpow.pop %v1090
        %v1092 = vmul.f32 %v731, 1.442695
        %v1093 = vpow.pop %v1092
        %v1094 = vmul.f32 %v732, 1.442695
        %v1095 = vpow.pop %v1094
        %v1096 = vmul.f32 %v733, 1.442695
        %v1097 = vpow.pop %v1096
        %v1098 = vmul.f32 %v734, 1.442695
        %v1099 = vpow.pop %v1098
        %v1100 = vmul.f32 %v735, 1.442695
        %v1101 = vpow.pop %v1100
        %v1102 = vmul.f32 %v736, 1.442695
        %v1103 = vpow.pop %v1102
        %v1104 = vmul.f32 %v737, 1.442695
        %v1105 = vpow.pop %v1104
        %v1106 = vmul.f32 %v738, 1.442695
        %v1107 = vpow.pop %v1106
        %v1108 = vmul.f32 %v739, 1.442695
        %v1109 = vpow.pop %v1108
        %v1110 = vmul.f32 %v740, 1.442695
        %v1111 = vpow.pop %v1110
        %v1112 = vmul.f32 %v741, 1.442695
        %v1113 = vpow.pop %v1112
        %v1114 = vmul.f32 %v742, 1.442695
        %v1115 = vpow.pop %v1114
        %v1116 = vmul.f32 %v743, 1.442695
        %v1117 = vpow.pop %v1116
        %v1118 = vmul.f32 %v744, 1.442695
        %v1119 = vpow.pop %v1118
        %v1120 = vmul.f32 %v745, 1.442695
        %v1121 = vpow.pop %v1120
        %v1122 = vmul.f32 %v746, 1.442695
        %v1123 = vpow.pop %v1122
        %v1124 = vmul.f32 %v747, 1.442695
        %v1125 = vpow.pop %v1124
        %v1126 = vmul.f32 %v748, 1.442695
        %v1127 = vpow.pop %v1126
        %v1128 = vmul.f32 %v749, 1.442695
        %v1129 = vpow.pop %v1128
        %v1130 = vmul.f32 %v750, 1.442695
        %v1131 = vpow.pop %v1130
        %v1132 = vmul.f32 %v751, 1.442695
        %v1133 = vpow.pop %v1132
        %v1134 = vmul.f32 %v752, 1.442695
        %v1135 = vpow.pop %v1134
        %v1136 = vmul.f32 %v753, 1.442695
        %v1137 = vpow.pop %v1136
        %v1138 = vmul.f32 %v754, 1.442695
        %v1139 = vpow.pop %v1138
        %v1140 = vmul.f32 %v755, 1.442695
        %v1141 = vpow.pop %v1140
        %v1142 = vmul.f32 %v756, 1.442695
        %v1143 = vpow.pop %v1142
        %v1144 = vmul.f32 %v757, 1.442695
        %v1145 = vpow.pop %v1144
        %v1146 = vmul.f32 %v758, 1.442695
        %v1147 = vpow.pop %v1146
        %v1148 = vmul.f32 %v759, 1.442695
        %v1149 = vpow.pop %v1148
        %v1150 = vmul.f32 %v760, 1.442695
        %v1151 = vpow.pop %v1150
        %v1152 = vmul.f32 %v761, 1.442695
        %v1153 = vpow.pop %v1152
        %v1154 = vmul.f32 %v762, 1.442695
        %v1155 = vpow.pop %v1154
        %v1156 = vmul.f32 %v763, 1.442695
        %v1157 = vpow.pop %v1156
        %v1158 = vmul.f32 %v764, 1.442695
        %v1159 = vpow.pop %v1158
        %v1160 = vmul.f32 %v765, 1.442695
        %v1161 = vpow.pop %v1160
        %v1162 = vmul.f32 %v766, 1.442695
        %v1163 = vpow.pop %v1162
        %v1164 = vmul.f32 %v767, 1.442695
        %v1165 = vpow.pop %v1164
        %v1166 = vmul.f32 %v768, 1.442695
        %v1167 = vpow.pop %v1166
        %v1168 = vmul.f32 %v769, 1.442695
        %v1169 = vpow.pop %v1168
        %v1170 = vmul.f32 %v770, 1.442695
        %v1171 = vpow.pop %v1170
        %v1172 = vmul.f32 %v771, 1.442695
        %v1173 = vpow.pop %v1172
        %v1174 = vmul.f32 %v772, 1.442695
        %v1175 = vpow.pop %v1174
        %v1176 = vmul.f32 %v773, 1.442695
        %v1177 = vpow.pop %v1176
        %v1178 = vmul.f32 %v774, 1.442695
        %v1179 = vpow.pop %v1178
        %v1180 = vmul.f32 %v775, 1.442695
        %v1181 = vpow.pop %v1180
        %v1182 = vmul.f32 %v776, 1.442695
        %v1183 = vpow.pop %v1182
        %v1184 = vmul.f32 %v777, 1.442695
        %v1185 = vpow.pop %v1184
        %v1186 = vmul.f32 %v778, 1.442695
        %v1187 = vpow.pop %v1186
        %v1188 = vmul.f32 %v779, 1.442695
        %v1189 = vpow.pop %v1188
        %v1190 = vmul.f32 %v780, 1.442695
        %v1191 = vpow.pop %v1190
        %v1192 = vmul.f32 %v781, 1.442695
        %v1193 = vpow.pop %v1192
        %v1194 = vmul.f32 %v782, 1.442695
        %v1195 = vpow.pop %v1194
        %v1196 = vmul.f32 %v783, 1.442695
        %v1197 = vpow.pop %v1196
        %v1198 = vmul.f32 %v784, 1.442695
        %v1199 = vpow.pop %v1198
        %v1200 = vmul.f32 %v785, 1.442695
        %v1201 = vpow.pop %v1200
        %v1202 = vmul.f32 %v786, 1.442695
        %v1203 = vpow.pop %v1202
        %v1204 = vmul.f32 %v787, 1.442695
        %v1205 = vpow.pop %v1204
        %v1206 = vmul.f32 %v788, 1.442695
        %v1207 = vpow.pop %v1206
        %v1208 = vmul.f32 %v789, 1.442695
        %v1209 = vpow.pop %v1208
        %v1210 = vmul.f32 %v790, 1.442695
        %v1211 = vpow.pop %v1210
        %v1212 = vmul.f32 %v791, 1.442695
        %v1213 = vpow.pop %v1212
        %v1214 = vmul.f32 %v792, 1.442695
        %v1215 = vpow.pop %v1214
        %v1216 = vmul.f32 %v793, 1.442695
        %v1217 = vpow.pop %v1216
        %v1218 = vmul.f32 %v794, 1.442695
        %v1219 = vpow.pop %v1218
        %v1220 = vmul.f32 %v795, 1.442695
        %v1221 = vpow.pop %v1220
        %v1222 = vmul.f32 %v796, 1.442695
        %v1223 = vpow.pop %v1222
        %v1224 = vmul.f32 %v797, 1.442695
        %v1225 = vpow.pop %v1224
        %v1226 = vmul.f32 %v798, 1.442695
        %v1227 = vpow.pop %v1226
        %v1228 = vmul.f32 %v799, 1.442695
        %v1229 = vpow.pop %v1228
        %v1230 = vmul.f32 %v800, 1.442695
        %v1231 = vpow.pop %v1230
        %v1232 = vmul.f32 %v801, 1.442695
        %v1233 = vpow.pop %v1232
        %v1234 = vmul.f32 %v802, 1.442695
        %v1235 = vpow.pop %v1234
        %v1236 = vmul.f32 %v803, 1.442695
        %v1237 = vpow.pop %v1236
        %v1238 = vmul.f32 %v804, 1.442695
        %v1239 = vpow.pop %v1238
        %v1240 = vmul.f32 %v805, 1.442695
        %v1241 = vpow.pop %v1240
        %v1242 = vmul.f32 %v806, 1.442695
        %v1243 = vpow.pop %v1242
        %v1244 = vmul.f32 %v807, 1.442695
        %v1245 = vpow.pop %v1244
        %v1246 = vmul.f32 %v808, 1.442695
        %v1247 = vpow.pop %v1246
        %v1248 = vmul.f32 %v809, 1.442695
        %v1249 = vpow.pop %v1248
        %v1250 = vmul.f32 %v810, 1.442695
        %v1251 = vpow.pop %v1250
        %v1252 = vmul.f32 %v811, 1.442695
        %v1253 = vpow.pop %v1252
        %v1254 = vmul.f32 %v812, 1.442695
        %v1255 = vpow.pop %v1254
        %v1256 = vmul.f32 %v813, 1.442695
        %v1257 = vpow.pop %v1256
        %v1258 = vmul.f32 %v814, 1.442695
        %v1259 = vpow.pop %v1258
        %v1260 = vmul.f32 %v815, 1.442695
        %v1261 = vpow.pop %v1260
        %v1262 = vmul.f32 %v816, 1.442695
        %v1263 = vpow.pop %v1262
        %v1264 = vmul.f32 %v817, 1.442695
        %v1265 = vpow.pop %v1264
        %v1266 = vmul.f32 %v818, 1.442695
        %v1267 = vpow.pop %v1266
        %v1268 = vmul.f32 %v819, 1.442695
        %v1269 = vpow.pop %v1268
        %v1270 = vmul.f32 %v820, 1.442695
        %v1271 = vpow.pop %v1270
        %v1272 = vmul.f32 %v821, 1.442695
        %v1273 = vpow.pop %v1272
        %v1274 = vmul.f32 %v822, 1.442695
        %v1275 = vpow.pop %v1274
        %v1276 = vmul.f32 %v823, 1.442695
        %v1277 = vpow.pop %v1276
        %v1278 = vmul.f32 %v824, 1.442695
        %v1279 = vpow.pop %v1278
        %v1280 = vmul.f32 %v825, 1.442695
        %v1281 = vpow.pop %v1280
        %v1282 = vmul.f32 %v826, 1.442695
        %v1283 = vpow.pop %v1282
        %v1284 = vmul.f32 %v827, 1.442695
        %v1285 = vpow.pop %v1284
        %v1286 = vmul.f32 %v828, 1.442695
        %v1287 = vpow.pop %v1286
        %v1288 = vmul.f32 %v829, 1.442695
        %v1289 = vpow.pop %v1288
        %v1290 = vmul.f32 %v830, 1.442695
        %v1291 = vpow.pop %v1290
        %v1292 = vmul.f32 %v831, 1.442695
        %v1293 = vpow.pop %v1292
        %v1294 = vmul.f32 %v832, 1.442695
        %v1295 = vpow.pop %v1294
        %v1296 = vmul.f32 %v833, 1.442695
        %v1297 = vpow.pop %v1296
        %v1298 = vmul.f32 %v834, 1.442695
        %v1299 = vpow.pop %v1298
        %v1300 = vmul.f32 %v835, 1.442695
        %v1301 = vpow.pop %v1300
        %v1302 = vmul.f32 %v836, 1.442695
        %v1303 = vpow.pop %v1302
        %v1304 = vmul.f32 %v837, 1.442695
        %v1305 = vpow.pop %v1304
        %v1306 = vmul.f32 %v838, 1.442695
        %v1307 = vpow.pop %v1306
        %v1308 = vmul.f32 %v839, 1.442695
        %v1309 = vpow.pop %v1308
        %v1310 = vmul.f32 %v840, 1.442695
        %v1311 = vpow.pop %v1310
        %v1312 = vmul.f32 %v841, 1.442695
        %v1313 = vpow.pop %v1312
        %v1314 = vmul.f32 %v842, 1.442695
        %v1315 = vpow.pop %v1314
        %v1316 = vmul.f32 %v843, 1.442695
        %v1317 = vpow.pop %v1316
        %v1318 = vmul.f32 %v844, 1.442695
        %v1319 = vpow.pop %v1318
        %v1320 = vmul.f32 %v845, 1.442695
        %v1321 = vpow.pop %v1320
        %v1322 = vmul.f32 %v846, 1.442695
        %v1323 = vpow.pop %v1322
        %v1324 = vmul.f32 %v847, 1.442695
        %v1325 = vpow.pop %v1324
        %v1326 = vmul.f32 %v848, 1.442695
        %v1327 = vpow.pop %v1326
        %v1328 = vmul.f32 %v849, 1.442695
        %v1329 = vpow.pop %v1328
        %v1330 = vmul.f32 %v850, 1.442695
        %v1331 = vpow.pop %v1330
        %v1332 = vmul.f32 %v851, 1.442695
        %v1333 = vpow.pop %v1332
        %v1334 = vmul.f32 %v852, 1.442695
        %v1335 = vpow.pop %v1334
        %v1336 = vmul.f32 %v853, 1.442695
        %v1337 = vpow.pop %v1336
        %v1338 = vmul.f32 %v854, 1.442695
        %v1339 = vpow.pop %v1338
        %v1340 = vmul.f32 %v855, 1.442695
        %v1341 = vpow.pop %v1340
        %v1342 = vmul.f32 %v856, 1.442695
        %v1343 = vpow.pop %v1342
        %v1344 = vmul.f32 %v857, 1.442695
        %v1345 = vpow.pop %v1344
        %v1346 = vmul.f32 %v858, 1.442695
        %v1347 = vpow.pop %v1346
        %v1348 = vmul.f32 %v859, 1.442695
        %v1349 = vpow.pop %v1348
        %v1350 = vmul.f32 %v860, 1.442695
        %v1351 = vpow.pop %v1350
        %v1352 = vmul.f32 %v861, 1.442695
        %v1353 = vpow.pop %v1352
        %v1354 = vmul.f32 %v862, 1.442695
        %v1355 = vpow.pop %v1354
        %v1356 = vmul.f32 %v863, 1.442695
        %v1357 = vpow.pop %v1356
        %v1358 = vmul.f32 %v864, 1.442695
        %v1359 = vpow.pop %v1358
        %v1360 = vmul.f32 %v865, 1.442695
        %v1361 = vpow.pop %v1360
        %v1362 = vmul.f32 %v866, 1.442695
        %v1363 = vpow.pop %v1362
        %v1364 = vmul.f32 %v867, 1.442695
        %v1365 = vpow.pop %v1364
        %v1366 = vmul.f32 %v868, 1.442695
        %v1367 = vpow.pop %v1366
        %v1368 = vmul.f32 %v869, 1.442695
        %v1369 = vpow.pop %v1368
        %v1370 = vmul.f32 %v870, 1.442695
        %v1371 = vpow.pop %v1370
        %v1372 = vmul.f32 %v871, 1.442695
        %v1373 = vpow.pop %v1372
        %v1374 = vmul.f32 %v872, 1.442695
        %v1375 = vpow.pop %v1374
        %v1376 = vmul.f32 %v873, 1.442695
        %v1377 = vpow.pop %v1376
        %v1378 = vmul.f32 %v874, 1.442695
        %v1379 = vpow.pop %v1378
        %v1380 = vmul.f32 %v875, 1.442695
        %v1381 = vpow.pop %v1380
        %v1382 = vmul.f32 %v876, 1.442695
        %v1383 = vpow.pop %v1382
        %v1384 = vmul.f32 %v877, 1.442695
        %v1385 = vpow.pop %v1384
        %v1386 = vmul.f32 %v878, 1.442695
        %v1387 = vpow.pop %v1386
        %v1388 = vmul.f32 %v879, 1.442695
        %v1389 = vpow.pop %v1388
        %v1390 = vmul.f32 %v880, 1.442695
        %v1391 = vpow.pop %v1390
        %v1392 = vmul.f32 %v881, 1.442695
        %v1393 = vpow.pop %v1392
        %1394 = vst [vmem:[#allocation2] sm:$0xff] %v883
        %1395 = vst [vmem:[#allocation2 + $0x8] sm:$0xff] %v885
        %1396 = vst [vmem:[#allocation2 + $0x10] sm:$0xff] %v887
        %1397 = vst [vmem:[#allocation2 + $0x18] sm:$0xff] %v889
        %1398 = vst [vmem:[#allocation2 + $0x20] sm:$0xff] %v891
        %1399 = vst [vmem:[#allocation2 + $0x28] sm:$0xff] %v893
        %1400 = vst [vmem:[#allocation2 + $0x30] sm:$0xff] %v895
        %1401 = vst [vmem:[#allocation2 + $0x38] sm:$0xff] %v897
        %1402 = vst [vmem:[#allocation2 + $0x40] sm:$0xff] %v899
        %1403 = vst [vmem:[#allocation2 + $0x48] sm:$0xff] %v901
        %1404 = vst [vmem:[#allocation2 + $0x50] sm:$0xff] %v903
        %1405 = vst [vmem:[#allocation2 + $0x58] sm:$0xff] %v905
        %1406 = vst [vmem:[#allocation2 + $0x60] sm:$0xff] %v907
        %1407 = vst [vmem:[#allocation2 + $0x68] sm:$0xff] %v909
        %1408 = vst [vmem:[#allocation2 + $0x70] sm:$0xff] %v911
        %1409 = vst [vmem:[#allocation2 + $0x78] sm:$0xff] %v913
        %1410 = vst [vmem:[#allocation2 + $0x80] sm:$0xff] %v915
        %1411 = vst [vmem:[#allocation2 + $0x88] sm:$0xff] %v917
        %1412 = vst [vmem:[#allocation2 + $0x90] sm:$0xff] %v919
        %1413 = vst [vmem:[#allocation2 + $0x98] sm:$0xff] %v921
        %1414 = vst [vmem:[#allocation2 + $0xa0] sm:$0xff] %v923
        %1415 = vst [vmem:[#allocation2 + $0xa8] sm:$0xff] %v925
        %1416 = vst [vmem:[#allocation2 + $0xb0] sm:$0xff] %v927
        %1417 = vst [vmem:[#allocation2 + $0xb8] sm:$0xff] %v929
        %1418 = vst [vmem:[#allocation2 + $0xc0] sm:$0xff] %v931
        %1419 = vst [vmem:[#allocation2 + $0xc8] sm:$0xff] %v933
        %1420 = vst [vmem:[#allocation2 + $0xd0] sm:$0xff] %v935
        %1421 = vst [vmem:[#allocation2 + $0xd8] sm:$0xff] %v937
        %1422 = vst [vmem:[#allocation2 + $0xe0] sm:$0xff] %v939
        %1423 = vst [vmem:[#allocation2 + $0xe8] sm:$0xff] %v941
        %1424 = vst [vmem:[#allocation2 + $0xf0] sm:$0xff] %v943
        %1425 = vst [vmem:[#allocation2 + $0xf8] sm:$0xff] %v945
        %1426 = vst [vmem:[#allocation2 + $0x100] sm:$0xff] %v947
        %1427 = vst [vmem:[#allocation2 + $0x108] sm:$0xff] %v949
        %1428 = vst [vmem:[#allocation2 + $0x110] sm:$0xff] %v951
        %1429 = vst [vmem:[#allocation2 + $0x118] sm:$0xff] %v953
        %1430 = vst [vmem:[#allocation2 + $0x120] sm:$0xff] %v955
        %1431 = vst [vmem:[#allocation2 + $0x128] sm:$0xff] %v957
        %1432 = vst [vmem:[#allocation2 + $0x130] sm:$0xff] %v959
        %1433 = vst [vmem:[#allocation2 + $0x138] sm:$0xff] %v961
        %1434 = vst [vmem:[#allocation2 + $0x140] sm:$0xff] %v963
        %1435 = vst [vmem:[#allocation2 + $0x148] sm:$0xff] %v965
        %1436 = vst [vmem:[#allocation2 + $0x150] sm:$0xff] %v967
        %1437 = vst [vmem:[#allocation2 + $0x158] sm:$0xff] %v969
        %1438 = vst [vmem:[#allocation2 + $0x160] sm:$0xff] %v971
        %1439 = vst [vmem:[#allocation2 + $0x168] sm:$0xff] %v973
        %1440 = vst [vmem:[#allocation2 + $0x170] sm:$0xff] %v975
        %1441 = vst [vmem:[#allocation2 + $0x178] sm:$0xff] %v977
        %1442 = vst [vmem:[#allocation2 + $0x180] sm:$0xff] %v979
        %1443 = vst [vmem:[#allocation2 + $0x188] sm:$0xff] %v981
        %1444 = vst [vmem:[#allocation2 + $0x190] sm:$0xff] %v983
        %1445 = vst [vmem:[#allocation2 + $0x198] sm:$0xff] %v985
        %1446 = vst [vmem:[#allocation2 + $0x1a0] sm:$0xff] %v987
        %1447 = vst [vmem:[#allocation2 + $0x1a8] sm:$0xff] %v989
        %1448 = vst [vmem:[#allocation2 + $0x1b0] sm:$0xff] %v991
        %1449 = vst [vmem:[#allocation2 + $0x1b8] sm:$0xff] %v993
        %1450 = vst [vmem:[#allocation2 + $0x1c0] sm:$0xff] %v995
        %1451 = vst [vmem:[#allocation2 + $0x1c8] sm:$0xff] %v997
        %1452 = vst [vmem:[#allocation2 + $0x1d0] sm:$0xff] %v999
        %1453 = vst [vmem:[#allocation2 + $0x1d8] sm:$0xff] %v1001
        %1454 = vst [vmem:[#allocation2 + $0x1e0] sm:$0xff] %v1003
        %1455 = vst [vmem:[#allocation2 + $0x1e8] sm:$0xff] %v1005
        %1456 = vst [vmem:[#allocation2 + $0x1f0] sm:$0xff] %v1007
        %1457 = vst [vmem:[#allocation2 + $0x1f8] sm:$0xff] %v1009
        %1458 = vst [vmem:[#allocation2 + $0x200] sm:$0xff] %v1011
        %1459 = vst [vmem:[#allocation2 + $0x208] sm:$0xff] %v1013
        %1460 = vst [vmem:[#allocation2 + $0x210] sm:$0xff] %v1015
        %1461 = vst [vmem:[#allocation2 + $0x218] sm:$0xff] %v1017
        %1462 = vst [vmem:[#allocation2 + $0x220] sm:$0xff] %v1019
        %1463 = vst [vmem:[#allocation2 + $0x228] sm:$0xff] %v1021
        %1464 = vst [vmem:[#allocation2 + $0x230] sm:$0xff] %v1023
        %1465 = vst [vmem:[#allocation2 + $0x238] sm:$0xff] %v1025
        %1466 = vst [vmem:[#allocation2 + $0x240] sm:$0xff] %v1027
        %1467 = vst [vmem:[#allocation2 + $0x248] sm:$0xff] %v1029
        %1468 = vst [vmem:[#allocation2 + $0x250] sm:$0xff] %v1031
        %1469 = vst [vmem:[#allocation2 + $0x258] sm:$0xff] %v1033
        %1470 = vst [vmem:[#allocation2 + $0x260] sm:$0xff] %v1035
        %1471 = vst [vmem:[#allocation2 + $0x268] sm:$0xff] %v1037
        %1472 = vst [vmem:[#allocation2 + $0x270] sm:$0xff] %v1039
        %1473 = vst [vmem:[#allocation2 + $0x278] sm:$0xff] %v1041
        %1474 = vst [vmem:[#allocation2 + $0x280] sm:$0xff] %v1043
        %1475 = vst [vmem:[#allocation2 + $0x288] sm:$0xff] %v1045
        %1476 = vst [vmem:[#allocation2 + $0x290] sm:$0xff] %v1047
        %1477 = vst [vmem:[#allocation2 + $0x298] sm:$0xff] %v1049
        %1478 = vst [vmem:[#allocation2 + $0x2a0] sm:$0xff] %v1051
        %1479 = vst [vmem:[#allocation2 + $0x2a8] sm:$0xff] %v1053
        %1480 = vst [vmem:[#allocation2 + $0x2b0] sm:$0xff] %v1055
        %1481 = vst [vmem:[#allocation2 + $0x2b8] sm:$0xff] %v1057
        %1482 = vst [vmem:[#allocation2 + $0x2c0] sm:$0xff] %v1059
        %1483 = vst [vmem:[#allocation2 + $0x2c8] sm:$0xff] %v1061
        %1484 = vst [vmem:[#allocation2 + $0x2d0] sm:$0xff] %v1063
        %1485 = vst [vmem:[#allocation2 + $0x2d8] sm:$0xff] %v1065
        %1486 = vst [vmem:[#allocation2 + $0x2e0] sm:$0xff] %v1067
        %1487 = vst [vmem:[#allocation2 + $0x2e8] sm:$0xff] %v1069
        %1488 = vst [vmem:[#allocation2 + $0x2f0] sm:$0xff] %v1071
        %1489 = vst [vmem:[#allocation2 + $0x2f8] sm:$0xff] %v1073
        %1490 = vst [vmem:[#allocation2 + $0x300] sm:$0xff] %v1075
        %1491 = vst [vmem:[#allocation2 + $0x308] sm:$0xff] %v1077
        %1492 = vst [vmem:[#allocation2 + $0x310] sm:$0xff] %v1079
        %1493 = vst [vmem:[#allocation2 + $0x318] sm:$0xff] %v1081
        %1494 = vst [vmem:[#allocation2 + $0x320] sm:$0xff] %v1083
        %1495 = vst [vmem:[#allocation2 + $0x328] sm:$0xff] %v1085
        %1496 = vst [vmem:[#allocation2 + $0x330] sm:$0xff] %v1087
        %1497 = vst [vmem:[#allocation2 + $0x338] sm:$0xff] %v1089
        %1498 = vst [vmem:[#allocation2 + $0x340] sm:$0xff] %v1091
        %1499 = vst [vmem:[#allocation2 + $0x348] sm:$0xff] %v1093
        %1500 = vst [vmem:[#allocation2 + $0x350] sm:$0xff] %v1095
        %1501 = vst [vmem:[#allocation2 + $0x358] sm:$0xff] %v1097
        %1502 = vst [vmem:[#allocation2 + $0x360] sm:$0xff] %v1099
        %1503 = vst [vmem:[#allocation2 + $0x368] sm:$0xff] %v1101
        %1504 = vst [vmem:[#allocation2 + $0x370] sm:$0xff] %v1103
        %1505 = vst [vmem:[#allocation2 + $0x378] sm:$0xff] %v1105
        %1506 = vst [vmem:[#allocation2 + $0x380] sm:$0xff] %v1107
        %1507 = vst [vmem:[#allocation2 + $0x388] sm:$0xff] %v1109
        %1508 = vst [vmem:[#allocation2 + $0x390] sm:$0xff] %v1111
        %1509 = vst [vmem:[#allocation2 + $0x398] sm:$0xff] %v1113
        %1510 = vst [vmem:[#allocation2 + $0x3a0] sm:$0xff] %v1115
        %1511 = vst [vmem:[#allocation2 + $0x3a8] sm:$0xff] %v1117
        %1512 = vst [vmem:[#allocation2 + $0x3b0] sm:$0xff] %v1119
        %1513 = vst [vmem:[#allocation2 + $0x3b8] sm:$0xff] %v1121
        %1514 = vst [vmem:[#allocation2 + $0x3c0] sm:$0xff] %v1123
        %1515 = vst [vmem:[#allocation2 + $0x3c8] sm:$0xff] %v1125
        %1516 = vst [vmem:[#allocation2 + $0x3d0] sm:$0xff] %v1127
        %1517 = vst [vmem:[#allocation2 + $0x3d8] sm:$0xff] %v1129
        %1518 = vst [vmem:[#allocation2 + $0x3e0] sm:$0xff] %v1131
        %1519 = vst [vmem:[#allocation2 + $0x3e8] sm:$0xff] %v1133
        %1520 = vst [vmem:[#allocation2 + $0x3f0] sm:$0xff] %v1135
        %1521 = vst [vmem:[#allocation2 + $0x3f8] sm:$0xff] %v1137
        %1522 = vst [vmem:[#allocation2 + $0x400] sm:$0xff] %v1139
        %1523 = vst [vmem:[#allocation2 + $0x408] sm:$0xff] %v1141
        %1524 = vst [vmem:[#allocation2 + $0x410] sm:$0xff] %v1143
        %1525 = vst [vmem:[#allocation2 + $0x418] sm:$0xff] %v1145
        %1526 = vst [vmem:[#allocation2 + $0x420] sm:$0xff] %v1147
        %1527 = vst [vmem:[#allocation2 + $0x428] sm:$0xff] %v1149
        %1528 = vst [vmem:[#allocation2 + $0x430] sm:$0xff] %v1151
        %1529 = vst [vmem:[#allocation2 + $0x438] sm:$0xff] %v1153
        %1530 = vst [vmem:[#allocation2 + $0x440] sm:$0xff] %v1155
        %1531 = vst [vmem:[#allocation2 + $0x448] sm:$0xff] %v1157
        %1532 = vst [vmem:[#allocation2 + $0x450] sm:$0xff] %v1159
        %1533 = vst [vmem:[#allocation2 + $0x458] sm:$0xff] %v1161
        %1534 = vst [vmem:[#allocation2 + $0x460] sm:$0xff] %v1163
        %1535 = vst [vmem:[#allocation2 + $0x468] sm:$0xff] %v1165
        %1536 = vst [vmem:[#allocation2 + $0x470] sm:$0xff] %v1167
        %1537 = vst [vmem:[#allocation2 + $0x478] sm:$0xff] %v1169
        %1538 = vst [vmem:[#allocation2 + $0x480] sm:$0xff] %v1171
        %1539 = vst [vmem:[#allocation2 + $0x488] sm:$0xff] %v1173
        %1540 = vst [vmem:[#allocation2 + $0x490] sm:$0xff] %v1175
        %1541 = vst [vmem:[#allocation2 + $0x498] sm:$0xff] %v1177
        %1542 = vst [vmem:[#allocation2 + $0x4a0] sm:$0xff] %v1179
        %1543 = vst [vmem:[#allocation2 + $0x4a8] sm:$0xff] %v1181
        %1544 = vst [vmem:[#allocation2 + $0x4b0] sm:$0xff] %v1183
        %1545 = vst [vmem:[#allocation2 + $0x4b8] sm:$0xff] %v1185
        %1546 = vst [vmem:[#allocation2 + $0x4c0] sm:$0xff] %v1187
        %1547 = vst [vmem:[#allocation2 + $0x4c8] sm:$0xff] %v1189
        %1548 = vst [vmem:[#allocation2 + $0x4d0] sm:$0xff] %v1191
        %1549 = vst [vmem:[#allocation2 + $0x4d8] sm:$0xff] %v1193
        %1550 = vst [vmem:[#allocation2 + $0x4e0] sm:$0xff] %v1195
        %1551 = vst [vmem:[#allocation2 + $0x4e8] sm:$0xff] %v1197
        %1552 = vst [vmem:[#allocation2 + $0x4f0] sm:$0xff] %v1199
        %1553 = vst [vmem:[#allocation2 + $0x4f8] sm:$0xff] %v1201
        %1554 = vst [vmem:[#allocation2 + $0x500] sm:$0xff] %v1203
        %1555 = vst [vmem:[#allocation2 + $0x508] sm:$0xff] %v1205
        %1556 = vst [vmem:[#allocation2 + $0x510] sm:$0xff] %v1207
        %1557 = vst [vmem:[#allocation2 + $0x518] sm:$0xff] %v1209
        %1558 = vst [vmem:[#allocation2 + $0x520] sm:$0xff] %v1211
        %1559 = vst [vmem:[#allocation2 + $0x528] sm:$0xff] %v1213
        %1560 = vst [vmem:[#allocation2 + $0x530] sm:$0xff] %v1215
        %1561 = vst [vmem:[#allocation2 + $0x538] sm:$0xff] %v1217
        %1562 = vst [vmem:[#allocation2 + $0x540] sm:$0xff] %v1219
        %1563 = vst [vmem:[#allocation2 + $0x548] sm:$0xff] %v1221
        %1564 = vst [vmem:[#allocation2 + $0x550] sm:$0xff] %v1223
        %1565 = vst [vmem:[#allocation2 + $0x558] sm:$0xff] %v1225
        %1566 = vst [vmem:[#allocation2 + $0x560] sm:$0xff] %v1227
        %1567 = vst [vmem:[#allocation2 + $0x568] sm:$0xff] %v1229
        %1568 = vst [vmem:[#allocation2 + $0x570] sm:$0xff] %v1231
        %1569 = vst [vmem:[#allocation2 + $0x578] sm:$0xff] %v1233
        %1570 = vst [vmem:[#allocation2 + $0x580] sm:$0xff] %v1235
        %1571 = vst [vmem:[#allocation2 + $0x588] sm:$0xff] %v1237
        %1572 = vst [vmem:[#allocation2 + $0x590] sm:$0xff] %v1239
        %1573 = vst [vmem:[#allocation2 + $0x598] sm:$0xff] %v1241
        %1574 = vst [vmem:[#allocation2 + $0x5a0] sm:$0xff] %v1243
        %1575 = vst [vmem:[#allocation2 + $0x5a8] sm:$0xff] %v1245
        %1576 = vst [vmem:[#allocation2 + $0x5b0] sm:$0xff] %v1247
        %1577 = vst [vmem:[#allocation2 + $0x5b8] sm:$0xff] %v1249
        %1578 = vst [vmem:[#allocation2 + $0x5c0] sm:$0xff] %v1251
        %1579 = vst [vmem:[#allocation2 + $0x5c8] sm:$0xff] %v1253
        %1580 = vst [vmem:[#allocation2 + $0x5d0] sm:$0xff] %v1255
        %1581 = vst [vmem:[#allocation2 + $0x5d8] sm:$0xff] %v1257
        %1582 = vst [vmem:[#allocation2 + $0x5e0] sm:$0xff] %v1259
        %1583 = vst [vmem:[#allocation2 + $0x5e8] sm:$0xff] %v1261
        %1584 = vst [vmem:[#allocation2 + $0x5f0] sm:$0xff] %v1263
        %1585 = vst [vmem:[#allocation2 + $0x5f8] sm:$0xff] %v1265
        %1586 = vst [vmem:[#allocation2 + $0x600] sm:$0xff] %v1267
        %1587 = vst [vmem:[#allocation2 + $0x608] sm:$0xff] %v1269
        %1588 = vst [vmem:[#allocation2 + $0x610] sm:$0xff] %v1271
        %1589 = vst [vmem:[#allocation2 + $0x618] sm:$0xff] %v1273
        %1590 = vst [vmem:[#allocation2 + $0x620] sm:$0xff] %v1275
        %1591 = vst [vmem:[#allocation2 + $0x628] sm:$0xff] %v1277
        %1592 = vst [vmem:[#allocation2 + $0x630] sm:$0xff] %v1279
        %1593 = vst [vmem:[#allocation2 + $0x638] sm:$0xff] %v1281
        %1594 = vst [vmem:[#allocation2 + $0x640] sm:$0xff] %v1283
        %1595 = vst [vmem:[#allocation2 + $0x648] sm:$0xff] %v1285
        %1596 = vst [vmem:[#allocation2 + $0x650] sm:$0xff] %v1287
        %1597 = vst [vmem:[#allocation2 + $0x658] sm:$0xff] %v1289
        %1598 = vst [vmem:[#allocation2 + $0x660] sm:$0xff] %v1291
        %1599 = vst [vmem:[#allocation2 + $0x668] sm:$0xff] %v1293
        %1600 = vst [vmem:[#allocation2 + $0x670] sm:$0xff] %v1295
        %1601 = vst [vmem:[#allocation2 + $0x678] sm:$0xff] %v1297
        %1602 = vst [vmem:[#allocation2 + $0x680] sm:$0xff] %v1299
        %1603 = vst [vmem:[#allocation2 + $0x688] sm:$0xff] %v1301
        %1604 = vst [vmem:[#allocation2 + $0x690] sm:$0xff] %v1303
        %1605 = vst [vmem:[#allocation2 + $0x698] sm:$0xff] %v1305
        %1606 = vst [vmem:[#allocation2 + $0x6a0] sm:$0xff] %v1307
        %1607 = vst [vmem:[#allocation2 + $0x6a8] sm:$0xff] %v1309
        %1608 = vst [vmem:[#allocation2 + $0x6b0] sm:$0xff] %v1311
        %1609 = vst [vmem:[#allocation2 + $0x6b8] sm:$0xff] %v1313
        %1610 = vst [vmem:[#allocation2 + $0x6c0] sm:$0xff] %v1315
        %1611 = vst [vmem:[#allocation2 + $0x6c8] sm:$0xff] %v1317
        %1612 = vst [vmem:[#allocation2 + $0x6d0] sm:$0xff] %v1319
        %1613 = vst [vmem:[#allocation2 + $0x6d8] sm:$0xff] %v1321
        %1614 = vst [vmem:[#allocation2 + $0x6e0] sm:$0xff] %v1323
        %1615 = vst [vmem:[#allocation2 + $0x6e8] sm:$0xff] %v1325
        %1616 = vst [vmem:[#allocation2 + $0x6f0] sm:$0xff] %v1327
        %1617 = vst [vmem:[#allocation2 + $0x6f8] sm:$0xff] %v1329
        %1618 = vst [vmem:[#allocation2 + $0x700] sm:$0xff] %v1331
        %1619 = vst [vmem:[#allocation2 + $0x708] sm:$0xff] %v1333
        %1620 = vst [vmem:[#allocation2 + $0x710] sm:$0xff] %v1335
        %1621 = vst [vmem:[#allocation2 + $0x718] sm:$0xff] %v1337
        %1622 = vst [vmem:[#allocation2 + $0x720] sm:$0xff] %v1339
        %1623 = vst [vmem:[#allocation2 + $0x728] sm:$0xff] %v1341
        %1624 = vst [vmem:[#allocation2 + $0x730] sm:$0xff] %v1343
        %1625 = vst [vmem:[#allocation2 + $0x738] sm:$0xff] %v1345
        %1626 = vst [vmem:[#allocation2 + $0x740] sm:$0xff] %v1347
        %1627 = vst [vmem:[#allocation2 + $0x748] sm:$0xff] %v1349
        %1628 = vst [vmem:[#allocation2 + $0x750] sm:$0xff] %v1351
        %1629 = vst [vmem:[#allocation2 + $0x758] sm:$0xff] %v1353
        %1630 = vst [vmem:[#allocation2 + $0x760] sm:$0xff] %v1355
        %1631 = vst [vmem:[#allocation2 + $0x768] sm:$0xff] %v1357
        %1632 = vst [vmem:[#allocation2 + $0x770] sm:$0xff] %v1359
        %1633 = vst [vmem:[#allocation2 + $0x778] sm:$0xff] %v1361
        %1634 = vst [vmem:[#allocation2 + $0x780] sm:$0xff] %v1363
        %1635 = vst [vmem:[#allocation2 + $0x788] sm:$0xff] %v1365
        %1636 = vst [vmem:[#allocation2 + $0x790] sm:$0xff] %v1367
        %1637 = vst [vmem:[#allocation2 + $0x798] sm:$0xff] %v1369
        %1638 = vst [vmem:[#allocation2 + $0x7a0] sm:$0xff] %v1371
        %1639 = vst [vmem:[#allocation2 + $0x7a8] sm:$0xff] %v1373
        %1640 = vst [vmem:[#allocation2 + $0x7b0] sm:$0xff] %v1375
        %1641 = vst [vmem:[#allocation2 + $0x7b8] sm:$0xff] %v1377
        %1642 = vst [vmem:[#allocation2 + $0x7c0] sm:$0xff] %v1379
        %1643 = vst [vmem:[#allocation2 + $0x7c8] sm:$0xff] %v1381
        %1644 = vst [vmem:[#allocation2 + $0x7d0] sm:$0xff] %v1383
        %1645 = vst [vmem:[#allocation2 + $0x7d8] sm:$0xff] %v1385
        %1646 = vst [vmem:[#allocation2 + $0x7e0] sm:$0xff] %v1387
        %1647 = vst [vmem:[#allocation2 + $0x7e8] sm:$0xff] %v1389
        %1648 = vst [vmem:[#allocation2 + $0x7f0] sm:$0xff] %v1391
        %1649 = vst [vmem:[#allocation2 + $0x7f8] sm:$0xff] %v1393
        %v1652 = vrot.slane %v560, 1
        %v1653 = vrot.slane %v560, 2
        %v1654 = vrot.slane %v560, 3
        %v1655 = vrot.slane %v560, 4
        %v1656 = vrot.slane %v560, 5
        %v1657 = vrot.slane %v560, 6
        %v1658 = vrot.slane %v560, 7
        %v1659 = vrot.slane %v561, 1
        %v1660 = vrot.slane %v561, 2
        %v1661 = vrot.slane %v561, 3
        %v1662 = vrot.slane %v561, 4
        %v1663 = vrot.slane %v561, 5
        %v1664 = vrot.slane %v561, 6
        %v1665 = vrot.slane %v561, 7
        %v1666 = vperm.slane %v560, 0
        %v1667 = vperm.slane %v1652, 0
        %v1668 = vperm.slane %v1653, 0
        %v1669 = vperm.slane %v1654, 0
        %v1670 = vperm.slane %v1655, 0
        %v1671 = vperm.slane %v1656, 0
        %v1672 = vperm.slane %v1657, 0
        %v1673 = vperm.slane %v1658, 0
        %v1674 = vperm.slane %v561, 0
        %v1675 = vperm.slane %v1659, 0
        %v1676 = vperm.slane %v1660, 0
        %v1677 = vperm.slane %v1661, 0
        %v1678 = vperm.slane %v1662, 0
        %v1679 = vperm.slane %v1663, 0
        %v1680 = vperm.slane %v1664, 0
        %v1681 = vperm.slane %v1665, 0
        %v1698 = vmul.f32 %v1666, %v562
        %v1699 = vmul.f32 %v1666, %v563
        %v1700 = vmul.f32 %v1666, %v564
        %v1701 = vmul.f32 %v1666, %v565
        %v1702 = vmul.f32 %v1666, %v566
        %v1703 = vmul.f32 %v1666, %v567
        %v1704 = vmul.f32 %v1666, %v568
        %v1705 = vmul.f32 %v1666, %v569
        %v1706 = vmul.f32 %v1666, %v570
        %v1707 = vmul.f32 %v1666, %v571
        %v1708 = vmul.f32 %v1666, %v572
        %v1709 = vmul.f32 %v1666, %v573
        %v1710 = vmul.f32 %v1666, %v574
        %v1711 = vmul.f32 %v1666, %v575
        %v1712 = vmul.f32 %v1666, %v576
        %v1713 = vmul.f32 %v1666, %v577
        %v1714 = vmul.f32 %v1667, %v562
        %v1715 = vmul.f32 %v1667, %v563
        %v1716 = vmul.f32 %v1667, %v564
        %v1717 = vmul.f32 %v1667, %v565
        %v1718 = vmul.f32 %v1667, %v566
        %v1719 = vmul.f32 %v1667, %v567
        %v1720 = vmul.f32 %v1667, %v568
        %v1721 = vmul.f32 %v1667, %v569
        %v1722 = vmul.f32 %v1667, %v570
        %v1723 = vmul.f32 %v1667, %v571
        %v1724 = vmul.f32 %v1667, %v572
        %v1725 = vmul.f32 %v1667, %v573
        %v1726 = vmul.f32 %v1667, %v574
        %v1727 = vmul.f32 %v1667, %v575
        %v1728 = vmul.f32 %v1667, %v576
        %v1729 = vmul.f32 %v1667, %v577
        %v1730 = vmul.f32 %v1668, %v562
        %v1731 = vmul.f32 %v1668, %v563
        %v1732 = vmul.f32 %v1668, %v564
        %v1733 = vmul.f32 %v1668, %v565
        %v1734 = vmul.f32 %v1668, %v566
        %v1735 = vmul.f32 %v1668, %v567
        %v1736 = vmul.f32 %v1668, %v568
        %v1737 = vmul.f32 %v1668, %v569
        %v1738 = vmul.f32 %v1668, %v570
        %v1739 = vmul.f32 %v1668, %v571
        %v1740 = vmul.f32 %v1668, %v572
        %v1741 = vmul.f32 %v1668, %v573
        %v1742 = vmul.f32 %v1668, %v574
        %v1743 = vmul.f32 %v1668, %v575
        %v1744 = vmul.f32 %v1668, %v576
        %v1745 = vmul.f32 %v1668, %v577
        %v1746 = vmul.f32 %v1669, %v562
        %v1747 = vmul.f32 %v1669, %v563
        %v1748 = vmul.f32 %v1669, %v564
        %v1749 = vmul.f32 %v1669, %v565
        %v1750 = vmul.f32 %v1669, %v566
        %v1751 = vmul.f32 %v1669, %v567
        %v1752 = vmul.f32 %v1669, %v568
        %v1753 = vmul.f32 %v1669, %v569
        %v1754 = vmul.f32 %v1669, %v570
        %v1755 = vmul.f32 %v1669, %v571
        %v1756 = vmul.f32 %v1669, %v572
        %v1757 = vmul.f32 %v1669, %v573
        %v1758 = vmul.f32 %v1669, %v574
        %v1759 = vmul.f32 %v1669, %v575
        %v1760 = vmul.f32 %v1669, %v576
        %v1761 = vmul.f32 %v1669, %v577
        %v1762 = vmul.f32 %v1670, %v562
        %v1763 = vmul.f32 %v1670, %v563
        %v1764 = vmul.f32 %v1670, %v564
        %v1765 = vmul.f32 %v1670, %v565
        %v1766 = vmul.f32 %v1670, %v566
        %v1767 = vmul.f32 %v1670, %v567
        %v1768 = vmul.f32 %v1670, %v568
        %v1769 = vmul.f32 %v1670, %v569
        %v1770 = vmul.f32 %v1670, %v570
        %v1771 = vmul.f32 %v1670, %v571
        %v1772 = vmul.f32 %v1670, %v572
        %v1773 = vmul.f32 %v1670, %v573
        %v1774 = vmul.f32 %v1670, %v574
        %v1775 = vmul.f32 %v1670, %v575
        %v1776 = vmul.f32 %v1670, %v576
        %v1777 = vmul.f32 %v1670, %v577
        %v1778 = vmul.f32 %v1671, %v562
        %v1779 = vmul.f32 %v1671, %v563
        %v1780 = vmul.f32 %v1671, %v564
        %v1781 = vmul.f32 %v1671, %v565
        %v1782 = vmul.f32 %v1671, %v566
        %v1783 = vmul.f32 %v1671, %v567
        %v1784 = vmul.f32 %v1671, %v568
        %v1785 = vmul.f32 %v1671, %v569
        %v1786 = vmul.f32 %v1671, %v570
        %v1787 = vmul.f32 %v1671, %v571
        %v1788 = vmul.f32 %v1671, %v572
        %v1789 = vmul.f32 %v1671, %v573
        %v1790 = vmul.f32 %v1671, %v574
        %v1791 = vmul.f32 %v1671, %v575
        %v1792 = vmul.f32 %v1671, %v576
        %v1793 = vmul.f32 %v1671, %v577
        %v1794 = vmul.f32 %v1672, %v562
        %v1795 = vmul.f32 %v1672, %v563
        %v1796 = vmul.f32 %v1672, %v564
        %v1797 = vmul.f32 %v1672, %v565
        %v1798 = vmul.f32 %v1672, %v566
        %v1799 = vmul.f32 %v1672, %v567
        %v1800 = vmul.f32 %v1672, %v568
        %v1801 = vmul.f32 %v1672, %v569
        %v1802 = vmul.f32 %v1672, %v570
        %v1803 = vmul.f32 %v1672, %v571
        %v1804 = vmul.f32 %v1672, %v572
        %v1805 = vmul.f32 %v1672, %v573
        %v1806 = vmul.f32 %v1672, %v574
        %v1807 = vmul.f32 %v1672, %v575
        %v1808 = vmul.f32 %v1672, %v576
        %v1809 = vmul.f32 %v1672, %v577
        %v1810 = vmul.f32 %v1673, %v562
        %v1811 = vmul.f32 %v1673, %v563
        %v1812 = vmul.f32 %v1673, %v564
        %v1813 = vmul.f32 %v1673, %v565
        %v1814 = vmul.f32 %v1673, %v566
        %v1815 = vmul.f32 %v1673, %v567
        %v1816 = vmul.f32 %v1673, %v568
        %v1817 = vmul.f32 %v1673, %v569
        %v1818 = vmul.f32 %v1673, %v570
        %v1819 = vmul.f32 %v1673, %v571
        %v1820 = vmul.f32 %v1673, %v572
        %v1821 = vmul.f32 %v1673, %v573
        %v1822 = vmul.f32 %v1673, %v574
        %v1823 = vmul.f32 %v1673, %v575
        %v1824 = vmul.f32 %v1673, %v576
        %v1825 = vmul.f32 %v1673, %v577
        %v1826 = vmul.f32 %v1674, %v562
        %v1827 = vmul.f32 %v1674, %v563
        %v1828 = vmul.f32 %v1674, %v564
        %v1829 = vmul.f32 %v1674, %v565
        %v1830 = vmul.f32 %v1674, %v566
        %v1831 = vmul.f32 %v1674, %v567
        %v1832 = vmul.f32 %v1674, %v568
        %v1833 = vmul.f32 %v1674, %v569
        %v1834 = vmul.f32 %v1674, %v570
        %v1835 = vmul.f32 %v1674, %v571
        %v1836 = vmul.f32 %v1674, %v572
        %v1837 = vmul.f32 %v1674, %v573
        %v1838 = vmul.f32 %v1674, %v574
        %v1839 = vmul.f32 %v1674, %v575
        %v1840 = vmul.f32 %v1674, %v576
        %v1841 = vmul.f32 %v1674, %v577
        %v1842 = vmul.f32 %v1675, %v562
        %v1843 = vmul.f32 %v1675, %v563
        %v1844 = vmul.f32 %v1675, %v564
        %v1845 = vmul.f32 %v1675, %v565
        %v1846 = vmul.f32 %v1675, %v566
        %v1847 = vmul.f32 %v1675, %v567
        %v1848 = vmul.f32 %v1675, %v568
        %v1849 = vmul.f32 %v1675, %v569
        %v1850 = vmul.f32 %v1675, %v570
        %v1851 = vmul.f32 %v1675, %v571
        %v1852 = vmul.f32 %v1675, %v572
        %v1853 = vmul.f32 %v1675, %v573
        %v1854 = vmul.f32 %v1675, %v574
        %v1855 = vmul.f32 %v1675, %v575
        %v1856 = vmul.f32 %v1675, %v576
        %v1857 = vmul.f32 %v1675, %v577
        %v1858 = vmul.f32 %v1676, %v562
        %v1859 = vmul.f32 %v1676, %v563
        %v1860 = vmul.f32 %v1676, %v564
        %v1861 = vmul.f32 %v1676, %v565
        %v1862 = vmul.f32 %v1676, %v566
        %v1863 = vmul.f32 %v1676, %v567
        %v1864 = vmul.f32 %v1676, %v568
        %v1865 = vmul.f32 %v1676, %v569
        %v1866 = vmul.f32 %v1676, %v570
        %v1867 = vmul.f32 %v1676, %v571
        %v1868 = vmul.f32 %v1676, %v572
        %v1869 = vmul.f32 %v1676, %v573
        %v1870 = vmul.f32 %v1676, %v574
        %v1871 = vmul.f32 %v1676, %v575
        %v1872 = vmul.f32 %v1676, %v576
        %v1873 = vmul.f32 %v1676, %v577
        %v1874 = vmul.f32 %v1677, %v562
        %v1875 = vmul.f32 %v1677, %v563
        %v1876 = vmul.f32 %v1677, %v564
        %v1877 = vmul.f32 %v1677, %v565
        %v1878 = vmul.f32 %v1677, %v566
        %v1879 = vmul.f32 %v1677, %v567
        %v1880 = vmul.f32 %v1677, %v568
        %v1881 = vmul.f32 %v1677, %v569
        %v1882 = vmul.f32 %v1677, %v570
        %v1883 = vmul.f32 %v1677, %v571
        %v1884 = vmul.f32 %v1677, %v572
        %v1885 = vmul.f32 %v1677, %v573
        %v1886 = vmul.f32 %v1677, %v574
        %v1887 = vmul.f32 %v1677, %v575
        %v1888 = vmul.f32 %v1677, %v576
        %v1889 = vmul.f32 %v1677, %v577
        %v1890 = vmul.f32 %v1678, %v562
        %v1891 = vmul.f32 %v1678, %v563
        %v1892 = vmul.f32 %v1678, %v564
        %v1893 = vmul.f32 %v1678, %v565
        %v1894 = vmul.f32 %v1678, %v566
        %v1895 = vmul.f32 %v1678, %v567
        %v1896 = vmul.f32 %v1678, %v568
        %v1897 = vmul.f32 %v1678, %v569
        %v1898 = vmul.f32 %v1678, %v570
        %v1899 = vmul.f32 %v1678, %v571
        %v1900 = vmul.f32 %v1678, %v572
        %v1901 = vmul.f32 %v1678, %v573
        %v1902 = vmul.f32 %v1678, %v574
        %v1903 = vmul.f32 %v1678, %v575
        %v1904 = vmul.f32 %v1678, %v576
        %v1905 = vmul.f32 %v1678, %v577
        %v1906 = vmul.f32 %v1679, %v562
        %v1907 = vmul.f32 %v1679, %v563
        %v1908 = vmul.f32 %v1679, %v564
        %v1909 = vmul.f32 %v1679, %v565
        %v1910 = vmul.f32 %v1679, %v566
        %v1911 = vmul.f32 %v1679, %v567
        %v1912 = vmul.f32 %v1679, %v568
        %v1913 = vmul.f32 %v1679, %v569
        %v1914 = vmul.f32 %v1679, %v570
        %v1915 = vmul.f32 %v1679, %v571
        %v1916 = vmul.f32 %v1679, %v572
        %v1917 = vmul.f32 %v1679, %v573
        %v1918 = vmul.f32 %v1679, %v574
        %v1919 = vmul.f32 %v1679, %v575
        %v1920 = vmul.f32 %v1679, %v576
        %v1921 = vmul.f32 %v1679, %v577
        %v1922 = vmul.f32 %v1680, %v562
        %v1923 = vmul.f32 %v1680, %v563
        %v1924 = vmul.f32 %v1680, %v564
        %v1925 = vmul.f32 %v1680, %v565
        %v1926 = vmul.f32 %v1680, %v566
        %v1927 = vmul.f32 %v1680, %v567
        %v1928 = vmul.f32 %v1680, %v568
        %v1929 = vmul.f32 %v1680, %v569
        %v1930 = vmul.f32 %v1680, %v570
        %v1931 = vmul.f32 %v1680, %v571
        %v1932 = vmul.f32 %v1680, %v572
        %v1933 = vmul.f32 %v1680, %v573
        %v1934 = vmul.f32 %v1680, %v574
        %v1935 = vmul.f32 %v1680, %v575
        %v1936 = vmul.f32 %v1680, %v576
        %v1937 = vmul.f32 %v1680, %v577
        %v1938 = vmul.f32 %v1681, %v562
        %v1939 = vmul.f32 %v1681, %v563
        %v1940 = vmul.f32 %v1681, %v564
        %v1941 = vmul.f32 %v1681, %v565
        %v1942 = vmul.f32 %v1681, %v566
        %v1943 = vmul.f32 %v1681, %v567
        %v1944 = vmul.f32 %v1681, %v568
        %v1945 = vmul.f32 %v1681, %v569
        %v1946 = vmul.f32 %v1681, %v570
        %v1947 = vmul.f32 %v1681, %v571
        %v1948 = vmul.f32 %v1681, %v572
        %v1949 = vmul.f32 %v1681, %v573
        %v1950 = vmul.f32 %v1681, %v574
        %v1951 = vmul.f32 %v1681, %v575
        %v1952 = vmul.f32 %v1681, %v576
        %v1953 = vmul.f32 %v1681, %v577
        %v1954 = vmul.f32 %v1698, 1.442695
        %v1955 = vpow.pop %v1954
        %v1956 = vmul.f32 %v1699, 1.442695
        %v1957 = vpow.pop %v1956
        %v1958 = vmul.f32 %v1700, 1.442695
        %v1959 = vpow.pop %v1958
        %v1960 = vmul.f32 %v1701, 1.442695
        %v1961 = vpow.pop %v1960
        %v1962 = vmul.f32 %v1702, 1.442695
        %v1963 = vpow.pop %v1962
        %v1964 = vmul.f32 %v1703, 1.442695
        %v1965 = vpow.pop %v1964
        %v1966 = vmul.f32 %v1704, 1.442695
        %v1967 = vpow.pop %v1966
        %v1968 = vmul.f32 %v1705, 1.442695
        %v1969 = vpow.pop %v1968
        %v1970 = vmul.f32 %v1706, 1.442695
        %v1971 = vpow.pop %v1970
        %v1972 = vmul.f32 %v1707, 1.442695
        %v1973 = vpow.pop %v1972
        %v1974 = vmul.f32 %v1708, 1.442695
        %v1975 = vpow.pop %v1974
        %v1976 = vmul.f32 %v1709, 1.442695
        %v1977 = vpow.pop %v1976
        %v1978 = vmul.f32 %v1710, 1.442695
        %v1979 = vpow.pop %v1978
        %v1980 = vmul.f32 %v1711, 1.442695
        %v1981 = vpow.pop %v1980
        %v1982 = vmul.f32 %v1712, 1.442695
        %v1983 = vpow.pop %v1982
        %v1984 = vmul.f32 %v1713, 1.442695
        %v1985 = vpow.pop %v1984
        %v1986 = vmul.f32 %v1714, 1.442695
        %v1987 = vpow.pop %v1986
        %v1988 = vmul.f32 %v1715, 1.442695
        %v1989 = vpow.pop %v1988
        %v1990 = vmul.f32 %v1716, 1.442695
        %v1991 = vpow.pop %v1990
        %v1992 = vmul.f32 %v1717, 1.442695
        %v1993 = vpow.pop %v1992
        %v1994 = vmul.f32 %v1718, 1.442695
        %v1995 = vpow.pop %v1994
        %v1996 = vmul.f32 %v1719, 1.442695
        %v1997 = vpow.pop %v1996
        %v1998 = vmul.f32 %v1720, 1.442695
        %v1999 = vpow.pop %v1998
        %v2000 = vmul.f32 %v1721, 1.442695
        %v2001 = vpow.pop %v2000
        %v2002 = vmul.f32 %v1722, 1.442695
        %v2003 = vpow.pop %v2002
        %v2004 = vmul.f32 %v1723, 1.442695
        %v2005 = vpow.pop %v2004
        %v2006 = vmul.f32 %v1724, 1.442695
        %v2007 = vpow.pop %v2006
        %v2008 = vmul.f32 %v1725, 1.442695
        %v2009 = vpow.pop %v2008
        %v2010 = vmul.f32 %v1726, 1.442695
        %v2011 = vpow.pop %v2010
        %v2012 = vmul.f32 %v1727, 1.442695
        %v2013 = vpow.pop %v2012
        %v2014 = vmul.f32 %v1728, 1.442695
        %v2015 = vpow.pop %v2014
        %v2016 = vmul.f32 %v1729, 1.442695
        %v2017 = vpow.pop %v2016
        %v2018 = vmul.f32 %v1730, 1.442695
        %v2019 = vpow.pop %v2018
        %v2020 = vmul.f32 %v1731, 1.442695
        %v2021 = vpow.pop %v2020
        %v2022 = vmul.f32 %v1732, 1.442695
        %v2023 = vpow.pop %v2022
        %v2024 = vmul.f32 %v1733, 1.442695
        %v2025 = vpow.pop %v2024
        %v2026 = vmul.f32 %v1734, 1.442695
        %v2027 = vpow.pop %v2026
        %v2028 = vmul.f32 %v1735, 1.442695
        %v2029 = vpow.pop %v2028
        %v2030 = vmul.f32 %v1736, 1.442695
        %v2031 = vpow.pop %v2030
        %v2032 = vmul.f32 %v1737, 1.442695
        %v2033 = vpow.pop %v2032
        %v2034 = vmul.f32 %v1738, 1.442695
        %v2035 = vpow.pop %v2034
        %v2036 = vmul.f32 %v1739, 1.442695
        %v2037 = vpow.pop %v2036
        %v2038 = vmul.f32 %v1740, 1.442695
        %v2039 = vpow.pop %v2038
        %v2040 = vmul.f32 %v1741, 1.442695
        %v2041 = vpow.pop %v2040
        %v2042 = vmul.f32 %v1742, 1.442695
        %v2043 = vpow.pop %v2042
        %v2044 = vmul.f32 %v1743, 1.442695
        %v2045 = vpow.pop %v2044
        %v2046 = vmul.f32 %v1744, 1.442695
        %v2047 = vpow.pop %v2046
        %v2048 = vmul.f32 %v1745, 1.442695
        %v2049 = vpow.pop %v2048
        %v2050 = vmul.f32 %v1746, 1.442695
        %v2051 = vpow.pop %v2050
        %v2052 = vmul.f32 %v1747, 1.442695
        %v2053 = vpow.pop %v2052
        %v2054 = vmul.f32 %v1748, 1.442695
        %v2055 = vpow.pop %v2054
        %v2056 = vmul.f32 %v1749, 1.442695
        %v2057 = vpow.pop %v2056
        %v2058 = vmul.f32 %v1750, 1.442695
        %v2059 = vpow.pop %v2058
        %v2060 = vmul.f32 %v1751, 1.442695
        %v2061 = vpow.pop %v2060
        %v2062 = vmul.f32 %v1752, 1.442695
        %v2063 = vpow.pop %v2062
        %v2064 = vmul.f32 %v1753, 1.442695
        %v2065 = vpow.pop %v2064
        %v2066 = vmul.f32 %v1754, 1.442695
        %v2067 = vpow.pop %v2066
        %v2068 = vmul.f32 %v1755, 1.442695
        %v2069 = vpow.pop %v2068
        %v2070 = vmul.f32 %v1756, 1.442695
        %v2071 = vpow.pop %v2070
        %v2072 = vmul.f32 %v1757, 1.442695
        %v2073 = vpow.pop %v2072
        %v2074 = vmul.f32 %v1758, 1.442695
        %v2075 = vpow.pop %v2074
        %v2076 = vmul.f32 %v1759, 1.442695
        %v2077 = vpow.pop %v2076
        %v2078 = vmul.f32 %v1760, 1.442695
        %v2079 = vpow.pop %v2078
        %v2080 = vmul.f32 %v1761, 1.442695
        %v2081 = vpow.pop %v2080
        %v2082 = vmul.f32 %v1762, 1.442695
        %v2083 = vpow.pop %v2082
        %v2084 = vmul.f32 %v1763, 1.442695
        %v2085 = vpow.pop %v2084
        %v2086 = vmul.f32 %v1764, 1.442695
        %v2087 = vpow.pop %v2086
        %v2088 = vmul.f32 %v1765, 1.442695
        %v2089 = vpow.pop %v2088
        %v2090 = vmul.f32 %v1766, 1.442695
        %v2091 = vpow.pop %v2090
        %v2092 = vmul.f32 %v1767, 1.442695
        %v2093 = vpow.pop %v2092
        %v2094 = vmul.f32 %v1768, 1.442695
        %v2095 = vpow.pop %v2094
        %v2096 = vmul.f32 %v1769, 1.442695
        %v2097 = vpow.pop %v2096
        %v2098 = vmul.f32 %v1770, 1.442695
        %v2099 = vpow.pop %v2098
        %v2100 = vmul.f32 %v1771, 1.442695
        %v2101 = vpow.pop %v2100
        %v2102 = vmul.f32 %v1772, 1.442695
        %v2103 = vpow.pop %v2102
        %v2104 = vmul.f32 %v1773, 1.442695
        %v2105 = vpow.pop %v2104
        %v2106 = vmul.f32 %v1774, 1.442695
        %v2107 = vpow.pop %v2106
        %v2108 = vmul.f32 %v1775, 1.442695
        %v2109 = vpow.pop %v2108
        %v2110 = vmul.f32 %v1776, 1.442695
        %v2111 = vpow.pop %v2110
        %v2112 = vmul.f32 %v1777, 1.442695
        %v2113 = vpow.pop %v2112
        %v2114 = vmul.f32 %v1778, 1.442695
        %v2115 = vpow.pop %v2114
        %v2116 = vmul.f32 %v1779, 1.442695
        %v2117 = vpow.pop %v2116
        %v2118 = vmul.f32 %v1780, 1.442695
        %v2119 = vpow.pop %v2118
        %v2120 = vmul.f32 %v1781, 1.442695
        %v2121 = vpow.pop %v2120
        %v2122 = vmul.f32 %v1782, 1.442695
        %v2123 = vpow.pop %v2122
        %v2124 = vmul.f32 %v1783, 1.442695
        %v2125 = vpow.pop %v2124
        %v2126 = vmul.f32 %v1784, 1.442695
        %v2127 = vpow.pop %v2126
        %v2128 = vmul.f32 %v1785, 1.442695
        %v2129 = vpow.pop %v2128
        %v2130 = vmul.f32 %v1786, 1.442695
        %v2131 = vpow.pop %v2130
        %v2132 = vmul.f32 %v1787, 1.442695
        %v2133 = vpow.pop %v2132
        %v2134 = vmul.f32 %v1788, 1.442695
        %v2135 = vpow.pop %v2134
        %v2136 = vmul.f32 %v1789, 1.442695
        %v2137 = vpow.pop %v2136
        %v2138 = vmul.f32 %v1790, 1.442695
        %v2139 = vpow.pop %v2138
        %v2140 = vmul.f32 %v1791, 1.442695
        %v2141 = vpow.pop %v2140
        %v2142 = vmul.f32 %v1792, 1.442695
        %v2143 = vpow.pop %v2142
        %v2144 = vmul.f32 %v1793, 1.442695
        %v2145 = vpow.pop %v2144
        %v2146 = vmul.f32 %v1794, 1.442695
        %v2147 = vpow.pop %v2146
        %v2148 = vmul.f32 %v1795, 1.442695
        %v2149 = vpow.pop %v2148
        %v2150 = vmul.f32 %v1796, 1.442695
        %v2151 = vpow.pop %v2150
        %v2152 = vmul.f32 %v1797, 1.442695
        %v2153 = vpow.pop %v2152
        %v2154 = vmul.f32 %v1798, 1.442695
        %v2155 = vpow.pop %v2154
        %v2156 = vmul.f32 %v1799, 1.442695
        %v2157 = vpow.pop %v2156
        %v2158 = vmul.f32 %v1800, 1.442695
        %v2159 = vpow.pop %v2158
        %v2160 = vmul.f32 %v1801, 1.442695
        %v2161 = vpow.pop %v2160
        %v2162 = vmul.f32 %v1802, 1.442695
        %v2163 = vpow.pop %v2162
        %v2164 = vmul.f32 %v1803, 1.442695
        %v2165 = vpow.pop %v2164
        %v2166 = vmul.f32 %v1804, 1.442695
        %v2167 = vpow.pop %v2166
        %v2168 = vmul.f32 %v1805, 1.442695
        %v2169 = vpow.pop %v2168
        %v2170 = vmul.f32 %v1806, 1.442695
        %v2171 = vpow.pop %v2170
        %v2172 = vmul.f32 %v1807, 1.442695
        %v2173 = vpow.pop %v2172
        %v2174 = vmul.f32 %v1808, 1.442695
        %v2175 = vpow.pop %v2174
        %v2176 = vmul.f32 %v1809, 1.442695
        %v2177 = vpow.pop %v2176
        %v2178 = vmul.f32 %v1810, 1.442695
        %v2179 = vpow.pop %v2178
        %v2180 = vmul.f32 %v1811, 1.442695
        %v2181 = vpow.pop %v2180
        %v2182 = vmul.f32 %v1812, 1.442695
        %v2183 = vpow.pop %v2182
        %v2184 = vmul.f32 %v1813, 1.442695
        %v2185 = vpow.pop %v2184
        %v2186 = vmul.f32 %v1814, 1.442695
        %v2187 = vpow.pop %v2186
        %v2188 = vmul.f32 %v1815, 1.442695
        %v2189 = vpow.pop %v2188
        %v2190 = vmul.f32 %v1816, 1.442695
        %v2191 = vpow.pop %v2190
        %v2192 = vmul.f32 %v1817, 1.442695
        %v2193 = vpow.pop %v2192
        %v2194 = vmul.f32 %v1818, 1.442695
        %v2195 = vpow.pop %v2194
        %v2196 = vmul.f32 %v1819, 1.442695
        %v2197 = vpow.pop %v2196
        %v2198 = vmul.f32 %v1820, 1.442695
        %v2199 = vpow.pop %v2198
        %v2200 = vmul.f32 %v1821, 1.442695
        %v2201 = vpow.pop %v2200
        %v2202 = vmul.f32 %v1822, 1.442695
        %v2203 = vpow.pop %v2202
        %v2204 = vmul.f32 %v1823, 1.442695
        %v2205 = vpow.pop %v2204
        %v2206 = vmul.f32 %v1824, 1.442695
        %v2207 = vpow.pop %v2206
        %v2208 = vmul.f32 %v1825, 1.442695
        %v2209 = vpow.pop %v2208
        %v2210 = vmul.f32 %v1826, 1.442695
        %v2211 = vpow.pop %v2210
        %v2212 = vmul.f32 %v1827, 1.442695
        %v2213 = vpow.pop %v2212
        %v2214 = vmul.f32 %v1828, 1.442695
        %v2215 = vpow.pop %v2214
        %v2216 = vmul.f32 %v1829, 1.442695
        %v2217 = vpow.pop %v2216
        %v2218 = vmul.f32 %v1830, 1.442695
        %v2219 = vpow.pop %v2218
        %v2220 = vmul.f32 %v1831, 1.442695
        %v2221 = vpow.pop %v2220
        %v2222 = vmul.f32 %v1832, 1.442695
        %v2223 = vpow.pop %v2222
        %v2224 = vmul.f32 %v1833, 1.442695
        %v2225 = vpow.pop %v2224
        %v2226 = vmul.f32 %v1834, 1.442695
        %v2227 = vpow.pop %v2226
        %v2228 = vmul.f32 %v1835, 1.442695
        %v2229 = vpow.pop %v2228
        %v2230 = vmul.f32 %v1836, 1.442695
        %v2231 = vpow.pop %v2230
        %v2232 = vmul.f32 %v1837, 1.442695
        %v2233 = vpow.pop %v2232
        %v2234 = vmul.f32 %v1838, 1.442695
        %v2235 = vpow.pop %v2234
        %v2236 = vmul.f32 %v1839, 1.442695
        %v2237 = vpow.pop %v2236
        %v2238 = vmul.f32 %v1840, 1.442695
        %v2239 = vpow.pop %v2238
        %v2240 = vmul.f32 %v1841, 1.442695
        %v2241 = vpow.pop %v2240
        %v2242 = vmul.f32 %v1842, 1.442695
        %v2243 = vpow.pop %v2242
        %v2244 = vmul.f32 %v1843, 1.442695
        %v2245 = vpow.pop %v2244
        %v2246 = vmul.f32 %v1844, 1.442695
        %v2247 = vpow.pop %v2246
        %v2248 = vmul.f32 %v1845, 1.442695
        %v2249 = vpow.pop %v2248
        %v2250 = vmul.f32 %v1846, 1.442695
        %v2251 = vpow.pop %v2250
        %v2252 = vmul.f32 %v1847, 1.442695
        %v2253 = vpow.pop %v2252
        %v2254 = vmul.f32 %v1848, 1.442695
        %v2255 = vpow.pop %v2254
        %v2256 = vmul.f32 %v1849, 1.442695
        %v2257 = vpow.pop %v2256
        %v2258 = vmul.f32 %v1850, 1.442695
        %v2259 = vpow.pop %v2258
        %v2260 = vmul.f32 %v1851, 1.442695
        %v2261 = vpow.pop %v2260
        %v2262 = vmul.f32 %v1852, 1.442695
        %v2263 = vpow.pop %v2262
        %v2264 = vmul.f32 %v1853, 1.442695
        %v2265 = vpow.pop %v2264
        %v2266 = vmul.f32 %v1854, 1.442695
        %v2267 = vpow.pop %v2266
        %v2268 = vmul.f32 %v1855, 1.442695
        %v2269 = vpow.pop %v2268
        %v2270 = vmul.f32 %v1856, 1.442695
        %v2271 = vpow.pop %v2270
        %v2272 = vmul.f32 %v1857, 1.442695
        %v2273 = vpow.pop %v2272
        %v2274 = vmul.f32 %v1858, 1.442695
        %v2275 = vpow.pop %v2274
        %v2276 = vmul.f32 %v1859, 1.442695
        %v2277 = vpow.pop %v2276
        %v2278 = vmul.f32 %v1860, 1.442695
        %v2279 = vpow.pop %v2278
        %v2280 = vmul.f32 %v1861, 1.442695
        %v2281 = vpow.pop %v2280
        %v2282 = vmul.f32 %v1862, 1.442695
        %v2283 = vpow.pop %v2282
        %v2284 = vmul.f32 %v1863, 1.442695
        %v2285 = vpow.pop %v2284
        %v2286 = vmul.f32 %v1864, 1.442695
        %v2287 = vpow.pop %v2286
        %v2288 = vmul.f32 %v1865, 1.442695
        %v2289 = vpow.pop %v2288
        %v2290 = vmul.f32 %v1866, 1.442695
        %v2291 = vpow.pop %v2290
        %v2292 = vmul.f32 %v1867, 1.442695
        %v2293 = vpow.pop %v2292
        %v2294 = vmul.f32 %v1868, 1.442695
        %v2295 = vpow.pop %v2294
        %v2296 = vmul.f32 %v1869, 1.442695
        %v2297 = vpow.pop %v2296
        %v2298 = vmul.f32 %v1870, 1.442695
        %v2299 = vpow.pop %v2298
        %v2300 = vmul.f32 %v1871, 1.442695
        %v2301 = vpow.pop %v2300
        %v2302 = vmul.f32 %v1872, 1.442695
        %v2303 = vpow.pop %v2302
        %v2304 = vmul.f32 %v1873, 1.442695
        %v2305 = vpow.pop %v2304
        %v2306 = vmul.f32 %v1874, 1.442695
        %v2307 = vpow.pop %v2306
        %v2308 = vmul.f32 %v1875, 1.442695
        %v2309 = vpow.pop %v2308
        %v2310 = vmul.f32 %v1876, 1.442695
        %v2311 = vpow.pop %v2310
        %v2312 = vmul.f32 %v1877, 1.442695
        %v2313 = vpow.pop %v2312
        %v2314 = vmul.f32 %v1878, 1.442695
        %v2315 = vpow.pop %v2314
        %v2316 = vmul.f32 %v1879, 1.442695
        %v2317 = vpow.pop %v2316
        %v2318 = vmul.f32 %v1880, 1.442695
        %v2319 = vpow.pop %v2318
        %v2320 = vmul.f32 %v1881, 1.442695
        %v2321 = vpow.pop %v2320
        %v2322 = vmul.f32 %v1882, 1.442695
        %v2323 = vpow.pop %v2322
        %v2324 = vmul.f32 %v1883, 1.442695
        %v2325 = vpow.pop %v2324
        %v2326 = vmul.f32 %v1884, 1.442695
        %v2327 = vpow.pop %v2326
        %v2328 = vmul.f32 %v1885, 1.442695
        %v2329 = vpow.pop %v2328
        %v2330 = vmul.f32 %v1886, 1.442695
        %v2331 = vpow.pop %v2330
        %v2332 = vmul.f32 %v1887, 1.442695
        %v2333 = vpow.pop %v2332
        %v2334 = vmul.f32 %v1888, 1.442695
        %v2335 = vpow.pop %v2334
        %v2336 = vmul.f32 %v1889, 1.442695
        %v2337 = vpow.pop %v2336
        %v2338 = vmul.f32 %v1890, 1.442695
        %v2339 = vpow.pop %v2338
        %v2340 = vmul.f32 %v1891, 1.442695
        %v2341 = vpow.pop %v2340
        %v2342 = vmul.f32 %v1892, 1.442695
        %v2343 = vpow.pop %v2342
        %v2344 = vmul.f32 %v1893, 1.442695
        %v2345 = vpow.pop %v2344
        %v2346 = vmul.f32 %v1894, 1.442695
        %v2347 = vpow.pop %v2346
        %v2348 = vmul.f32 %v1895, 1.442695
        %v2349 = vpow.pop %v2348
        %v2350 = vmul.f32 %v1896, 1.442695
        %v2351 = vpow.pop %v2350
        %v2352 = vmul.f32 %v1897, 1.442695
        %v2353 = vpow.pop %v2352
        %v2354 = vmul.f32 %v1898, 1.442695
        %v2355 = vpow.pop %v2354
        %v2356 = vmul.f32 %v1899, 1.442695
        %v2357 = vpow.pop %v2356
        %v2358 = vmul.f32 %v1900, 1.442695
        %v2359 = vpow.pop %v2358
        %v2360 = vmul.f32 %v1901, 1.442695
        %v2361 = vpow.pop %v2360
        %v2362 = vmul.f32 %v1902, 1.442695
        %v2363 = vpow.pop %v2362
        %v2364 = vmul.f32 %v1903, 1.442695
        %v2365 = vpow.pop %v2364
        %v2366 = vmul.f32 %v1904, 1.442695
        %v2367 = vpow.pop %v2366
        %v2368 = vmul.f32 %v1905, 1.442695
        %v2369 = vpow.pop %v2368
        %v2370 = vmul.f32 %v1906, 1.442695
        %v2371 = vpow.pop %v2370
        %v2372 = vmul.f32 %v1907, 1.442695
        %v2373 = vpow.pop %v2372
        %v2374 = vmul.f32 %v1908, 1.442695
        %v2375 = vpow.pop %v2374
        %v2376 = vmul.f32 %v1909, 1.442695
        %v2377 = vpow.pop %v2376
        %v2378 = vmul.f32 %v1910, 1.442695
        %v2379 = vpow.pop %v2378
        %v2380 = vmul.f32 %v1911, 1.442695
        %v2381 = vpow.pop %v2380
        %v2382 = vmul.f32 %v1912, 1.442695
        %v2383 = vpow.pop %v2382
        %v2384 = vmul.f32 %v1913, 1.442695
        %v2385 = vpow.pop %v2384
        %v2386 = vmul.f32 %v1914, 1.442695
        %v2387 = vpow.pop %v2386
        %v2388 = vmul.f32 %v1915, 1.442695
        %v2389 = vpow.pop %v2388
        %v2390 = vmul.f32 %v1916, 1.442695
        %v2391 = vpow.pop %v2390
        %v2392 = vmul.f32 %v1917, 1.442695
        %v2393 = vpow.pop %v2392
        %v2394 = vmul.f32 %v1918, 1.442695
        %v2395 = vpow.pop %v2394
        %v2396 = vmul.f32 %v1919, 1.442695
        %v2397 = vpow.pop %v2396
        %v2398 = vmul.f32 %v1920, 1.442695
        %v2399 = vpow.pop %v2398
        %v2400 = vmul.f32 %v1921, 1.442695
        %v2401 = vpow.pop %v2400
        %v2402 = vmul.f32 %v1922, 1.442695
        %v2403 = vpow.pop %v2402
        %v2404 = vmul.f32 %v1923, 1.442695
        %v2405 = vpow.pop %v2404
        %v2406 = vmul.f32 %v1924, 1.442695
        %v2407 = vpow.pop %v2406
        %v2408 = vmul.f32 %v1925, 1.442695
        %v2409 = vpow.pop %v2408
        %v2410 = vmul.f32 %v1926, 1.442695
        %v2411 = vpow.pop %v2410
        %v2412 = vmul.f32 %v1927, 1.442695
        %v2413 = vpow.pop %v2412
        %v2414 = vmul.f32 %v1928, 1.442695
        %v2415 = vpow.pop %v2414
        %v2416 = vmul.f32 %v1929, 1.442695
        %v2417 = vpow.pop %v2416
        %v2418 = vmul.f32 %v1930, 1.442695
        %v2419 = vpow.pop %v2418
        %v2420 = vmul.f32 %v1931, 1.442695
        %v2421 = vpow.pop %v2420
        %v2422 = vmul.f32 %v1932, 1.442695
        %v2423 = vpow.pop %v2422
        %v2424 = vmul.f32 %v1933, 1.442695
        %v2425 = vpow.pop %v2424
        %v2426 = vmul.f32 %v1934, 1.442695
        %v2427 = vpow.pop %v2426
        %v2428 = vmul.f32 %v1935, 1.442695
        %v2429 = vpow.pop %v2428
        %v2430 = vmul.f32 %v1936, 1.442695
        %v2431 = vpow.pop %v2430
        %v2432 = vmul.f32 %v1937, 1.442695
        %v2433 = vpow.pop %v2432
        %v2434 = vmul.f32 %v1938, 1.442695
        %v2435 = vpow.pop %v2434
        %v2436 = vmul.f32 %v1939, 1.442695
        %v2437 = vpow.pop %v2436
        %v2438 = vmul.f32 %v1940, 1.442695
        %v2439 = vpow.pop %v2438
        %v2440 = vmul.f32 %v1941, 1.442695
        %v2441 = vpow.pop %v2440
        %v2442 = vmul.f32 %v1942, 1.442695
        %v2443 = vpow.pop %v2442
        %v2444 = vmul.f32 %v1943, 1.442695
        %v2445 = vpow.pop %v2444
        %v2446 = vmul.f32 %v1944, 1.442695
        %v2447 = vpow.pop %v2446
        %v2448 = vmul.f32 %v1945, 1.442695
        %v2449 = vpow.pop %v2448
        %v2450 = vmul.f32 %v1946, 1.442695
        %v2451 = vpow.pop %v2450
        %v2452 = vmul.f32 %v1947, 1.442695
        %v2453 = vpow.pop %v2452
        %v2454 = vmul.f32 %v1948, 1.442695
        %v2455 = vpow.pop %v2454
        %v2456 = vmul.f32 %v1949, 1.442695
        %v2457 = vpow.pop %v2456
        %v2458 = vmul.f32 %v1950, 1.442695
        %v2459 = vpow.pop %v2458
        %v2460 = vmul.f32 %v1951, 1.442695
        %v2461 = vpow.pop %v2460
        %v2462 = vmul.f32 %v1952, 1.442695
        %v2463 = vpow.pop %v2462
        %v2464 = vmul.f32 %v1953, 1.442695
        %v2465 = vpow.pop %v2464
        %s2466 = scalar_lea.vmem [#allocation2], 2048
        %2467 = vst [vmem:[%s2466] sm:$0xff] %v1955
        %2468 = vst [vmem:[%s2466 + $0x8] sm:$0xff] %v1957
        %2469 = vst [vmem:[%s2466 + $0x10] sm:$0xff] %v1959
        %2470 = vst [vmem:[%s2466 + $0x18] sm:$0xff] %v1961
        %2471 = vst [vmem:[%s2466 + $0x20] sm:$0xff] %v1963
        %2472 = vst [vmem:[%s2466 + $0x28] sm:$0xff] %v1965
        %2473 = vst [vmem:[%s2466 + $0x30] sm:$0xff] %v1967
        %2474 = vst [vmem:[%s2466 + $0x38] sm:$0xff] %v1969
        %2475 = vst [vmem:[%s2466 + $0x40] sm:$0xff] %v1971
        %2476 = vst [vmem:[%s2466 + $0x48] sm:$0xff] %v1973
        %2477 = vst [vmem:[%s2466 + $0x50] sm:$0xff] %v1975
        %2478 = vst [vmem:[%s2466 + $0x58] sm:$0xff] %v1977
        %2479 = vst [vmem:[%s2466 + $0x60] sm:$0xff] %v1979
        %2480 = vst [vmem:[%s2466 + $0x68] sm:$0xff] %v1981
        %2481 = vst [vmem:[%s2466 + $0x70] sm:$0xff] %v1983
        %2482 = vst [vmem:[%s2466 + $0x78] sm:$0xff] %v1985
        %2483 = vst [vmem:[%s2466 + $0x80] sm:$0xff] %v1987
        %2484 = vst [vmem:[%s2466 + $0x88] sm:$0xff] %v1989
        %2485 = vst [vmem:[%s2466 + $0x90] sm:$0xff] %v1991
        %2486 = vst [vmem:[%s2466 + $0x98] sm:$0xff] %v1993
        %2487 = vst [vmem:[%s2466 + $0xa0] sm:$0xff] %v1995
        %2488 = vst [vmem:[%s2466 + $0xa8] sm:$0xff] %v1997
        %2489 = vst [vmem:[%s2466 + $0xb0] sm:$0xff] %v1999
        %2490 = vst [vmem:[%s2466 + $0xb8] sm:$0xff] %v2001
        %2491 = vst [vmem:[%s2466 + $0xc0] sm:$0xff] %v2003
        %2492 = vst [vmem:[%s2466 + $0xc8] sm:$0xff] %v2005
        %2493 = vst [vmem:[%s2466 + $0xd0] sm:$0xff] %v2007
        %2494 = vst [vmem:[%s2466 + $0xd8] sm:$0xff] %v2009
        %2495 = vst [vmem:[%s2466 + $0xe0] sm:$0xff] %v2011
        %2496 = vst [vmem:[%s2466 + $0xe8] sm:$0xff] %v2013
        %2497 = vst [vmem:[%s2466 + $0xf0] sm:$0xff] %v2015
        %2498 = vst [vmem:[%s2466 + $0xf8] sm:$0xff] %v2017
        %2499 = vst [vmem:[%s2466 + $0x100] sm:$0xff] %v2019
        %2500 = vst [vmem:[%s2466 + $0x108] sm:$0xff] %v2021
        %2501 = vst [vmem:[%s2466 + $0x110] sm:$0xff] %v2023
        %2502 = vst [vmem:[%s2466 + $0x118] sm:$0xff] %v2025
        %2503 = vst [vmem:[%s2466 + $0x120] sm:$0xff] %v2027
        %2504 = vst [vmem:[%s2466 + $0x128] sm:$0xff] %v2029
        %2505 = vst [vmem:[%s2466 + $0x130] sm:$0xff] %v2031
        %2506 = vst [vmem:[%s2466 + $0x138] sm:$0xff] %v2033
        %2507 = vst [vmem:[%s2466 + $0x140] sm:$0xff] %v2035
        %2508 = vst [vmem:[%s2466 + $0x148] sm:$0xff] %v2037
        %2509 = vst [vmem:[%s2466 + $0x150] sm:$0xff] %v2039
        %2510 = vst [vmem:[%s2466 + $0x158] sm:$0xff] %v2041
        %2511 = vst [vmem:[%s2466 + $0x160] sm:$0xff] %v2043
        %2512 = vst [vmem:[%s2466 + $0x168] sm:$0xff] %v2045
        %2513 = vst [vmem:[%s2466 + $0x170] sm:$0xff] %v2047
        %2514 = vst [vmem:[%s2466 + $0x178] sm:$0xff] %v2049
        %2515 = vst [vmem:[%s2466 + $0x180] sm:$0xff] %v2051
        %2516 = vst [vmem:[%s2466 + $0x188] sm:$0xff] %v2053
        %2517 = vst [vmem:[%s2466 + $0x190] sm:$0xff] %v2055
        %2518 = vst [vmem:[%s2466 + $0x198] sm:$0xff] %v2057
        %2519 = vst [vmem:[%s2466 + $0x1a0] sm:$0xff] %v2059
        %2520 = vst [vmem:[%s2466 + $0x1a8] sm:$0xff] %v2061
        %2521 = vst [vmem:[%s2466 + $0x1b0] sm:$0xff] %v2063
        %2522 = vst [vmem:[%s2466 + $0x1b8] sm:$0xff] %v2065
        %2523 = vst [vmem:[%s2466 + $0x1c0] sm:$0xff] %v2067
        %2524 = vst [vmem:[%s2466 + $0x1c8] sm:$0xff] %v2069
        %2525 = vst [vmem:[%s2466 + $0x1d0] sm:$0xff] %v2071
        %2526 = vst [vmem:[%s2466 + $0x1d8] sm:$0xff] %v2073
        %2527 = vst [vmem:[%s2466 + $0x1e0] sm:$0xff] %v2075
        %2528 = vst [vmem:[%s2466 + $0x1e8] sm:$0xff] %v2077
        %2529 = vst [vmem:[%s2466 + $0x1f0] sm:$0xff] %v2079
        %2530 = vst [vmem:[%s2466 + $0x1f8] sm:$0xff] %v2081
        %2531 = vst [vmem:[%s2466 + $0x200] sm:$0xff] %v2083
        %2532 = vst [vmem:[%s2466 + $0x208] sm:$0xff] %v2085
        %2533 = vst [vmem:[%s2466 + $0x210] sm:$0xff] %v2087
        %2534 = vst [vmem:[%s2466 + $0x218] sm:$0xff] %v2089
        %2535 = vst [vmem:[%s2466 + $0x220] sm:$0xff] %v2091
        %2536 = vst [vmem:[%s2466 + $0x228] sm:$0xff] %v2093
        %2537 = vst [vmem:[%s2466 + $0x230] sm:$0xff] %v2095
        %2538 = vst [vmem:[%s2466 + $0x238] sm:$0xff] %v2097
        %2539 = vst [vmem:[%s2466 + $0x240] sm:$0xff] %v2099
        %2540 = vst [vmem:[%s2466 + $0x248] sm:$0xff] %v2101
        %2541 = vst [vmem:[%s2466 + $0x250] sm:$0xff] %v2103
        %2542 = vst [vmem:[%s2466 + $0x258] sm:$0xff] %v2105
        %2543 = vst [vmem:[%s2466 + $0x260] sm:$0xff] %v2107
        %2544 = vst [vmem:[%s2466 + $0x268] sm:$0xff] %v2109
        %2545 = vst [vmem:[%s2466 + $0x270] sm:$0xff] %v2111
        %2546 = vst [vmem:[%s2466 + $0x278] sm:$0xff] %v2113
        %2547 = vst [vmem:[%s2466 + $0x280] sm:$0xff] %v2115
        %2548 = vst [vmem:[%s2466 + $0x288] sm:$0xff] %v2117
        %2549 = vst [vmem:[%s2466 + $0x290] sm:$0xff] %v2119
        %2550 = vst [vmem:[%s2466 + $0x298] sm:$0xff] %v2121
        %2551 = vst [vmem:[%s2466 + $0x2a0] sm:$0xff] %v2123
        %2552 = vst [vmem:[%s2466 + $0x2a8] sm:$0xff] %v2125
        %2553 = vst [vmem:[%s2466 + $0x2b0] sm:$0xff] %v2127
        %2554 = vst [vmem:[%s2466 + $0x2b8] sm:$0xff] %v2129
        %2555 = vst [vmem:[%s2466 + $0x2c0] sm:$0xff] %v2131
        %2556 = vst [vmem:[%s2466 + $0x2c8] sm:$0xff] %v2133
        %2557 = vst [vmem:[%s2466 + $0x2d0] sm:$0xff] %v2135
        %2558 = vst [vmem:[%s2466 + $0x2d8] sm:$0xff] %v2137
        %2559 = vst [vmem:[%s2466 + $0x2e0] sm:$0xff] %v2139
        %2560 = vst [vmem:[%s2466 + $0x2e8] sm:$0xff] %v2141
        %2561 = vst [vmem:[%s2466 + $0x2f0] sm:$0xff] %v2143
        %2562 = vst [vmem:[%s2466 + $0x2f8] sm:$0xff] %v2145
        %2563 = vst [vmem:[%s2466 + $0x300] sm:$0xff] %v2147
        %2564 = vst [vmem:[%s2466 + $0x308] sm:$0xff] %v2149
        %2565 = vst [vmem:[%s2466 + $0x310] sm:$0xff] %v2151
        %2566 = vst [vmem:[%s2466 + $0x318] sm:$0xff] %v2153
        %2567 = vst [vmem:[%s2466 + $0x320] sm:$0xff] %v2155
        %2568 = vst [vmem:[%s2466 + $0x328] sm:$0xff] %v2157
        %2569 = vst [vmem:[%s2466 + $0x330] sm:$0xff] %v2159
        %2570 = vst [vmem:[%s2466 + $0x338] sm:$0xff] %v2161
        %2571 = vst [vmem:[%s2466 + $0x340] sm:$0xff] %v2163
        %2572 = vst [vmem:[%s2466 + $0x348] sm:$0xff] %v2165
        %2573 = vst [vmem:[%s2466 + $0x350] sm:$0xff] %v2167
        %2574 = vst [vmem:[%s2466 + $0x358] sm:$0xff] %v2169
        %2575 = vst [vmem:[%s2466 + $0x360] sm:$0xff] %v2171
        %2576 = vst [vmem:[%s2466 + $0x368] sm:$0xff] %v2173
        %2577 = vst [vmem:[%s2466 + $0x370] sm:$0xff] %v2175
        %2578 = vst [vmem:[%s2466 + $0x378] sm:$0xff] %v2177
        %2579 = vst [vmem:[%s2466 + $0x380] sm:$0xff] %v2179
        %2580 = vst [vmem:[%s2466 + $0x388] sm:$0xff] %v2181
        %2581 = vst [vmem:[%s2466 + $0x390] sm:$0xff] %v2183
        %2582 = vst [vmem:[%s2466 + $0x398] sm:$0xff] %v2185
        %2583 = vst [vmem:[%s2466 + $0x3a0] sm:$0xff] %v2187
        %2584 = vst [vmem:[%s2466 + $0x3a8] sm:$0xff] %v2189
        %2585 = vst [vmem:[%s2466 + $0x3b0] sm:$0xff] %v2191
        %2586 = vst [vmem:[%s2466 + $0x3b8] sm:$0xff] %v2193
        %2587 = vst [vmem:[%s2466 + $0x3c0] sm:$0xff] %v2195
        %2588 = vst [vmem:[%s2466 + $0x3c8] sm:$0xff] %v2197
        %2589 = vst [vmem:[%s2466 + $0x3d0] sm:$0xff] %v2199
        %2590 = vst [vmem:[%s2466 + $0x3d8] sm:$0xff] %v2201
        %2591 = vst [vmem:[%s2466 + $0x3e0] sm:$0xff] %v2203
        %2592 = vst [vmem:[%s2466 + $0x3e8] sm:$0xff] %v2205
        %2593 = vst [vmem:[%s2466 + $0x3f0] sm:$0xff] %v2207
        %2594 = vst [vmem:[%s2466 + $0x3f8] sm:$0xff] %v2209
        %2595 = vst [vmem:[%s2466 + $0x400] sm:$0xff] %v2211
        %2596 = vst [vmem:[%s2466 + $0x408] sm:$0xff] %v2213
        %2597 = vst [vmem:[%s2466 + $0x410] sm:$0xff] %v2215
        %2598 = vst [vmem:[%s2466 + $0x418] sm:$0xff] %v2217
        %2599 = vst [vmem:[%s2466 + $0x420] sm:$0xff] %v2219
        %2600 = vst [vmem:[%s2466 + $0x428] sm:$0xff] %v2221
        %2601 = vst [vmem:[%s2466 + $0x430] sm:$0xff] %v2223
        %2602 = vst [vmem:[%s2466 + $0x438] sm:$0xff] %v2225
        %2603 = vst [vmem:[%s2466 + $0x440] sm:$0xff] %v2227
        %2604 = vst [vmem:[%s2466 + $0x448] sm:$0xff] %v2229
        %2605 = vst [vmem:[%s2466 + $0x450] sm:$0xff] %v2231
        %2606 = vst [vmem:[%s2466 + $0x458] sm:$0xff] %v2233
        %2607 = vst [vmem:[%s2466 + $0x460] sm:$0xff] %v2235
        %2608 = vst [vmem:[%s2466 + $0x468] sm:$0xff] %v2237
        %2609 = vst [vmem:[%s2466 + $0x470] sm:$0xff] %v2239
        %2610 = vst [vmem:[%s2466 + $0x478] sm:$0xff] %v2241
        %2611 = vst [vmem:[%s2466 + $0x480] sm:$0xff] %v2243
        %2612 = vst [vmem:[%s2466 + $0x488] sm:$0xff] %v2245
        %2613 = vst [vmem:[%s2466 + $0x490] sm:$0xff] %v2247
        %2614 = vst [vmem:[%s2466 + $0x498] sm:$0xff] %v2249
        %2615 = vst [vmem:[%s2466 + $0x4a0] sm:$0xff] %v2251
        %2616 = vst [vmem:[%s2466 + $0x4a8] sm:$0xff] %v2253
        %2617 = vst [vmem:[%s2466 + $0x4b0] sm:$0xff] %v2255
        %2618 = vst [vmem:[%s2466 + $0x4b8] sm:$0xff] %v2257
        %2619 = vst [vmem:[%s2466 + $0x4c0] sm:$0xff] %v2259
        %2620 = vst [vmem:[%s2466 + $0x4c8] sm:$0xff] %v2261
        %2621 = vst [vmem:[%s2466 + $0x4d0] sm:$0xff] %v2263
        %2622 = vst [vmem:[%s2466 + $0x4d8] sm:$0xff] %v2265
        %2623 = vst [vmem:[%s2466 + $0x4e0] sm:$0xff] %v2267
        %2624 = vst [vmem:[%s2466 + $0x4e8] sm:$0xff] %v2269
        %2625 = vst [vmem:[%s2466 + $0x4f0] sm:$0xff] %v2271
        %2626 = vst [vmem:[%s2466 + $0x4f8] sm:$0xff] %v2273
        %2627 = vst [vmem:[%s2466 + $0x500] sm:$0xff] %v2275
        %2628 = vst [vmem:[%s2466 + $0x508] sm:$0xff] %v2277
        %2629 = vst [vmem:[%s2466 + $0x510] sm:$0xff] %v2279
        %2630 = vst [vmem:[%s2466 + $0x518] sm:$0xff] %v2281
        %2631 = vst [vmem:[%s2466 + $0x520] sm:$0xff] %v2283
        %2632 = vst [vmem:[%s2466 + $0x528] sm:$0xff] %v2285
        %2633 = vst [vmem:[%s2466 + $0x530] sm:$0xff] %v2287
        %2634 = vst [vmem:[%s2466 + $0x538] sm:$0xff] %v2289
        %2635 = vst [vmem:[%s2466 + $0x540] sm:$0xff] %v2291
        %2636 = vst [vmem:[%s2466 + $0x548] sm:$0xff] %v2293
        %2637 = vst [vmem:[%s2466 + $0x550] sm:$0xff] %v2295
        %2638 = vst [vmem:[%s2466 + $0x558] sm:$0xff] %v2297
        %2639 = vst [vmem:[%s2466 + $0x560] sm:$0xff] %v2299
        %2640 = vst [vmem:[%s2466 + $0x568] sm:$0xff] %v2301
        %2641 = vst [vmem:[%s2466 + $0x570] sm:$0xff] %v2303
        %2642 = vst [vmem:[%s2466 + $0x578] sm:$0xff] %v2305
        %2643 = vst [vmem:[%s2466 + $0x580] sm:$0xff] %v2307
        %2644 = vst [vmem:[%s2466 + $0x588] sm:$0xff] %v2309
        %2645 = vst [vmem:[%s2466 + $0x590] sm:$0xff] %v2311
        %2646 = vst [vmem:[%s2466 + $0x598] sm:$0xff] %v2313
        %2647 = vst [vmem:[%s2466 + $0x5a0] sm:$0xff] %v2315
        %2648 = vst [vmem:[%s2466 + $0x5a8] sm:$0xff] %v2317
        %2649 = vst [vmem:[%s2466 + $0x5b0] sm:$0xff] %v2319
        %2650 = vst [vmem:[%s2466 + $0x5b8] sm:$0xff] %v2321
        %2651 = vst [vmem:[%s2466 + $0x5c0] sm:$0xff] %v2323
        %2652 = vst [vmem:[%s2466 + $0x5c8] sm:$0xff] %v2325
        %2653 = vst [vmem:[%s2466 + $0x5d0] sm:$0xff] %v2327
        %2654 = vst [vmem:[%s2466 + $0x5d8] sm:$0xff] %v2329
        %2655 = vst [vmem:[%s2466 + $0x5e0] sm:$0xff] %v2331
        %2656 = vst [vmem:[%s2466 + $0x5e8] sm:$0xff] %v2333
        %2657 = vst [vmem:[%s2466 + $0x5f0] sm:$0xff] %v2335
        %2658 = vst [vmem:[%s2466 + $0x5f8] sm:$0xff] %v2337
        %2659 = vst [vmem:[%s2466 + $0x600] sm:$0xff] %v2339
        %2660 = vst [vmem:[%s2466 + $0x608] sm:$0xff] %v2341
        %2661 = vst [vmem:[%s2466 + $0x610] sm:$0xff] %v2343
        %2662 = vst [vmem:[%s2466 + $0x618] sm:$0xff] %v2345
        %2663 = vst [vmem:[%s2466 + $0x620] sm:$0xff] %v2347
        %2664 = vst [vmem:[%s2466 + $0x628] sm:$0xff] %v2349
        %2665 = vst [vmem:[%s2466 + $0x630] sm:$0xff] %v2351
        %2666 = vst [vmem:[%s2466 + $0x638] sm:$0xff] %v2353
        %2667 = vst [vmem:[%s2466 + $0x640] sm:$0xff] %v2355
        %2668 = vst [vmem:[%s2466 + $0x648] sm:$0xff] %v2357
        %2669 = vst [vmem:[%s2466 + $0x650] sm:$0xff] %v2359
        %2670 = vst [vmem:[%s2466 + $0x658] sm:$0xff] %v2361
        %2671 = vst [vmem:[%s2466 + $0x660] sm:$0xff] %v2363
        %2672 = vst [vmem:[%s2466 + $0x668] sm:$0xff] %v2365
        %2673 = vst [vmem:[%s2466 + $0x670] sm:$0xff] %v2367
        %2674 = vst [vmem:[%s2466 + $0x678] sm:$0xff] %v2369
        %2675 = vst [vmem:[%s2466 + $0x680] sm:$0xff] %v2371
        %2676 = vst [vmem:[%s2466 + $0x688] sm:$0xff] %v2373
        %2677 = vst [vmem:[%s2466 + $0x690] sm:$0xff] %v2375
        %2678 = vst [vmem:[%s2466 + $0x698] sm:$0xff] %v2377
        %2679 = vst [vmem:[%s2466 + $0x6a0] sm:$0xff] %v2379
        %2680 = vst [vmem:[%s2466 + $0x6a8] sm:$0xff] %v2381
        %2681 = vst [vmem:[%s2466 + $0x6b0] sm:$0xff] %v2383
        %2682 = vst [vmem:[%s2466 + $0x6b8] sm:$0xff] %v2385
        %2683 = vst [vmem:[%s2466 + $0x6c0] sm:$0xff] %v2387
        %2684 = vst [vmem:[%s2466 + $0x6c8] sm:$0xff] %v2389
        %2685 = vst [vmem:[%s2466 + $0x6d0] sm:$0xff] %v2391
        %2686 = vst [vmem:[%s2466 + $0x6d8] sm:$0xff] %v2393
        %2687 = vst [vmem:[%s2466 + $0x6e0] sm:$0xff] %v2395
        %2688 = vst [vmem:[%s2466 + $0x6e8] sm:$0xff] %v2397
        %2689 = vst [vmem:[%s2466 + $0x6f0] sm:$0xff] %v2399
        %2690 = vst [vmem:[%s2466 + $0x6f8] sm:$0xff] %v2401
        %2691 = vst [vmem:[%s2466 + $0x700] sm:$0xff] %v2403
        %2692 = vst [vmem:[%s2466 + $0x708] sm:$0xff] %v2405
        %2693 = vst [vmem:[%s2466 + $0x710] sm:$0xff] %v2407
        %2694 = vst [vmem:[%s2466 + $0x718] sm:$0xff] %v2409
        %2695 = vst [vmem:[%s2466 + $0x720] sm:$0xff] %v2411
        %2696 = vst [vmem:[%s2466 + $0x728] sm:$0xff] %v2413
        %2697 = vst [vmem:[%s2466 + $0x730] sm:$0xff] %v2415
        %2698 = vst [vmem:[%s2466 + $0x738] sm:$0xff] %v2417
        %2699 = vst [vmem:[%s2466 + $0x740] sm:$0xff] %v2419
        %2700 = vst [vmem:[%s2466 + $0x748] sm:$0xff] %v2421
        %2701 = vst [vmem:[%s2466 + $0x750] sm:$0xff] %v2423
        %2702 = vst [vmem:[%s2466 + $0x758] sm:$0xff] %v2425
        %2703 = vst [vmem:[%s2466 + $0x760] sm:$0xff] %v2427
        %2704 = vst [vmem:[%s2466 + $0x768] sm:$0xff] %v2429
        %2705 = vst [vmem:[%s2466 + $0x770] sm:$0xff] %v2431
        %2706 = vst [vmem:[%s2466 + $0x778] sm:$0xff] %v2433
        %2707 = vst [vmem:[%s2466 + $0x780] sm:$0xff] %v2435
        %2708 = vst [vmem:[%s2466 + $0x788] sm:$0xff] %v2437
        %2709 = vst [vmem:[%s2466 + $0x790] sm:$0xff] %v2439
        %2710 = vst [vmem:[%s2466 + $0x798] sm:$0xff] %v2441
        %2711 = vst [vmem:[%s2466 + $0x7a0] sm:$0xff] %v2443
        %2712 = vst [vmem:[%s2466 + $0x7a8] sm:$0xff] %v2445
        %2713 = vst [vmem:[%s2466 + $0x7b0] sm:$0xff] %v2447
        %2714 = vst [vmem:[%s2466 + $0x7b8] sm:$0xff] %v2449
        %2715 = vst [vmem:[%s2466 + $0x7c0] sm:$0xff] %v2451
        %2716 = vst [vmem:[%s2466 + $0x7c8] sm:$0xff] %v2453
        %2717 = vst [vmem:[%s2466 + $0x7d0] sm:$0xff] %v2455
        %2718 = vst [vmem:[%s2466 + $0x7d8] sm:$0xff] %v2457
        %2719 = vst [vmem:[%s2466 + $0x7e0] sm:$0xff] %v2459
        %2720 = vst [vmem:[%s2466 + $0x7e8] sm:$0xff] %v2461
        %2721 = vst [vmem:[%s2466 + $0x7f0] sm:$0xff] %v2463
        %2722 = vst [vmem:[%s2466 + $0x7f8] sm:$0xff] %v2465
        %v2723 = vld [vmem:[#allocation11] sm:$0xff]
        %v2724 = vld [vmem:[#allocation11 + $0x8] sm:$0xff]
        %v2725 = vld [vmem:[#allocation11 + $0x10] sm:$0xff]
        %v2726 = vld [vmem:[#allocation11 + $0x18] sm:$0xff]
        %v2727 = vld [vmem:[#allocation11 + $0x20] sm:$0xff]
        %v2728 = vld [vmem:[#allocation11 + $0x28] sm:$0xff]
        %v2729 = vld [vmem:[#allocation11 + $0x30] sm:$0xff]
        %v2730 = vld [vmem:[#allocation11 + $0x38] sm:$0xff]
        %v2731 = vld [vmem:[#allocation11 + $0x40] sm:$0xff]
        %v2732 = vld [vmem:[#allocation11 + $0x48] sm:$0xff]
        %v2733 = vld [vmem:[#allocation11 + $0x50] sm:$0xff]
        %v2734 = vld [vmem:[#allocation11 + $0x58] sm:$0xff]
        %v2735 = vld [vmem:[#allocation11 + $0x60] sm:$0xff]
        %v2736 = vld [vmem:[#allocation11 + $0x68] sm:$0xff]
        %v2737 = vld [vmem:[#allocation11 + $0x70] sm:$0xff]
        %v2738 = vld [vmem:[#allocation11 + $0x78] sm:$0xff]
        %v2739 = vld [vmem:[#allocation13] sm:$0xff]
        %v2740 = vld [vmem:[#allocation13 + $0x8] sm:$0xff]
        %v2741 = vld [vmem:[#allocation13 + $0x10] sm:$0xff]
        %v2742 = vld [vmem:[#allocation13 + $0x18] sm:$0xff]
        %v2743 = vld [vmem:[#allocation13 + $0x20] sm:$0xff]
        %v2744 = vld [vmem:[#allocation13 + $0x28] sm:$0xff]
        %v2745 = vld [vmem:[#allocation13 + $0x30] sm:$0xff]
        %v2746 = vld [vmem:[#allocation13 + $0x38] sm:$0xff]
        %v2747 = vld [vmem:[#allocation13 + $0x40] sm:$0xff]
        %v2748 = vld [vmem:[#allocation13 + $0x48] sm:$0xff]
        %v2749 = vld [vmem:[#allocation13 + $0x50] sm:$0xff]
        %v2750 = vld [vmem:[#allocation13 + $0x58] sm:$0xff]
        %v2751 = vld [vmem:[#allocation13 + $0x60] sm:$0xff]
        %v2752 = vld [vmem:[#allocation13 + $0x68] sm:$0xff]
        %v2753 = vld [vmem:[#allocation13 + $0x70] sm:$0xff]
        %v2754 = vld [vmem:[#allocation13 + $0x78] sm:$0xff]
        loop: start=0, step=1, limit=2
        $region73: #{tpu_custom_call.1} parent=47 // loop_pre_header
          _
        $region74: #{tpu_custom_call.1} parent=47 // loop_header
          %s2756 = sphi 0, %s2760
          %p2757 = scmp.ge.s32.totalorder %s2756, 2
        $region75: #{tpu_custom_call.1} parent=47 // loop_header_branch
          %2759 = sbr.rel (%p2757) target = $region79
        $region76: #{tpu_custom_call.1} parent=47 // loop_body
          %s2761 = smul.u32 %s2756, 8
          %v2762 = vld [vmem:[#allocation3] sm:$0xff]
          %v2763 = vld [vmem:[#allocation3 + $0x8] sm:$0xff]
          %v2764 = vld [vmem:[#allocation3 + $0x10] sm:$0xff]
          %v2765 = vld [vmem:[#allocation3 + $0x18] sm:$0xff]
          %v2766 = vld [vmem:[#allocation3 + $0x20] sm:$0xff]
          %v2767 = vld [vmem:[#allocation3 + $0x28] sm:$0xff]
          %v2768 = vld [vmem:[#allocation3 + $0x30] sm:$0xff]
          %v2769 = vld [vmem:[#allocation3 + $0x38] sm:$0xff]
          %v2770 = vld [vmem:[#allocation3 + $0x40] sm:$0xff]
          %v2771 = vld [vmem:[#allocation3 + $0x48] sm:$0xff]
          %v2772 = vld [vmem:[#allocation3 + $0x50] sm:$0xff]
          %v2773 = vld [vmem:[#allocation3 + $0x58] sm:$0xff]
          %v2774 = vld [vmem:[#allocation3 + $0x60] sm:$0xff]
          %v2775 = vld [vmem:[#allocation3 + $0x68] sm:$0xff]
          %v2776 = vld [vmem:[#allocation3 + $0x70] sm:$0xff]
          %v2777 = vld [vmem:[#allocation3 + $0x78] sm:$0xff]
          %s2778 = smul.u32 %s2761, 128
          %s2779 = scalar_lea.vmem [#allocation2], %s2778
          %v2780 = vld [vmem:[%s2779] sm:$0xff]
          %v2781 = vld [vmem:[%s2779 + $0x8] sm:$0xff]
          %v2782 = vld [vmem:[%s2779 + $0x10] sm:$0xff]
          %v2783 = vld [vmem:[%s2779 + $0x18] sm:$0xff]
          %v2784 = vld [vmem:[%s2779 + $0x20] sm:$0xff]
          %v2785 = vld [vmem:[%s2779 + $0x28] sm:$0xff]
          %v2786 = vld [vmem:[%s2779 + $0x30] sm:$0xff]
          %v2787 = vld [vmem:[%s2779 + $0x38] sm:$0xff]
          %v2788 = vld [vmem:[%s2779 + $0x40] sm:$0xff]
          %v2789 = vld [vmem:[%s2779 + $0x48] sm:$0xff]
          %v2790 = vld [vmem:[%s2779 + $0x50] sm:$0xff]
          %v2791 = vld [vmem:[%s2779 + $0x58] sm:$0xff]
          %v2792 = vld [vmem:[%s2779 + $0x60] sm:$0xff]
          %v2793 = vld [vmem:[%s2779 + $0x68] sm:$0xff]
          %v2794 = vld [vmem:[%s2779 + $0x70] sm:$0xff]
          %v2795 = vld [vmem:[%s2779 + $0x78] sm:$0xff]
          %s2796 = scalar_lea.vmem %s357, %s2761 [#allocation5]
          %v2797 = vld [vmem:[%s2796] sm:$0x1]
          %v2798 = vperm.slane %v2797, 0
          %v2799 = vmul.f32 %v2798, %v2723
          %v2800 = vmul.f32 %v2798, %v2724
          %v2801 = vmul.f32 %v2798, %v2725
          %v2802 = vmul.f32 %v2798, %v2726
          %v2803 = vmul.f32 %v2798, %v2727
          %v2804 = vmul.f32 %v2798, %v2728
          %v2805 = vmul.f32 %v2798, %v2729
          %v2806 = vmul.f32 %v2798, %v2730
          %v2807 = vmul.f32 %v2798, %v2731
          %v2808 = vmul.f32 %v2798, %v2732
          %v2809 = vmul.f32 %v2798, %v2733
          %v2810 = vmul.f32 %v2798, %v2734
          %v2811 = vmul.f32 %v2798, %v2735
          %v2812 = vmul.f32 %v2798, %v2736
          %v2813 = vmul.f32 %v2798, %v2737
          %v2814 = vmul.f32 %v2798, %v2738
          %2815 = vmatpush.msra.mxu0 %v2777
          %2816 = vmatpush.msra.mxu0 %v2776
          %2817 = vmatpush.msra.mxu0 %v2775
          %2818 = vmatpush.msra.mxu0 %v2774
          %2819 = vmatpush.msra.mxu0 %v2773
          %2820 = vmatpush.msra.mxu0 %v2772
          %2821 = vmatpush.msra.mxu0 %v2771
          %2822 = vmatpush.msra.mxu0 %v2770
          %2823 = vmatpush.msra.mxu0 %v2769
          %2824 = vmatpush.msra.mxu0 %v2768
          %2825 = vmatpush.msra.mxu0 %v2767
          %2826 = vmatpush.msra.mxu0 %v2766
          %2827 = vmatpush.msra.mxu0 %v2765
          %2828 = vmatpush.msra.mxu0 %v2764
          %2829 = vmatpush.msra.mxu0 %v2763
          %2830 = vmatpush.msra.mxu0 %v2762
          %2831 = vmatmul.f32.gmra.mxu0 %v2780
          %v2832 = vpop.f32.mrf.mxu0
          %v2833 = vadd.f32 %v2799, %v2832
          %2834 = vmatmul.f32.gmra.mxu0 %v2781
          %v2835 = vpop.f32.mrf.mxu0
          %v2836 = vadd.f32 %v2800, %v2835
          %2837 = vmatmul.f32.gmra.mxu0 %v2782
          %v2838 = vpop.f32.mrf.mxu0
          %v2839 = vadd.f32 %v2801, %v2838
          %2840 = vmatmul.f32.gmra.mxu0 %v2783
          %v2841 = vpop.f32.mrf.mxu0
          %v2842 = vadd.f32 %v2802, %v2841
          %2843 = vmatmul.f32.gmra.mxu0 %v2784
          %v2844 = vpop.f32.mrf.mxu0
          %v2845 = vadd.f32 %v2803, %v2844
          %2846 = vmatmul.f32.gmra.mxu0 %v2785
          %v2847 = vpop.f32.mrf.mxu0
          %v2848 = vadd.f32 %v2804, %v2847
          %2849 = vmatmul.f32.gmra.mxu0 %v2786
          %v2850 = vpop.f32.mrf.mxu0
          %v2851 = vadd.f32 %v2805, %v2850
          %2852 = vmatmul.f32.gmra.mxu0 %v2787
          %v2853 = vpop.f32.mrf.mxu0
          %v2854 = vadd.f32 %v2806, %v2853
          %2855 = vmatmul.f32.gmra.mxu0 %v2788
          %v2856 = vpop.f32.mrf.mxu0
          %v2857 = vadd.f32 %v2807, %v2856
          %2858 = vmatmul.f32.gmra.mxu0 %v2789
          %v2859 = vpop.f32.mrf.mxu0
          %v2860 = vadd.f32 %v2808, %v2859
          %2861 = vmatmul.f32.gmra.mxu0 %v2790
          %v2862 = vpop.f32.mrf.mxu0
          %v2863 = vadd.f32 %v2809, %v2862
          %2864 = vmatmul.f32.gmra.mxu0 %v2791
          %v2865 = vpop.f32.mrf.mxu0
          %v2866 = vadd.f32 %v2810, %v2865
          %2867 = vmatmul.f32.gmra.mxu0 %v2792
          %v2868 = vpop.f32.mrf.mxu0
          %v2869 = vadd.f32 %v2811, %v2868
          %2870 = vmatmul.f32.gmra.mxu0 %v2793
          %v2871 = vpop.f32.mrf.mxu0
          %v2872 = vadd.f32 %v2812, %v2871
          %2873 = vmatmul.f32.gmra.mxu0 %v2794
          %v2874 = vpop.f32.mrf.mxu0
          %v2875 = vadd.f32 %v2813, %v2874
          %2876 = vmatmul.f32.gmra.mxu0 %v2795
          %v2877 = vpop.f32.mrf.mxu0
          %v2878 = vadd.f32 %v2814, %v2877
          %2879 = vdwg.mxu0
          %v2880 = vmul.f32 %v2833, %v2739
          %v2881 = vmul.f32 %v2836, %v2740
          %v2882 = vmul.f32 %v2839, %v2741
          %v2883 = vmul.f32 %v2842, %v2742
          %v2884 = vmul.f32 %v2845, %v2743
          %v2885 = vmul.f32 %v2848, %v2744
          %v2886 = vmul.f32 %v2851, %v2745
          %v2887 = vmul.f32 %v2854, %v2746
          %v2888 = vmul.f32 %v2857, %v2747
          %v2889 = vmul.f32 %v2860, %v2748
          %v2890 = vmul.f32 %v2863, %v2749
          %v2891 = vmul.f32 %v2866, %v2750
          %v2892 = vmul.f32 %v2869, %v2751
          %v2893 = vmul.f32 %v2872, %v2752
          %v2894 = vmul.f32 %v2875, %v2753
          %v2895 = vmul.f32 %v2878, %v2754
          %v2896 = vadd.f32 %v2880, %v2881
          %v2897 = vadd.f32 %v2896, %v2882
          %v2898 = vadd.f32 %v2897, %v2883
          %v2899 = vadd.f32 %v2898, %v2884
          %v2900 = vadd.f32 %v2899, %v2885
          %v2901 = vadd.f32 %v2900, %v2886
          %v2902 = vadd.f32 %v2901, %v2887
          %v2903 = vadd.f32 %v2902, %v2888
          %v2904 = vadd.f32 %v2903, %v2889
          %v2905 = vadd.f32 %v2904, %v2890
          %v2906 = vadd.f32 %v2905, %v2891
          %v2907 = vadd.f32 %v2906, %v2892
          %v2908 = vadd.f32 %v2907, %v2893
          %v2909 = vadd.f32 %v2908, %v2894
          %v2910 = vadd.f32 %v2909, %v2895
          %v2911 = vrot.slane %v2910, 4
          %v2912 = vadd.f32 %v2910, %v2911
          %v2913 = vrot.slane %v2912, 2
          %v2914 = vadd.f32 %v2912, %v2913
          %v2915 = vrot.slane %v2914, 1
          %v2916 = vadd.f32 %v2914, %v2915
          %s2917 = sadd.s32 %s2761, 1
          %s2918 = smul.u32 %s2917, 128
          %s2919 = scalar_lea.vmem [#allocation2], %s2918
          %v2920 = vld [vmem:[%s2919] sm:$0xff]
          %v2921 = vld [vmem:[%s2919 + $0x8] sm:$0xff]
          %v2922 = vld [vmem:[%s2919 + $0x10] sm:$0xff]
          %v2923 = vld [vmem:[%s2919 + $0x18] sm:$0xff]
          %v2924 = vld [vmem:[%s2919 + $0x20] sm:$0xff]
          %v2925 = vld [vmem:[%s2919 + $0x28] sm:$0xff]
          %v2926 = vld [vmem:[%s2919 + $0x30] sm:$0xff]
          %v2927 = vld [vmem:[%s2919 + $0x38] sm:$0xff]
          %v2928 = vld [vmem:[%s2919 + $0x40] sm:$0xff]
          %v2929 = vld [vmem:[%s2919 + $0x48] sm:$0xff]
          %v2930 = vld [vmem:[%s2919 + $0x50] sm:$0xff]
          %v2931 = vld [vmem:[%s2919 + $0x58] sm:$0xff]
          %v2932 = vld [vmem:[%s2919 + $0x60] sm:$0xff]
          %v2933 = vld [vmem:[%s2919 + $0x68] sm:$0xff]
          %v2934 = vld [vmem:[%s2919 + $0x70] sm:$0xff]
          %v2935 = vld [vmem:[%s2919 + $0x78] sm:$0xff]
          %s2936 = scalar_lea.vmem %s357, %s2917 [#allocation5]
          %v2937 = vld [vmem:[%s2936] sm:$0x1]
          %v2938 = vperm.slane %v2937, 0
          %v2939 = vmul.f32 %v2938, %v2723
          %v2940 = vmul.f32 %v2938, %v2724
          %v2941 = vmul.f32 %v2938, %v2725
          %v2942 = vmul.f32 %v2938, %v2726
          %v2943 = vmul.f32 %v2938, %v2727
          %v2944 = vmul.f32 %v2938, %v2728
          %v2945 = vmul.f32 %v2938, %v2729
          %v2946 = vmul.f32 %v2938, %v2730
          %v2947 = vmul.f32 %v2938, %v2731
          %v2948 = vmul.f32 %v2938, %v2732
          %v2949 = vmul.f32 %v2938, %v2733
          %v2950 = vmul.f32 %v2938, %v2734
          %v2951 = vmul.f32 %v2938, %v2735
          %v2952 = vmul.f32 %v2938, %v2736
          %v2953 = vmul.f32 %v2938, %v2737
          %v2954 = vmul.f32 %v2938, %v2738
          %2955 = vmatpush.msra.mxu0 %v2878
          %2956 = vmatpush.msra.mxu0 %v2875
          %2957 = vmatpush.msra.mxu0 %v2872
          %2958 = vmatpush.msra.mxu0 %v2869
          %2959 = vmatpush.msra.mxu0 %v2866
          %2960 = vmatpush.msra.mxu0 %v2863
          %2961 = vmatpush.msra.mxu0 %v2860
          %2962 = vmatpush.msra.mxu0 %v2857
          %2963 = vmatpush.msra.mxu0 %v2854
          %2964 = vmatpush.msra.mxu0 %v2851
          %2965 = vmatpush.msra.mxu0 %v2848
          %2966 = vmatpush.msra.mxu0 %v2845
          %2967 = vmatpush.msra.mxu0 %v2842
          %2968 = vmatpush.msra.mxu0 %v2839
          %2969 = vmatpush.msra.mxu0 %v2836
          %2970 = vmatpush.msra.mxu0 %v2833
          %2971 = vmatmul.f32.gmra.mxu0 %v2920
          %v2972 = vpop.f32.mrf.mxu0
          %v2973 = vadd.f32 %v2939, %v2972
          %2974 = vmatmul.f32.gmra.mxu0 %v2921
          %v2975 = vpop.f32.mrf.mxu0
          %v2976 = vadd.f32 %v2940, %v2975
          %2977 = vmatmul.f32.gmra.mxu0 %v2922
          %v2978 = vpop.f32.mrf.mxu0
          %v2979 = vadd.f32 %v2941, %v2978
          %2980 = vmatmul.f32.gmra.mxu0 %v2923
          %v2981 = vpop.f32.mrf.mxu0
          %v2982 = vadd.f32 %v2942, %v2981
          %2983 = vmatmul.f32.gmra.mxu0 %v2924
          %v2984 = vpop.f32.mrf.mxu0
          %v2985 = vadd.f32 %v2943, %v2984
          %2986 = vmatmul.f32.gmra.mxu0 %v2925
          %v2987 = vpop.f32.mrf.mxu0
          %v2988 = vadd.f32 %v2944, %v2987
          %2989 = vmatmul.f32.gmra.mxu0 %v2926
          %v2990 = vpop.f32.mrf.mxu0
          %v2991 = vadd.f32 %v2945, %v2990
          %2992 = vmatmul.f32.gmra.mxu0 %v2927
          %v2993 = vpop.f32.mrf.mxu0
          %v2994 = vadd.f32 %v2946, %v2993
          %2995 = vmatmul.f32.gmra.mxu0 %v2928
          %v2996 = vpop.f32.mrf.mxu0
          %v2997 = vadd.f32 %v2947, %v2996
          %2998 = vmatmul.f32.gmra.mxu0 %v2929
          %v2999 = vpop.f32.mrf.mxu0
          %v3000 = vadd.f32 %v2948, %v2999
          %3001 = vmatmul.f32.gmra.mxu0 %v2930
          %v3002 = vpop.f32.mrf.mxu0
          %v3003 = vadd.f32 %v2949, %v3002
          %3004 = vmatmul.f32.gmra.mxu0 %v2931
          %v3005 = vpop.f32.mrf.mxu0
          %v3006 = vadd.f32 %v2950, %v3005
          %3007 = vmatmul.f32.gmra.mxu0 %v2932
          %v3008 = vpop.f32.mrf.mxu0
          %v3009 = vadd.f32 %v2951, %v3008
          %3010 = vmatmul.f32.gmra.mxu0 %v2933
          %v3011 = vpop.f32.mrf.mxu0
          %v3012 = vadd.f32 %v2952, %v3011
          %3013 = vmatmul.f32.gmra.mxu0 %v2934
          %v3014 = vpop.f32.mrf.mxu0
          %v3015 = vadd.f32 %v2953, %v3014
          %3016 = vmatmul.f32.gmra.mxu0 %v2935
          %v3017 = vpop.f32.mrf.mxu0
          %v3018 = vadd.f32 %v2954, %v3017
          %3019 = vdwg.mxu0
          %v3020 = vmul.f32 %v2973, %v2739
          %v3021 = vmul.f32 %v2976, %v2740
          %v3022 = vmul.f32 %v2979, %v2741
          %v3023 = vmul.f32 %v2982, %v2742
          %v3024 = vmul.f32 %v2985, %v2743
          %v3025 = vmul.f32 %v2988, %v2744
          %v3026 = vmul.f32 %v2991, %v2745
          %v3027 = vmul.f32 %v2994, %v2746
          %v3028 = vmul.f32 %v2997, %v2747
          %v3029 = vmul.f32 %v3000, %v2748
          %v3030 = vmul.f32 %v3003, %v2749
          %v3031 = vmul.f32 %v3006, %v2750
          %v3032 = vmul.f32 %v3009, %v2751
          %v3033 = vmul.f32 %v3012, %v2752
          %v3034 = vmul.f32 %v3015, %v2753
          %v3035 = vmul.f32 %v3018, %v2754
          %v3036 = vadd.f32 %v3020, %v3021
          %v3037 = vadd.f32 %v3036, %v3022
          %v3038 = vadd.f32 %v3037, %v3023
          %v3039 = vadd.f32 %v3038, %v3024
          %v3040 = vadd.f32 %v3039, %v3025
          %v3041 = vadd.f32 %v3040, %v3026
          %v3042 = vadd.f32 %v3041, %v3027
          %v3043 = vadd.f32 %v3042, %v3028
          %v3044 = vadd.f32 %v3043, %v3029
          %v3045 = vadd.f32 %v3044, %v3030
          %v3046 = vadd.f32 %v3045, %v3031
          %v3047 = vadd.f32 %v3046, %v3032
          %v3048 = vadd.f32 %v3047, %v3033
          %v3049 = vadd.f32 %v3048, %v3034
          %v3050 = vadd.f32 %v3049, %v3035
          %v3051 = vrot.slane %v3050, 4
          %v3052 = vadd.f32 %v3050, %v3051
          %v3053 = vrot.slane %v3052, 2
          %v3054 = vadd.f32 %v3052, %v3053
          %v3055 = vrot.slane %v3054, 1
          %v3056 = vadd.f32 %v3054, %v3055
          %s3057 = sadd.s32 %s2761, 2
          %s3058 = smul.u32 %s3057, 128
          %s3059 = scalar_lea.vmem [#allocation2], %s3058
          %v3060 = vld [vmem:[%s3059] sm:$0xff]
          %v3061 = vld [vmem:[%s3059 + $0x8] sm:$0xff]
          %v3062 = vld [vmem:[%s3059 + $0x10] sm:$0xff]
          %v3063 = vld [vmem:[%s3059 + $0x18] sm:$0xff]
          %v3064 = vld [vmem:[%s3059 + $0x20] sm:$0xff]
          %v3065 = vld [vmem:[%s3059 + $0x28] sm:$0xff]
          %v3066 = vld [vmem:[%s3059 + $0x30] sm:$0xff]
          %v3067 = vld [vmem:[%s3059 + $0x38] sm:$0xff]
          %v3068 = vld [vmem:[%s3059 + $0x40] sm:$0xff]
          %v3069 = vld [vmem:[%s3059 + $0x48] sm:$0xff]
          %v3070 = vld [vmem:[%s3059 + $0x50] sm:$0xff]
          %v3071 = vld [vmem:[%s3059 + $0x58] sm:$0xff]
          %v3072 = vld [vmem:[%s3059 + $0x60] sm:$0xff]
          %v3073 = vld [vmem:[%s3059 + $0x68] sm:$0xff]
          %v3074 = vld [vmem:[%s3059 + $0x70] sm:$0xff]
          %v3075 = vld [vmem:[%s3059 + $0x78] sm:$0xff]
          %s3076 = scalar_lea.vmem %s357, %s3057 [#allocation5]
          %v3077 = vld [vmem:[%s3076] sm:$0x1]
          %v3078 = vperm.slane %v3077, 0
          %v3079 = vmul.f32 %v3078, %v2723
          %v3080 = vmul.f32 %v3078, %v2724
          %v3081 = vmul.f32 %v3078, %v2725
          %v3082 = vmul.f32 %v3078, %v2726
          %v3083 = vmul.f32 %v3078, %v2727
          %v3084 = vmul.f32 %v3078, %v2728
          %v3085 = vmul.f32 %v3078, %v2729
          %v3086 = vmul.f32 %v3078, %v2730
          %v3087 = vmul.f32 %v3078, %v2731
          %v3088 = vmul.f32 %v3078, %v2732
          %v3089 = vmul.f32 %v3078, %v2733
          %v3090 = vmul.f32 %v3078, %v2734
          %v3091 = vmul.f32 %v3078, %v2735
          %v3092 = vmul.f32 %v3078, %v2736
          %v3093 = vmul.f32 %v3078, %v2737
          %v3094 = vmul.f32 %v3078, %v2738
          %3095 = vmatpush.msra.mxu0 %v3018
          %3096 = vmatpush.msra.mxu0 %v3015
          %3097 = vmatpush.msra.mxu0 %v3012
          %3098 = vmatpush.msra.mxu0 %v3009
          %3099 = vmatpush.msra.mxu0 %v3006
          %3100 = vmatpush.msra.mxu0 %v3003
          %3101 = vmatpush.msra.mxu0 %v3000
          %3102 = vmatpush.msra.mxu0 %v2997
          %3103 = vmatpush.msra.mxu0 %v2994
          %3104 = vmatpush.msra.mxu0 %v2991
          %3105 = vmatpush.msra.mxu0 %v2988
          %3106 = vmatpush.msra.mxu0 %v2985
          %3107 = vmatpush.msra.mxu0 %v2982
          %3108 = vmatpush.msra.mxu0 %v2979
          %3109 = vmatpush.msra.mxu0 %v2976
          %3110 = vmatpush.msra.mxu0 %v2973
          %3111 = vmatmul.f32.gmra.mxu0 %v3060
          %v3112 = vpop.f32.mrf.mxu0
          %v3113 = vadd.f32 %v3079, %v3112
          %3114 = vmatmul.f32.gmra.mxu0 %v3061
          %v3115 = vpop.f32.mrf.mxu0
          %v3116 = vadd.f32 %v3080, %v3115
          %3117 = vmatmul.f32.gmra.mxu0 %v3062
          %v3118 = vpop.f32.mrf.mxu0
          %v3119 = vadd.f32 %v3081, %v3118
          %3120 = vmatmul.f32.gmra.mxu0 %v3063
          %v3121 = vpop.f32.mrf.mxu0
          %v3122 = vadd.f32 %v3082, %v3121
          %3123 = vmatmul.f32.gmra.mxu0 %v3064
          %v3124 = vpop.f32.mrf.mxu0
          %v3125 = vadd.f32 %v3083, %v3124
          %3126 = vmatmul.f32.gmra.mxu0 %v3065
          %v3127 = vpop.f32.mrf.mxu0
          %v3128 = vadd.f32 %v3084, %v3127
          %3129 = vmatmul.f32.gmra.mxu0 %v3066
          %v3130 = vpop.f32.mrf.mxu0
          %v3131 = vadd.f32 %v3085, %v3130
          %3132 = vmatmul.f32.gmra.mxu0 %v3067
          %v3133 = vpop.f32.mrf.mxu0
          %v3134 = vadd.f32 %v3086, %v3133
          %3135 = vmatmul.f32.gmra.mxu0 %v3068
          %v3136 = vpop.f32.mrf.mxu0
          %v3137 = vadd.f32 %v3087, %v3136
          %3138 = vmatmul.f32.gmra.mxu0 %v3069
          %v3139 = vpop.f32.mrf.mxu0
          %v3140 = vadd.f32 %v3088, %v3139
          %3141 = vmatmul.f32.gmra.mxu0 %v3070
          %v3142 = vpop.f32.mrf.mxu0
          %v3143 = vadd.f32 %v3089, %v3142
          %3144 = vmatmul.f32.gmra.mxu0 %v3071
          %v3145 = vpop.f32.mrf.mxu0
          %v3146 = vadd.f32 %v3090, %v3145
          %3147 = vmatmul.f32.gmra.mxu0 %v3072
          %v3148 = vpop.f32.mrf.mxu0
          %v3149 = vadd.f32 %v3091, %v3148
          %3150 = vmatmul.f32.gmra.mxu0 %v3073
          %v3151 = vpop.f32.mrf.mxu0
          %v3152 = vadd.f32 %v3092, %v3151
          %3153 = vmatmul.f32.gmra.mxu0 %v3074
          %v3154 = vpop.f32.mrf.mxu0
          %v3155 = vadd.f32 %v3093, %v3154
          %3156 = vmatmul.f32.gmra.mxu0 %v3075
          %v3157 = vpop.f32.mrf.mxu0
          %v3158 = vadd.f32 %v3094, %v3157
          %3159 = vdwg.mxu0
          %v3160 = vmul.f32 %v3113, %v2739
          %v3161 = vmul.f32 %v3116, %v2740
          %v3162 = vmul.f32 %v3119, %v2741
          %v3163 = vmul.f32 %v3122, %v2742
          %v3164 = vmul.f32 %v3125, %v2743
          %v3165 = vmul.f32 %v3128, %v2744
          %v3166 = vmul.f32 %v3131, %v2745
          %v3167 = vmul.f32 %v3134, %v2746
          %v3168 = vmul.f32 %v3137, %v2747
          %v3169 = vmul.f32 %v3140, %v2748
          %v3170 = vmul.f32 %v3143, %v2749
          %v3171 = vmul.f32 %v3146, %v2750
          %v3172 = vmul.f32 %v3149, %v2751
          %v3173 = vmul.f32 %v3152, %v2752
          %v3174 = vmul.f32 %v3155, %v2753
          %v3175 = vmul.f32 %v3158, %v2754
          %v3176 = vadd.f32 %v3160, %v3161
          %v3177 = vadd.f32 %v3176, %v3162
          %v3178 = vadd.f32 %v3177, %v3163
          %v3179 = vadd.f32 %v3178, %v3164
          %v3180 = vadd.f32 %v3179, %v3165
          %v3181 = vadd.f32 %v3180, %v3166
          %v3182 = vadd.f32 %v3181, %v3167
          %v3183 = vadd.f32 %v3182, %v3168
          %v3184 = vadd.f32 %v3183, %v3169
          %v3185 = vadd.f32 %v3184, %v3170
          %v3186 = vadd.f32 %v3185, %v3171
          %v3187 = vadd.f32 %v3186, %v3172
          %v3188 = vadd.f32 %v3187, %v3173
          %v3189 = vadd.f32 %v3188, %v3174
          %v3190 = vadd.f32 %v3189, %v3175
          %v3191 = vrot.slane %v3190, 4
          %v3192 = vadd.f32 %v3190, %v3191
          %v3193 = vrot.slane %v3192, 2
          %v3194 = vadd.f32 %v3192, %v3193
          %v3195 = vrot.slane %v3194, 1
          %v3196 = vadd.f32 %v3194, %v3195
          %s3197 = sadd.s32 %s2761, 3
          %s3198 = smul.u32 %s3197, 128
          %s3199 = scalar_lea.vmem [#allocation2], %s3198
          %v3200 = vld [vmem:[%s3199] sm:$0xff]
          %v3201 = vld [vmem:[%s3199 + $0x8] sm:$0xff]
          %v3202 = vld [vmem:[%s3199 + $0x10] sm:$0xff]
          %v3203 = vld [vmem:[%s3199 + $0x18] sm:$0xff]
          %v3204 = vld [vmem:[%s3199 + $0x20] sm:$0xff]
          %v3205 = vld [vmem:[%s3199 + $0x28] sm:$0xff]
          %v3206 = vld [vmem:[%s3199 + $0x30] sm:$0xff]
          %v3207 = vld [vmem:[%s3199 + $0x38] sm:$0xff]
          %v3208 = vld [vmem:[%s3199 + $0x40] sm:$0xff]
          %v3209 = vld [vmem:[%s3199 + $0x48] sm:$0xff]
          %v3210 = vld [vmem:[%s3199 + $0x50] sm:$0xff]
          %v3211 = vld [vmem:[%s3199 + $0x58] sm:$0xff]
          %v3212 = vld [vmem:[%s3199 + $0x60] sm:$0xff]
          %v3213 = vld [vmem:[%s3199 + $0x68] sm:$0xff]
          %v3214 = vld [vmem:[%s3199 + $0x70] sm:$0xff]
          %v3215 = vld [vmem:[%s3199 + $0x78] sm:$0xff]
          %s3216 = scalar_lea.vmem %s357, %s3197 [#allocation5]
          %v3217 = vld [vmem:[%s3216] sm:$0x1]
          %v3218 = vperm.slane %v3217, 0
          %v3219 = vmul.f32 %v3218, %v2723
          %v3220 = vmul.f32 %v3218, %v2724
          %v3221 = vmul.f32 %v3218, %v2725
          %v3222 = vmul.f32 %v3218, %v2726
          %v3223 = vmul.f32 %v3218, %v2727
          %v3224 = vmul.f32 %v3218, %v2728
          %v3225 = vmul.f32 %v3218, %v2729
          %v3226 = vmul.f32 %v3218, %v2730
          %v3227 = vmul.f32 %v3218, %v2731
          %v3228 = vmul.f32 %v3218, %v2732
          %v3229 = vmul.f32 %v3218, %v2733
          %v3230 = vmul.f32 %v3218, %v2734
          %v3231 = vmul.f32 %v3218, %v2735
          %v3232 = vmul.f32 %v3218, %v2736
          %v3233 = vmul.f32 %v3218, %v2737
          %v3234 = vmul.f32 %v3218, %v2738
          %3235 = vmatpush.msra.mxu0 %v3158
          %3236 = vmatpush.msra.mxu0 %v3155
          %3237 = vmatpush.msra.mxu0 %v3152
          %3238 = vmatpush.msra.mxu0 %v3149
          %3239 = vmatpush.msra.mxu0 %v3146
          %3240 = vmatpush.msra.mxu0 %v3143
          %3241 = vmatpush.msra.mxu0 %v3140
          %3242 = vmatpush.msra.mxu0 %v3137
          %3243 = vmatpush.msra.mxu0 %v3134
          %3244 = vmatpush.msra.mxu0 %v3131
          %3245 = vmatpush.msra.mxu0 %v3128
          %3246 = vmatpush.msra.mxu0 %v3125
          %3247 = vmatpush.msra.mxu0 %v3122
          %3248 = vmatpush.msra.mxu0 %v3119
          %3249 = vmatpush.msra.mxu0 %v3116
          %3250 = vmatpush.msra.mxu0 %v3113
          %3251 = vmatmul.f32.gmra.mxu0 %v3200
          %v3252 = vpop.f32.mrf.mxu0
          %v3253 = vadd.f32 %v3219, %v3252
          %3254 = vmatmul.f32.gmra.mxu0 %v3201
          %v3255 = vpop.f32.mrf.mxu0
          %v3256 = vadd.f32 %v3220, %v3255
          %3257 = vmatmul.f32.gmra.mxu0 %v3202
          %v3258 = vpop.f32.mrf.mxu0
          %v3259 = vadd.f32 %v3221, %v3258
          %3260 = vmatmul.f32.gmra.mxu0 %v3203
          %v3261 = vpop.f32.mrf.mxu0
          %v3262 = vadd.f32 %v3222, %v3261
          %3263 = vmatmul.f32.gmra.mxu0 %v3204
          %v3264 = vpop.f32.mrf.mxu0
          %v3265 = vadd.f32 %v3223, %v3264
          %3266 = vmatmul.f32.gmra.mxu0 %v3205
          %v3267 = vpop.f32.mrf.mxu0
          %v3268 = vadd.f32 %v3224, %v3267
          %3269 = vmatmul.f32.gmra.mxu0 %v3206
          %v3270 = vpop.f32.mrf.mxu0
          %v3271 = vadd.f32 %v3225, %v3270
          %3272 = vmatmul.f32.gmra.mxu0 %v3207
          %v3273 = vpop.f32.mrf.mxu0
          %v3274 = vadd.f32 %v3226, %v3273
          %3275 = vmatmul.f32.gmra.mxu0 %v3208
          %v3276 = vpop.f32.mrf.mxu0
          %v3277 = vadd.f32 %v3227, %v3276
          %3278 = vmatmul.f32.gmra.mxu0 %v3209
          %v3279 = vpop.f32.mrf.mxu0
          %v3280 = vadd.f32 %v3228, %v3279
          %3281 = vmatmul.f32.gmra.mxu0 %v3210
          %v3282 = vpop.f32.mrf.mxu0
          %v3283 = vadd.f32 %v3229, %v3282
          %3284 = vmatmul.f32.gmra.mxu0 %v3211
          %v3285 = vpop.f32.mrf.mxu0
          %v3286 = vadd.f32 %v3230, %v3285
          %3287 = vmatmul.f32.gmra.mxu0 %v3212
          %v3288 = vpop.f32.mrf.mxu0
          %v3289 = vadd.f32 %v3231, %v3288
          %3290 = vmatmul.f32.gmra.mxu0 %v3213
          %v3291 = vpop.f32.mrf.mxu0
          %v3292 = vadd.f32 %v3232, %v3291
          %3293 = vmatmul.f32.gmra.mxu0 %v3214
          %v3294 = vpop.f32.mrf.mxu0
          %v3295 = vadd.f32 %v3233, %v3294
          %3296 = vmatmul.f32.gmra.mxu0 %v3215
          %v3297 = vpop.f32.mrf.mxu0
          %v3298 = vadd.f32 %v3234, %v3297
          %3299 = vdwg.mxu0
          %v3300 = vmul.f32 %v3253, %v2739
          %v3301 = vmul.f32 %v3256, %v2740
          %v3302 = vmul.f32 %v3259, %v2741
          %v3303 = vmul.f32 %v3262, %v2742
          %v3304 = vmul.f32 %v3265, %v2743
          %v3305 = vmul.f32 %v3268, %v2744
          %v3306 = vmul.f32 %v3271, %v2745
          %v3307 = vmul.f32 %v3274, %v2746
          %v3308 = vmul.f32 %v3277, %v2747
          %v3309 = vmul.f32 %v3280, %v2748
          %v3310 = vmul.f32 %v3283, %v2749
          %v3311 = vmul.f32 %v3286, %v2750
          %v3312 = vmul.f32 %v3289, %v2751
          %v3313 = vmul.f32 %v3292, %v2752
          %v3314 = vmul.f32 %v3295, %v2753
          %v3315 = vmul.f32 %v3298, %v2754
          %v3316 = vadd.f32 %v3300, %v3301
          %v3317 = vadd.f32 %v3316, %v3302
          %v3318 = vadd.f32 %v3317, %v3303
          %v3319 = vadd.f32 %v3318, %v3304
          %v3320 = vadd.f32 %v3319, %v3305
          %v3321 = vadd.f32 %v3320, %v3306
          %v3322 = vadd.f32 %v3321, %v3307
          %v3323 = vadd.f32 %v3322, %v3308
          %v3324 = vadd.f32 %v3323, %v3309
          %v3325 = vadd.f32 %v3324, %v3310
          %v3326 = vadd.f32 %v3325, %v3311
          %v3327 = vadd.f32 %v3326, %v3312
          %v3328 = vadd.f32 %v3327, %v3313
          %v3329 = vadd.f32 %v3328, %v3314
          %v3330 = vadd.f32 %v3329, %v3315
          %v3331 = vrot.slane %v3330, 4
          %v3332 = vadd.f32 %v3330, %v3331
          %v3333 = vrot.slane %v3332, 2
          %v3334 = vadd.f32 %v3332, %v3333
          %v3335 = vrot.slane %v3334, 1
          %v3336 = vadd.f32 %v3334, %v3335
          %s3337 = sadd.s32 %s2761, 4
          %s3338 = smul.u32 %s3337, 128
          %s3339 = scalar_lea.vmem [#allocation2], %s3338
          %v3340 = vld [vmem:[%s3339] sm:$0xff]
          %v3341 = vld [vmem:[%s3339 + $0x8] sm:$0xff]
          %v3342 = vld [vmem:[%s3339 + $0x10] sm:$0xff]
          %v3343 = vld [vmem:[%s3339 + $0x18] sm:$0xff]
          %v3344 = vld [vmem:[%s3339 + $0x20] sm:$0xff]
          %v3345 = vld [vmem:[%s3339 + $0x28] sm:$0xff]
          %v3346 = vld [vmem:[%s3339 + $0x30] sm:$0xff]
          %v3347 = vld [vmem:[%s3339 + $0x38] sm:$0xff]
          %v3348 = vld [vmem:[%s3339 + $0x40] sm:$0xff]
          %v3349 = vld [vmem:[%s3339 + $0x48] sm:$0xff]
          %v3350 = vld [vmem:[%s3339 + $0x50] sm:$0xff]
          %v3351 = vld [vmem:[%s3339 + $0x58] sm:$0xff]
          %v3352 = vld [vmem:[%s3339 + $0x60] sm:$0xff]
          %v3353 = vld [vmem:[%s3339 + $0x68] sm:$0xff]
          %v3354 = vld [vmem:[%s3339 + $0x70] sm:$0xff]
          %v3355 = vld [vmem:[%s3339 + $0x78] sm:$0xff]
          %s3356 = scalar_lea.vmem %s357, %s3337 [#allocation5]
          %v3357 = vld [vmem:[%s3356] sm:$0x1]
          %v3358 = vperm.slane %v3357, 0
          %v3359 = vmul.f32 %v3358, %v2723
          %v3360 = vmul.f32 %v3358, %v2724
          %v3361 = vmul.f32 %v3358, %v2725
          %v3362 = vmul.f32 %v3358, %v2726
          %v3363 = vmul.f32 %v3358, %v2727
          %v3364 = vmul.f32 %v3358, %v2728
          %v3365 = vmul.f32 %v3358, %v2729
          %v3366 = vmul.f32 %v3358, %v2730
          %v3367 = vmul.f32 %v3358, %v2731
          %v3368 = vmul.f32 %v3358, %v2732
          %v3369 = vmul.f32 %v3358, %v2733
          %v3370 = vmul.f32 %v3358, %v2734
          %v3371 = vmul.f32 %v3358, %v2735
          %v3372 = vmul.f32 %v3358, %v2736
          %v3373 = vmul.f32 %v3358, %v2737
          %v3374 = vmul.f32 %v3358, %v2738
          %3375 = vmatpush.msra.mxu0 %v3298
          %3376 = vmatpush.msra.mxu0 %v3295
          %3377 = vmatpush.msra.mxu0 %v3292
          %3378 = vmatpush.msra.mxu0 %v3289
          %3379 = vmatpush.msra.mxu0 %v3286
          %3380 = vmatpush.msra.mxu0 %v3283
          %3381 = vmatpush.msra.mxu0 %v3280
          %3382 = vmatpush.msra.mxu0 %v3277
          %3383 = vmatpush.msra.mxu0 %v3274
          %3384 = vmatpush.msra.mxu0 %v3271
          %3385 = vmatpush.msra.mxu0 %v3268
          %3386 = vmatpush.msra.mxu0 %v3265
          %3387 = vmatpush.msra.mxu0 %v3262
          %3388 = vmatpush.msra.mxu0 %v3259
          %3389 = vmatpush.msra.mxu0 %v3256
          %3390 = vmatpush.msra.mxu0 %v3253
          %3391 = vmatmul.f32.gmra.mxu0 %v3340
          %v3392 = vpop.f32.mrf.mxu0
          %v3393 = vadd.f32 %v3359, %v3392
          %3394 = vmatmul.f32.gmra.mxu0 %v3341
          %v3395 = vpop.f32.mrf.mxu0
          %v3396 = vadd.f32 %v3360, %v3395
          %3397 = vmatmul.f32.gmra.mxu0 %v3342
          %v3398 = vpop.f32.mrf.mxu0
          %v3399 = vadd.f32 %v3361, %v3398
          %3400 = vmatmul.f32.gmra.mxu0 %v3343
          %v3401 = vpop.f32.mrf.mxu0
          %v3402 = vadd.f32 %v3362, %v3401
          %3403 = vmatmul.f32.gmra.mxu0 %v3344
          %v3404 = vpop.f32.mrf.mxu0
          %v3405 = vadd.f32 %v3363, %v3404
          %3406 = vmatmul.f32.gmra.mxu0 %v3345
          %v3407 = vpop.f32.mrf.mxu0
          %v3408 = vadd.f32 %v3364, %v3407
          %3409 = vmatmul.f32.gmra.mxu0 %v3346
          %v3410 = vpop.f32.mrf.mxu0
          %v3411 = vadd.f32 %v3365, %v3410
          %3412 = vmatmul.f32.gmra.mxu0 %v3347
          %v3413 = vpop.f32.mrf.mxu0
          %v3414 = vadd.f32 %v3366, %v3413
          %3415 = vmatmul.f32.gmra.mxu0 %v3348
          %v3416 = vpop.f32.mrf.mxu0
          %v3417 = vadd.f32 %v3367, %v3416
          %3418 = vmatmul.f32.gmra.mxu0 %v3349
          %v3419 = vpop.f32.mrf.mxu0
          %v3420 = vadd.f32 %v3368, %v3419
          %3421 = vmatmul.f32.gmra.mxu0 %v3350
          %v3422 = vpop.f32.mrf.mxu0
          %v3423 = vadd.f32 %v3369, %v3422
          %3424 = vmatmul.f32.gmra.mxu0 %v3351
          %v3425 = vpop.f32.mrf.mxu0
          %v3426 = vadd.f32 %v3370, %v3425
          %3427 = vmatmul.f32.gmra.mxu0 %v3352
          %v3428 = vpop.f32.mrf.mxu0
          %v3429 = vadd.f32 %v3371, %v3428
          %3430 = vmatmul.f32.gmra.mxu0 %v3353
          %v3431 = vpop.f32.mrf.mxu0
          %v3432 = vadd.f32 %v3372, %v3431
          %3433 = vmatmul.f32.gmra.mxu0 %v3354
          %v3434 = vpop.f32.mrf.mxu0
          %v3435 = vadd.f32 %v3373, %v3434
          %3436 = vmatmul.f32.gmra.mxu0 %v3355
          %v3437 = vpop.f32.mrf.mxu0
          %v3438 = vadd.f32 %v3374, %v3437
          %3439 = vdwg.mxu0
          %v3440 = vmul.f32 %v3393, %v2739
          %v3441 = vmul.f32 %v3396, %v2740
          %v3442 = vmul.f32 %v3399, %v2741
          %v3443 = vmul.f32 %v3402, %v2742
          %v3444 = vmul.f32 %v3405, %v2743
          %v3445 = vmul.f32 %v3408, %v2744
          %v3446 = vmul.f32 %v3411, %v2745
          %v3447 = vmul.f32 %v3414, %v2746
          %v3448 = vmul.f32 %v3417, %v2747
          %v3449 = vmul.f32 %v3420, %v2748
          %v3450 = vmul.f32 %v3423, %v2749
          %v3451 = vmul.f32 %v3426, %v2750
          %v3452 = vmul.f32 %v3429, %v2751
          %v3453 = vmul.f32 %v3432, %v2752
          %v3454 = vmul.f32 %v3435, %v2753
          %v3455 = vmul.f32 %v3438, %v2754
          %v3456 = vadd.f32 %v3440, %v3441
          %v3457 = vadd.f32 %v3456, %v3442
          %v3458 = vadd.f32 %v3457, %v3443
          %v3459 = vadd.f32 %v3458, %v3444
          %v3460 = vadd.f32 %v3459, %v3445
          %v3461 = vadd.f32 %v3460, %v3446
          %v3462 = vadd.f32 %v3461, %v3447
          %v3463 = vadd.f32 %v3462, %v3448
          %v3464 = vadd.f32 %v3463, %v3449
          %v3465 = vadd.f32 %v3464, %v3450
          %v3466 = vadd.f32 %v3465, %v3451
          %v3467 = vadd.f32 %v3466, %v3452
          %v3468 = vadd.f32 %v3467, %v3453
          %v3469 = vadd.f32 %v3468, %v3454
          %v3470 = vadd.f32 %v3469, %v3455
          %v3471 = vrot.slane %v3470, 4
          %v3472 = vadd.f32 %v3470, %v3471
          %v3473 = vrot.slane %v3472, 2
          %v3474 = vadd.f32 %v3472, %v3473
          %v3475 = vrot.slane %v3474, 1
          %v3476 = vadd.f32 %v3474, %v3475
          %s3477 = sadd.s32 %s2761, 5
          %s3478 = smul.u32 %s3477, 128
          %s3479 = scalar_lea.vmem [#allocation2], %s3478
          %v3480 = vld [vmem:[%s3479] sm:$0xff]
          %v3481 = vld [vmem:[%s3479 + $0x8] sm:$0xff]
          %v3482 = vld [vmem:[%s3479 + $0x10] sm:$0xff]
          %v3483 = vld [vmem:[%s3479 + $0x18] sm:$0xff]
          %v3484 = vld [vmem:[%s3479 + $0x20] sm:$0xff]
          %v3485 = vld [vmem:[%s3479 + $0x28] sm:$0xff]
          %v3486 = vld [vmem:[%s3479 + $0x30] sm:$0xff]
          %v3487 = vld [vmem:[%s3479 + $0x38] sm:$0xff]
          %v3488 = vld [vmem:[%s3479 + $0x40] sm:$0xff]
          %v3489 = vld [vmem:[%s3479 + $0x48] sm:$0xff]
          %v3490 = vld [vmem:[%s3479 + $0x50] sm:$0xff]
          %v3491 = vld [vmem:[%s3479 + $0x58] sm:$0xff]
          %v3492 = vld [vmem:[%s3479 + $0x60] sm:$0xff]
          %v3493 = vld [vmem:[%s3479 + $0x68] sm:$0xff]
          %v3494 = vld [vmem:[%s3479 + $0x70] sm:$0xff]
          %v3495 = vld [vmem:[%s3479 + $0x78] sm:$0xff]
          %s3496 = scalar_lea.vmem %s357, %s3477 [#allocation5]
          %v3497 = vld [vmem:[%s3496] sm:$0x1]
          %v3498 = vperm.slane %v3497, 0
          %v3499 = vmul.f32 %v3498, %v2723
          %v3500 = vmul.f32 %v3498, %v2724
          %v3501 = vmul.f32 %v3498, %v2725
          %v3502 = vmul.f32 %v3498, %v2726
          %v3503 = vmul.f32 %v3498, %v2727
          %v3504 = vmul.f32 %v3498, %v2728
          %v3505 = vmul.f32 %v3498, %v2729
          %v3506 = vmul.f32 %v3498, %v2730
          %v3507 = vmul.f32 %v3498, %v2731
          %v3508 = vmul.f32 %v3498, %v2732
          %v3509 = vmul.f32 %v3498, %v2733
          %v3510 = vmul.f32 %v3498, %v2734
          %v3511 = vmul.f32 %v3498, %v2735
          %v3512 = vmul.f32 %v3498, %v2736
          %v3513 = vmul.f32 %v3498, %v2737
          %v3514 = vmul.f32 %v3498, %v2738
          %3515 = vmatpush.msra.mxu0 %v3438
          %3516 = vmatpush.msra.mxu0 %v3435
          %3517 = vmatpush.msra.mxu0 %v3432
          %3518 = vmatpush.msra.mxu0 %v3429
          %3519 = vmatpush.msra.mxu0 %v3426
          %3520 = vmatpush.msra.mxu0 %v3423
          %3521 = vmatpush.msra.mxu0 %v3420
          %3522 = vmatpush.msra.mxu0 %v3417
          %3523 = vmatpush.msra.mxu0 %v3414
          %3524 = vmatpush.msra.mxu0 %v3411
          %3525 = vmatpush.msra.mxu0 %v3408
          %3526 = vmatpush.msra.mxu0 %v3405
          %3527 = vmatpush.msra.mxu0 %v3402
          %3528 = vmatpush.msra.mxu0 %v3399
          %3529 = vmatpush.msra.mxu0 %v3396
          %3530 = vmatpush.msra.mxu0 %v3393
          %3531 = vmatmul.f32.gmra.mxu0 %v3480
          %v3532 = vpop.f32.mrf.mxu0
          %v3533 = vadd.f32 %v3499, %v3532
          %3534 = vmatmul.f32.gmra.mxu0 %v3481
          %v3535 = vpop.f32.mrf.mxu0
          %v3536 = vadd.f32 %v3500, %v3535
          %3537 = vmatmul.f32.gmra.mxu0 %v3482
          %v3538 = vpop.f32.mrf.mxu0
          %v3539 = vadd.f32 %v3501, %v3538
          %3540 = vmatmul.f32.gmra.mxu0 %v3483
          %v3541 = vpop.f32.mrf.mxu0
          %v3542 = vadd.f32 %v3502, %v3541
          %3543 = vmatmul.f32.gmra.mxu0 %v3484
          %v3544 = vpop.f32.mrf.mxu0
          %v3545 = vadd.f32 %v3503, %v3544
          %3546 = vmatmul.f32.gmra.mxu0 %v3485
          %v3547 = vpop.f32.mrf.mxu0
          %v3548 = vadd.f32 %v3504, %v3547
          %3549 = vmatmul.f32.gmra.mxu0 %v3486
          %v3550 = vpop.f32.mrf.mxu0
          %v3551 = vadd.f32 %v3505, %v3550
          %3552 = vmatmul.f32.gmra.mxu0 %v3487
          %v3553 = vpop.f32.mrf.mxu0
          %v3554 = vadd.f32 %v3506, %v3553
          %3555 = vmatmul.f32.gmra.mxu0 %v3488
          %v3556 = vpop.f32.mrf.mxu0
          %v3557 = vadd.f32 %v3507, %v3556
          %3558 = vmatmul.f32.gmra.mxu0 %v3489
          %v3559 = vpop.f32.mrf.mxu0
          %v3560 = vadd.f32 %v3508, %v3559
          %3561 = vmatmul.f32.gmra.mxu0 %v3490
          %v3562 = vpop.f32.mrf.mxu0
          %v3563 = vadd.f32 %v3509, %v3562
          %3564 = vmatmul.f32.gmra.mxu0 %v3491
          %v3565 = vpop.f32.mrf.mxu0
          %v3566 = vadd.f32 %v3510, %v3565
          %3567 = vmatmul.f32.gmra.mxu0 %v3492
          %v3568 = vpop.f32.mrf.mxu0
          %v3569 = vadd.f32 %v3511, %v3568
          %3570 = vmatmul.f32.gmra.mxu0 %v3493
          %v3571 = vpop.f32.mrf.mxu0
          %v3572 = vadd.f32 %v3512, %v3571
          %3573 = vmatmul.f32.gmra.mxu0 %v3494
          %v3574 = vpop.f32.mrf.mxu0
          %v3575 = vadd.f32 %v3513, %v3574
          %3576 = vmatmul.f32.gmra.mxu0 %v3495
          %v3577 = vpop.f32.mrf.mxu0
          %v3578 = vadd.f32 %v3514, %v3577
          %3579 = vdwg.mxu0
          %v3580 = vmul.f32 %v3533, %v2739
          %v3581 = vmul.f32 %v3536, %v2740
          %v3582 = vmul.f32 %v3539, %v2741
          %v3583 = vmul.f32 %v3542, %v2742
          %v3584 = vmul.f32 %v3545, %v2743
          %v3585 = vmul.f32 %v3548, %v2744
          %v3586 = vmul.f32 %v3551, %v2745
          %v3587 = vmul.f32 %v3554, %v2746
          %v3588 = vmul.f32 %v3557, %v2747
          %v3589 = vmul.f32 %v3560, %v2748
          %v3590 = vmul.f32 %v3563, %v2749
          %v3591 = vmul.f32 %v3566, %v2750
          %v3592 = vmul.f32 %v3569, %v2751
          %v3593 = vmul.f32 %v3572, %v2752
          %v3594 = vmul.f32 %v3575, %v2753
          %v3595 = vmul.f32 %v3578, %v2754
          %v3596 = vadd.f32 %v3580, %v3581
          %v3597 = vadd.f32 %v3596, %v3582
          %v3598 = vadd.f32 %v3597, %v3583
          %v3599 = vadd.f32 %v3598, %v3584
          %v3600 = vadd.f32 %v3599, %v3585
          %v3601 = vadd.f32 %v3600, %v3586
          %v3602 = vadd.f32 %v3601, %v3587
          %v3603 = vadd.f32 %v3602, %v3588
          %v3604 = vadd.f32 %v3603, %v3589
          %v3605 = vadd.f32 %v3604, %v3590
          %v3606 = vadd.f32 %v3605, %v3591
          %v3607 = vadd.f32 %v3606, %v3592
          %v3608 = vadd.f32 %v3607, %v3593
          %v3609 = vadd.f32 %v3608, %v3594
          %v3610 = vadd.f32 %v3609, %v3595
          %v3611 = vrot.slane %v3610, 4
          %v3612 = vadd.f32 %v3610, %v3611
          %v3613 = vrot.slane %v3612, 2
          %v3614 = vadd.f32 %v3612, %v3613
          %v3615 = vrot.slane %v3614, 1
          %v3616 = vadd.f32 %v3614, %v3615
          %s3617 = sadd.s32 %s2761, 6
          %s3618 = smul.u32 %s3617, 128
          %s3619 = scalar_lea.vmem [#allocation2], %s3618
          %v3620 = vld [vmem:[%s3619] sm:$0xff]
          %v3621 = vld [vmem:[%s3619 + $0x8] sm:$0xff]
          %v3622 = vld [vmem:[%s3619 + $0x10] sm:$0xff]
          %v3623 = vld [vmem:[%s3619 + $0x18] sm:$0xff]
          %v3624 = vld [vmem:[%s3619 + $0x20] sm:$0xff]
          %v3625 = vld [vmem:[%s3619 + $0x28] sm:$0xff]
          %v3626 = vld [vmem:[%s3619 + $0x30] sm:$0xff]
          %v3627 = vld [vmem:[%s3619 + $0x38] sm:$0xff]
          %v3628 = vld [vmem:[%s3619 + $0x40] sm:$0xff]
          %v3629 = vld [vmem:[%s3619 + $0x48] sm:$0xff]
          %v3630 = vld [vmem:[%s3619 + $0x50] sm:$0xff]
          %v3631 = vld [vmem:[%s3619 + $0x58] sm:$0xff]
          %v3632 = vld [vmem:[%s3619 + $0x60] sm:$0xff]
          %v3633 = vld [vmem:[%s3619 + $0x68] sm:$0xff]
          %v3634 = vld [vmem:[%s3619 + $0x70] sm:$0xff]
          %v3635 = vld [vmem:[%s3619 + $0x78] sm:$0xff]
          %s3636 = scalar_lea.vmem %s357, %s3617 [#allocation5]
          %v3637 = vld [vmem:[%s3636] sm:$0x1]
          %v3638 = vperm.slane %v3637, 0
          %v3639 = vmul.f32 %v3638, %v2723
          %v3640 = vmul.f32 %v3638, %v2724
          %v3641 = vmul.f32 %v3638, %v2725
          %v3642 = vmul.f32 %v3638, %v2726
          %v3643 = vmul.f32 %v3638, %v2727
          %v3644 = vmul.f32 %v3638, %v2728
          %v3645 = vmul.f32 %v3638, %v2729
          %v3646 = vmul.f32 %v3638, %v2730
          %v3647 = vmul.f32 %v3638, %v2731
          %v3648 = vmul.f32 %v3638, %v2732
          %v3649 = vmul.f32 %v3638, %v2733
          %v3650 = vmul.f32 %v3638, %v2734
          %v3651 = vmul.f32 %v3638, %v2735
          %v3652 = vmul.f32 %v3638, %v2736
          %v3653 = vmul.f32 %v3638, %v2737
          %v3654 = vmul.f32 %v3638, %v2738
          %3655 = vmatpush.msra.mxu0 %v3578
          %3656 = vmatpush.msra.mxu0 %v3575
          %3657 = vmatpush.msra.mxu0 %v3572
          %3658 = vmatpush.msra.mxu0 %v3569
          %3659 = vmatpush.msra.mxu0 %v3566
          %3660 = vmatpush.msra.mxu0 %v3563
          %3661 = vmatpush.msra.mxu0 %v3560
          %3662 = vmatpush.msra.mxu0 %v3557
          %3663 = vmatpush.msra.mxu0 %v3554
          %3664 = vmatpush.msra.mxu0 %v3551
          %3665 = vmatpush.msra.mxu0 %v3548
          %3666 = vmatpush.msra.mxu0 %v3545
          %3667 = vmatpush.msra.mxu0 %v3542
          %3668 = vmatpush.msra.mxu0 %v3539
          %3669 = vmatpush.msra.mxu0 %v3536
          %3670 = vmatpush.msra.mxu0 %v3533
          %3671 = vmatmul.f32.gmra.mxu0 %v3620
          %v3672 = vpop.f32.mrf.mxu0
          %v3673 = vadd.f32 %v3639, %v3672
          %3674 = vmatmul.f32.gmra.mxu0 %v3621
          %v3675 = vpop.f32.mrf.mxu0
          %v3676 = vadd.f32 %v3640, %v3675
          %3677 = vmatmul.f32.gmra.mxu0 %v3622
          %v3678 = vpop.f32.mrf.mxu0
          %v3679 = vadd.f32 %v3641, %v3678
          %3680 = vmatmul.f32.gmra.mxu0 %v3623
          %v3681 = vpop.f32.mrf.mxu0
          %v3682 = vadd.f32 %v3642, %v3681
          %3683 = vmatmul.f32.gmra.mxu0 %v3624
          %v3684 = vpop.f32.mrf.mxu0
          %v3685 = vadd.f32 %v3643, %v3684
          %3686 = vmatmul.f32.gmra.mxu0 %v3625
          %v3687 = vpop.f32.mrf.mxu0
          %v3688 = vadd.f32 %v3644, %v3687
          %3689 = vmatmul.f32.gmra.mxu0 %v3626
          %v3690 = vpop.f32.mrf.mxu0
          %v3691 = vadd.f32 %v3645, %v3690
          %3692 = vmatmul.f32.gmra.mxu0 %v3627
          %v3693 = vpop.f32.mrf.mxu0
          %v3694 = vadd.f32 %v3646, %v3693
          %3695 = vmatmul.f32.gmra.mxu0 %v3628
          %v3696 = vpop.f32.mrf.mxu0
          %v3697 = vadd.f32 %v3647, %v3696
          %3698 = vmatmul.f32.gmra.mxu0 %v3629
          %v3699 = vpop.f32.mrf.mxu0
          %v3700 = vadd.f32 %v3648, %v3699
          %3701 = vmatmul.f32.gmra.mxu0 %v3630
          %v3702 = vpop.f32.mrf.mxu0
          %v3703 = vadd.f32 %v3649, %v3702
          %3704 = vmatmul.f32.gmra.mxu0 %v3631
          %v3705 = vpop.f32.mrf.mxu0
          %v3706 = vadd.f32 %v3650, %v3705
          %3707 = vmatmul.f32.gmra.mxu0 %v3632
          %v3708 = vpop.f32.mrf.mxu0
          %v3709 = vadd.f32 %v3651, %v3708
          %3710 = vmatmul.f32.gmra.mxu0 %v3633
          %v3711 = vpop.f32.mrf.mxu0
          %v3712 = vadd.f32 %v3652, %v3711
          %3713 = vmatmul.f32.gmra.mxu0 %v3634
          %v3714 = vpop.f32.mrf.mxu0
          %v3715 = vadd.f32 %v3653, %v3714
          %3716 = vmatmul.f32.gmra.mxu0 %v3635
          %v3717 = vpop.f32.mrf.mxu0
          %v3718 = vadd.f32 %v3654, %v3717
          %3719 = vdwg.mxu0
          %v3720 = vmul.f32 %v3673, %v2739
          %v3721 = vmul.f32 %v3676, %v2740
          %v3722 = vmul.f32 %v3679, %v2741
          %v3723 = vmul.f32 %v3682, %v2742
          %v3724 = vmul.f32 %v3685, %v2743
          %v3725 = vmul.f32 %v3688, %v2744
          %v3726 = vmul.f32 %v3691, %v2745
          %v3727 = vmul.f32 %v3694, %v2746
          %v3728 = vmul.f32 %v3697, %v2747
          %v3729 = vmul.f32 %v3700, %v2748
          %v3730 = vmul.f32 %v3703, %v2749
          %v3731 = vmul.f32 %v3706, %v2750
          %v3732 = vmul.f32 %v3709, %v2751
          %v3733 = vmul.f32 %v3712, %v2752
          %v3734 = vmul.f32 %v3715, %v2753
          %v3735 = vmul.f32 %v3718, %v2754
          %v3736 = vadd.f32 %v3720, %v3721
          %v3737 = vadd.f32 %v3736, %v3722
          %v3738 = vadd.f32 %v3737, %v3723
          %v3739 = vadd.f32 %v3738, %v3724
          %v3740 = vadd.f32 %v3739, %v3725
          %v3741 = vadd.f32 %v3740, %v3726
          %v3742 = vadd.f32 %v3741, %v3727
          %v3743 = vadd.f32 %v3742, %v3728
          %v3744 = vadd.f32 %v3743, %v3729
          %v3745 = vadd.f32 %v3744, %v3730
          %v3746 = vadd.f32 %v3745, %v3731
          %v3747 = vadd.f32 %v3746, %v3732
          %v3748 = vadd.f32 %v3747, %v3733
          %v3749 = vadd.f32 %v3748, %v3734
          %v3750 = vadd.f32 %v3749, %v3735
          %v3751 = vrot.slane %v3750, 4
          %v3752 = vadd.f32 %v3750, %v3751
          %v3753 = vrot.slane %v3752, 2
          %v3754 = vadd.f32 %v3752, %v3753
          %v3755 = vrot.slane %v3754, 1
          %v3756 = vadd.f32 %v3754, %v3755
          %s3757 = sadd.s32 %s2761, 7
          %s3758 = smul.u32 %s3757, 128
          %s3759 = scalar_lea.vmem [#allocation2], %s3758
          %v3760 = vld [vmem:[%s3759] sm:$0xff]
          %v3761 = vld [vmem:[%s3759 + $0x8] sm:$0xff]
          %v3762 = vld [vmem:[%s3759 + $0x10] sm:$0xff]
          %v3763 = vld [vmem:[%s3759 + $0x18] sm:$0xff]
          %v3764 = vld [vmem:[%s3759 + $0x20] sm:$0xff]
          %v3765 = vld [vmem:[%s3759 + $0x28] sm:$0xff]
          %v3766 = vld [vmem:[%s3759 + $0x30] sm:$0xff]
          %v3767 = vld [vmem:[%s3759 + $0x38] sm:$0xff]
          %v3768 = vld [vmem:[%s3759 + $0x40] sm:$0xff]
          %v3769 = vld [vmem:[%s3759 + $0x48] sm:$0xff]
          %v3770 = vld [vmem:[%s3759 + $0x50] sm:$0xff]
          %v3771 = vld [vmem:[%s3759 + $0x58] sm:$0xff]
          %v3772 = vld [vmem:[%s3759 + $0x60] sm:$0xff]
          %v3773 = vld [vmem:[%s3759 + $0x68] sm:$0xff]
          %v3774 = vld [vmem:[%s3759 + $0x70] sm:$0xff]
          %v3775 = vld [vmem:[%s3759 + $0x78] sm:$0xff]
          %s3776 = scalar_lea.vmem %s357, %s3757 [#allocation5]
          %v3777 = vld [vmem:[%s3776] sm:$0x1]
          %v3778 = vperm.slane %v3777, 0
          %v3779 = vmul.f32 %v3778, %v2723
          %v3780 = vmul.f32 %v3778, %v2724
          %v3781 = vmul.f32 %v3778, %v2725
          %v3782 = vmul.f32 %v3778, %v2726
          %v3783 = vmul.f32 %v3778, %v2727
          %v3784 = vmul.f32 %v3778, %v2728
          %v3785 = vmul.f32 %v3778, %v2729
          %v3786 = vmul.f32 %v3778, %v2730
          %v3787 = vmul.f32 %v3778, %v2731
          %v3788 = vmul.f32 %v3778, %v2732
          %v3789 = vmul.f32 %v3778, %v2733
          %v3790 = vmul.f32 %v3778, %v2734
          %v3791 = vmul.f32 %v3778, %v2735
          %v3792 = vmul.f32 %v3778, %v2736
          %v3793 = vmul.f32 %v3778, %v2737
          %v3794 = vmul.f32 %v3778, %v2738
          %3795 = vmatpush.msra.mxu0 %v3718
          %3796 = vmatpush.msra.mxu0 %v3715
          %3797 = vmatpush.msra.mxu0 %v3712
          %3798 = vmatpush.msra.mxu0 %v3709
          %3799 = vmatpush.msra.mxu0 %v3706
          %3800 = vmatpush.msra.mxu0 %v3703
          %3801 = vmatpush.msra.mxu0 %v3700
          %3802 = vmatpush.msra.mxu0 %v3697
          %3803 = vmatpush.msra.mxu0 %v3694
          %3804 = vmatpush.msra.mxu0 %v3691
          %3805 = vmatpush.msra.mxu0 %v3688
          %3806 = vmatpush.msra.mxu0 %v3685
          %3807 = vmatpush.msra.mxu0 %v3682
          %3808 = vmatpush.msra.mxu0 %v3679
          %3809 = vmatpush.msra.mxu0 %v3676
          %3810 = vmatpush.msra.mxu0 %v3673
          %3811 = vmatmul.f32.gmra.mxu0 %v3760
          %v3812 = vpop.f32.mrf.mxu0
          %v3813 = vadd.f32 %v3779, %v3812
          %3814 = vmatmul.f32.gmra.mxu0 %v3761
          %v3815 = vpop.f32.mrf.mxu0
          %v3816 = vadd.f32 %v3780, %v3815
          %3817 = vmatmul.f32.gmra.mxu0 %v3762
          %v3818 = vpop.f32.mrf.mxu0
          %v3819 = vadd.f32 %v3781, %v3818
          %3820 = vmatmul.f32.gmra.mxu0 %v3763
          %v3821 = vpop.f32.mrf.mxu0
          %v3822 = vadd.f32 %v3782, %v3821
          %3823 = vmatmul.f32.gmra.mxu0 %v3764
          %v3824 = vpop.f32.mrf.mxu0
          %v3825 = vadd.f32 %v3783, %v3824
          %3826 = vmatmul.f32.gmra.mxu0 %v3765
          %v3827 = vpop.f32.mrf.mxu0
          %v3828 = vadd.f32 %v3784, %v3827
          %3829 = vmatmul.f32.gmra.mxu0 %v3766
          %v3830 = vpop.f32.mrf.mxu0
          %v3831 = vadd.f32 %v3785, %v3830
          %3832 = vmatmul.f32.gmra.mxu0 %v3767
          %v3833 = vpop.f32.mrf.mxu0
          %v3834 = vadd.f32 %v3786, %v3833
          %3835 = vmatmul.f32.gmra.mxu0 %v3768
          %v3836 = vpop.f32.mrf.mxu0
          %v3837 = vadd.f32 %v3787, %v3836
          %3838 = vmatmul.f32.gmra.mxu0 %v3769
          %v3839 = vpop.f32.mrf.mxu0
          %v3840 = vadd.f32 %v3788, %v3839
          %3841 = vmatmul.f32.gmra.mxu0 %v3770
          %v3842 = vpop.f32.mrf.mxu0
          %v3843 = vadd.f32 %v3789, %v3842
          %3844 = vmatmul.f32.gmra.mxu0 %v3771
          %v3845 = vpop.f32.mrf.mxu0
          %v3846 = vadd.f32 %v3790, %v3845
          %3847 = vmatmul.f32.gmra.mxu0 %v3772
          %v3848 = vpop.f32.mrf.mxu0
          %v3849 = vadd.f32 %v3791, %v3848
          %3850 = vmatmul.f32.gmra.mxu0 %v3773
          %v3851 = vpop.f32.mrf.mxu0
          %v3852 = vadd.f32 %v3792, %v3851
          %3853 = vmatmul.f32.gmra.mxu0 %v3774
          %v3854 = vpop.f32.mrf.mxu0
          %v3855 = vadd.f32 %v3793, %v3854
          %3856 = vmatmul.f32.gmra.mxu0 %v3775
          %v3857 = vpop.f32.mrf.mxu0
          %v3858 = vadd.f32 %v3794, %v3857
          %3859 = vdwg.mxu0
          %v3860 = vmul.f32 %v3813, %v2739
          %v3861 = vmul.f32 %v3816, %v2740
          %v3862 = vmul.f32 %v3819, %v2741
          %v3863 = vmul.f32 %v3822, %v2742
          %v3864 = vmul.f32 %v3825, %v2743
          %v3865 = vmul.f32 %v3828, %v2744
          %v3866 = vmul.f32 %v3831, %v2745
          %v3867 = vmul.f32 %v3834, %v2746
          %v3868 = vmul.f32 %v3837, %v2747
          %v3869 = vmul.f32 %v3840, %v2748
          %v3870 = vmul.f32 %v3843, %v2749
          %v3871 = vmul.f32 %v3846, %v2750
          %v3872 = vmul.f32 %v3849, %v2751
          %v3873 = vmul.f32 %v3852, %v2752
          %v3874 = vmul.f32 %v3855, %v2753
          %v3875 = vmul.f32 %v3858, %v2754
          %v3876 = vadd.f32 %v3860, %v3861
          %v3877 = vadd.f32 %v3876, %v3862
          %v3878 = vadd.f32 %v3877, %v3863
          %v3879 = vadd.f32 %v3878, %v3864
          %v3880 = vadd.f32 %v3879, %v3865
          %v3881 = vadd.f32 %v3880, %v3866
          %v3882 = vadd.f32 %v3881, %v3867
          %v3883 = vadd.f32 %v3882, %v3868
          %v3884 = vadd.f32 %v3883, %v3869
          %v3885 = vadd.f32 %v3884, %v3870
          %v3886 = vadd.f32 %v3885, %v3871
          %v3887 = vadd.f32 %v3886, %v3872
          %v3888 = vadd.f32 %v3887, %v3873
          %v3889 = vadd.f32 %v3888, %v3874
          %v3890 = vadd.f32 %v3889, %v3875
          %v3891 = vrot.slane %v3890, 4
          %v3892 = vadd.f32 %v3890, %v3891
          %v3893 = vrot.slane %v3892, 2
          %v3894 = vadd.f32 %v3892, %v3893
          %v3895 = vrot.slane %v3894, 1
          %v3896 = vadd.f32 %v3894, %v3895
          %3897 = vst [vmem:[#allocation3] sm:$0xff] %v3813
          %3898 = vst [vmem:[#allocation3 + $0x8] sm:$0xff] %v3816
          %3899 = vst [vmem:[#allocation3 + $0x10] sm:$0xff] %v3819
          %3900 = vst [vmem:[#allocation3 + $0x18] sm:$0xff] %v3822
          %3901 = vst [vmem:[#allocation3 + $0x20] sm:$0xff] %v3825
          %3902 = vst [vmem:[#allocation3 + $0x28] sm:$0xff] %v3828
          %3903 = vst [vmem:[#allocation3 + $0x30] sm:$0xff] %v3831
          %3904 = vst [vmem:[#allocation3 + $0x38] sm:$0xff] %v3834
          %3905 = vst [vmem:[#allocation3 + $0x40] sm:$0xff] %v3837
          %3906 = vst [vmem:[#allocation3 + $0x48] sm:$0xff] %v3840
          %3907 = vst [vmem:[#allocation3 + $0x50] sm:$0xff] %v3843
          %3908 = vst [vmem:[#allocation3 + $0x58] sm:$0xff] %v3846
          %3909 = vst [vmem:[#allocation3 + $0x60] sm:$0xff] %v3849
          %3910 = vst [vmem:[#allocation3 + $0x68] sm:$0xff] %v3852
          %3911 = vst [vmem:[#allocation3 + $0x70] sm:$0xff] %v3855
          %3912 = vst [vmem:[#allocation3 + $0x78] sm:$0xff] %v3858
          %vm3913 = vcmask 1040384
          %v3914 = vsel %vm3913, %v2916, %v3056
          %vm3915 = vcmask 1041408
          %v3916 = vsel %vm3915, %v3914, %v3196
          %vm3917 = vcmask 1042432
          %v3918 = vsel %vm3917, %v3916, %v3336
          %vm3919 = vcmask 1043456
          %v3920 = vsel %vm3919, %v3918, %v3476
          %vm3921 = vcmask 1044480
          %v3922 = vsel %vm3921, %v3920, %v3616
          %vm3923 = vcmask 1045504
          %v3924 = vsel %vm3923, %v3922, %v3756
          %vm3925 = vcmask 1046528
          %v3926 = vsel %vm3925, %v3924, %v3896
          %s3927 = scalar_lea.vmem [#allocation4], %s2761
          %3928 = vst [vmem:[%s3927] sm:$0xff] %v3926
          %s3929 = scalar_lea.vmem [#allocation3], 128
          %v3930 = vld [vmem:[%s3929] sm:$0xff]
          %v3931 = vld [vmem:[%s3929 + $0x8] sm:$0xff]
          %v3932 = vld [vmem:[%s3929 + $0x10] sm:$0xff]
          %v3933 = vld [vmem:[%s3929 + $0x18] sm:$0xff]
          %v3934 = vld [vmem:[%s3929 + $0x20] sm:$0xff]
          %v3935 = vld [vmem:[%s3929 + $0x28] sm:$0xff]
          %v3936 = vld [vmem:[%s3929 + $0x30] sm:$0xff]
          %v3937 = vld [vmem:[%s3929 + $0x38] sm:$0xff]
          %v3938 = vld [vmem:[%s3929 + $0x40] sm:$0xff]
          %v3939 = vld [vmem:[%s3929 + $0x48] sm:$0xff]
          %v3940 = vld [vmem:[%s3929 + $0x50] sm:$0xff]
          %v3941 = vld [vmem:[%s3929 + $0x58] sm:$0xff]
          %v3942 = vld [vmem:[%s3929 + $0x60] sm:$0xff]
          %v3943 = vld [vmem:[%s3929 + $0x68] sm:$0xff]
          %v3944 = vld [vmem:[%s3929 + $0x70] sm:$0xff]
          %v3945 = vld [vmem:[%s3929 + $0x78] sm:$0xff]
          %s3946 = sadd.s32 %s2778, 2048
          %s3947 = scalar_lea.vmem [#allocation2], %s3946
          %v3948 = vld [vmem:[%s3947] sm:$0xff]
          %v3949 = vld [vmem:[%s3947 + $0x8] sm:$0xff]
          %v3950 = vld [vmem:[%s3947 + $0x10] sm:$0xff]
          %v3951 = vld [vmem:[%s3947 + $0x18] sm:$0xff]
          %v3952 = vld [vmem:[%s3947 + $0x20] sm:$0xff]
          %v3953 = vld [vmem:[%s3947 + $0x28] sm:$0xff]
          %v3954 = vld [vmem:[%s3947 + $0x30] sm:$0xff]
          %v3955 = vld [vmem:[%s3947 + $0x38] sm:$0xff]
          %v3956 = vld [vmem:[%s3947 + $0x40] sm:$0xff]
          %v3957 = vld [vmem:[%s3947 + $0x48] sm:$0xff]
          %v3958 = vld [vmem:[%s3947 + $0x50] sm:$0xff]
          %v3959 = vld [vmem:[%s3947 + $0x58] sm:$0xff]
          %v3960 = vld [vmem:[%s3947 + $0x60] sm:$0xff]
          %v3961 = vld [vmem:[%s3947 + $0x68] sm:$0xff]
          %v3962 = vld [vmem:[%s3947 + $0x70] sm:$0xff]
          %v3963 = vld [vmem:[%s3947 + $0x78] sm:$0xff]
          %s3964 = sadd.s32 %s2761, 16
          %s3965 = scalar_lea.vmem %s357, %s3964 [#allocation5]
          %v3966 = vld [vmem:[%s3965] sm:$0x1]
          %v3967 = vperm.slane %v3966, 0
          %v3968 = vmul.f32 %v3967, %v2723
          %v3969 = vmul.f32 %v3967, %v2724
          %v3970 = vmul.f32 %v3967, %v2725
          %v3971 = vmul.f32 %v3967, %v2726
          %v3972 = vmul.f32 %v3967, %v2727
          %v3973 = vmul.f32 %v3967, %v2728
          %v3974 = vmul.f32 %v3967, %v2729
          %v3975 = vmul.f32 %v3967, %v2730
          %v3976 = vmul.f32 %v3967, %v2731
          %v3977 = vmul.f32 %v3967, %v2732
          %v3978 = vmul.f32 %v3967, %v2733
          %v3979 = vmul.f32 %v3967, %v2734
          %v3980 = vmul.f32 %v3967, %v2735
          %v3981 = vmul.f32 %v3967, %v2736
          %v3982 = vmul.f32 %v3967, %v2737
          %v3983 = vmul.f32 %v3967, %v2738
          %3984 = vmatpush.msra.mxu0 %v3945
          %3985 = vmatpush.msra.mxu0 %v3944
          %3986 = vmatpush.msra.mxu0 %v3943
          %3987 = vmatpush.msra.mxu0 %v3942
          %3988 = vmatpush.msra.mxu0 %v3941
          %3989 = vmatpush.msra.mxu0 %v3940
          %3990 = vmatpush.msra.mxu0 %v3939
          %3991 = vmatpush.msra.mxu0 %v3938
          %3992 = vmatpush.msra.mxu0 %v3937
          %3993 = vmatpush.msra.mxu0 %v3936
          %3994 = vmatpush.msra.mxu0 %v3935
          %3995 = vmatpush.msra.mxu0 %v3934
          %3996 = vmatpush.msra.mxu0 %v3933
          %3997 = vmatpush.msra.mxu0 %v3932
          %3998 = vmatpush.msra.mxu0 %v3931
          %3999 = vmatpush.msra.mxu0 %v3930
          %4000 = vmatmul.f32.gmra.mxu0 %v3948
          %v4001 = vpop.f32.mrf.mxu0
          %v4002 = vadd.f32 %v3968, %v4001
          %4003 = vmatmul.f32.gmra.mxu0 %v3949
          %v4004 = vpop.f32.mrf.mxu0
          %v4005 = vadd.f32 %v3969, %v4004
          %4006 = vmatmul.f32.gmra.mxu0 %v3950
          %v4007 = vpop.f32.mrf.mxu0
          %v4008 = vadd.f32 %v3970, %v4007
          %4009 = vmatmul.f32.gmra.mxu0 %v3951
          %v4010 = vpop.f32.mrf.mxu0
          %v4011 = vadd.f32 %v3971, %v4010
          %4012 = vmatmul.f32.gmra.mxu0 %v3952
          %v4013 = vpop.f32.mrf.mxu0
          %v4014 = vadd.f32 %v3972, %v4013
          %4015 = vmatmul.f32.gmra.mxu0 %v3953
          %v4016 = vpop.f32.mrf.mxu0
          %v4017 = vadd.f32 %v3973, %v4016
          %4018 = vmatmul.f32.gmra.mxu0 %v3954
          %v4019 = vpop.f32.mrf.mxu0
          %v4020 = vadd.f32 %v3974, %v4019
          %4021 = vmatmul.f32.gmra.mxu0 %v3955
          %v4022 = vpop.f32.mrf.mxu0
          %v4023 = vadd.f32 %v3975, %v4022
          %4024 = vmatmul.f32.gmra.mxu0 %v3956
          %v4025 = vpop.f32.mrf.mxu0
          %v4026 = vadd.f32 %v3976, %v4025
          %4027 = vmatmul.f32.gmra.mxu0 %v3957
          %v4028 = vpop.f32.mrf.mxu0
          %v4029 = vadd.f32 %v3977, %v4028
          %4030 = vmatmul.f32.gmra.mxu0 %v3958
          %v4031 = vpop.f32.mrf.mxu0
          %v4032 = vadd.f32 %v3978, %v4031
          %4033 = vmatmul.f32.gmra.mxu0 %v3959
          %v4034 = vpop.f32.mrf.mxu0
          %v4035 = vadd.f32 %v3979, %v4034
          %4036 = vmatmul.f32.gmra.mxu0 %v3960
          %v4037 = vpop.f32.mrf.mxu0
          %v4038 = vadd.f32 %v3980, %v4037
          %4039 = vmatmul.f32.gmra.mxu0 %v3961
          %v4040 = vpop.f32.mrf.mxu0
          %v4041 = vadd.f32 %v3981, %v4040
          %4042 = vmatmul.f32.gmra.mxu0 %v3962
          %v4043 = vpop.f32.mrf.mxu0
          %v4044 = vadd.f32 %v3982, %v4043
          %4045 = vmatmul.f32.gmra.mxu0 %v3963
          %v4046 = vpop.f32.mrf.mxu0
          %v4047 = vadd.f32 %v3983, %v4046
          %4048 = vdwg.mxu0
          %v4049 = vmul.f32 %v4002, %v2739
          %v4050 = vmul.f32 %v4005, %v2740
          %v4051 = vmul.f32 %v4008, %v2741
          %v4052 = vmul.f32 %v4011, %v2742
          %v4053 = vmul.f32 %v4014, %v2743
          %v4054 = vmul.f32 %v4017, %v2744
          %v4055 = vmul.f32 %v4020, %v2745
          %v4056 = vmul.f32 %v4023, %v2746
          %v4057 = vmul.f32 %v4026, %v2747
          %v4058 = vmul.f32 %v4029, %v2748
          %v4059 = vmul.f32 %v4032, %v2749
          %v4060 = vmul.f32 %v4035, %v2750
          %v4061 = vmul.f32 %v4038, %v2751
          %v4062 = vmul.f32 %v4041, %v2752
          %v4063 = vmul.f32 %v4044, %v2753
          %v4064 = vmul.f32 %v4047, %v2754
          %v4065 = vadd.f32 %v4049, %v4050
          %v4066 = vadd.f32 %v4065, %v4051
          %v4067 = vadd.f32 %v4066, %v4052
          %v4068 = vadd.f32 %v4067, %v4053
          %v4069 = vadd.f32 %v4068, %v4054
          %v4070 = vadd.f32 %v4069, %v4055
          %v4071 = vadd.f32 %v4070, %v4056
          %v4072 = vadd.f32 %v4071, %v4057
          %v4073 = vadd.f32 %v4072, %v4058
          %v4074 = vadd.f32 %v4073, %v4059
          %v4075 = vadd.f32 %v4074, %v4060
          %v4076 = vadd.f32 %v4075, %v4061
          %v4077 = vadd.f32 %v4076, %v4062
          %v4078 = vadd.f32 %v4077, %v4063
          %v4079 = vadd.f32 %v4078, %v4064
          %v4080 = vrot.slane %v4079, 4
          %v4081 = vadd.f32 %v4079, %v4080
          %v4082 = vrot.slane %v4081, 2
          %v4083 = vadd.f32 %v4081, %v4082
          %v4084 = vrot.slane %v4083, 1
          %v4085 = vadd.f32 %v4083, %v4084
          %s4086 = sadd.s32 %s2918, 2048
          %s4087 = scalar_lea.vmem [#allocation2], %s4086
          %v4088 = vld [vmem:[%s4087] sm:$0xff]
          %v4089 = vld [vmem:[%s4087 + $0x8] sm:$0xff]
          %v4090 = vld [vmem:[%s4087 + $0x10] sm:$0xff]
          %v4091 = vld [vmem:[%s4087 + $0x18] sm:$0xff]
          %v4092 = vld [vmem:[%s4087 + $0x20] sm:$0xff]
          %v4093 = vld [vmem:[%s4087 + $0x28] sm:$0xff]
          %v4094 = vld [vmem:[%s4087 + $0x30] sm:$0xff]
          %v4095 = vld [vmem:[%s4087 + $0x38] sm:$0xff]
          %v4096 = vld [vmem:[%s4087 + $0x40] sm:$0xff]
          %v4097 = vld [vmem:[%s4087 + $0x48] sm:$0xff]
          %v4098 = vld [vmem:[%s4087 + $0x50] sm:$0xff]
          %v4099 = vld [vmem:[%s4087 + $0x58] sm:$0xff]
          %v4100 = vld [vmem:[%s4087 + $0x60] sm:$0xff]
          %v4101 = vld [vmem:[%s4087 + $0x68] sm:$0xff]
          %v4102 = vld [vmem:[%s4087 + $0x70] sm:$0xff]
          %v4103 = vld [vmem:[%s4087 + $0x78] sm:$0xff]
          %s4104 = sadd.s32 %s2917, 16
          %s4105 = scalar_lea.vmem %s357, %s4104 [#allocation5]
          %v4106 = vld [vmem:[%s4105] sm:$0x1]
          %v4107 = vperm.slane %v4106, 0
          %v4108 = vmul.f32 %v4107, %v2723
          %v4109 = vmul.f32 %v4107, %v2724
          %v4110 = vmul.f32 %v4107, %v2725
          %v4111 = vmul.f32 %v4107, %v2726
          %v4112 = vmul.f32 %v4107, %v2727
          %v4113 = vmul.f32 %v4107, %v2728
          %v4114 = vmul.f32 %v4107, %v2729
          %v4115 = vmul.f32 %v4107, %v2730
          %v4116 = vmul.f32 %v4107, %v2731
          %v4117 = vmul.f32 %v4107, %v2732
          %v4118 = vmul.f32 %v4107, %v2733
          %v4119 = vmul.f32 %v4107, %v2734
          %v4120 = vmul.f32 %v4107, %v2735
          %v4121 = vmul.f32 %v4107, %v2736
          %v4122 = vmul.f32 %v4107, %v2737
          %v4123 = vmul.f32 %v4107, %v2738
          %4124 = vmatpush.msra.mxu0 %v4047
          %4125 = vmatpush.msra.mxu0 %v4044
          %4126 = vmatpush.msra.mxu0 %v4041
          %4127 = vmatpush.msra.mxu0 %v4038
          %4128 = vmatpush.msra.mxu0 %v4035
          %4129 = vmatpush.msra.mxu0 %v4032
          %4130 = vmatpush.msra.mxu0 %v4029
          %4131 = vmatpush.msra.mxu0 %v4026
          %4132 = vmatpush.msra.mxu0 %v4023
          %4133 = vmatpush.msra.mxu0 %v4020
          %4134 = vmatpush.msra.mxu0 %v4017
          %4135 = vmatpush.msra.mxu0 %v4014
          %4136 = vmatpush.msra.mxu0 %v4011
          %4137 = vmatpush.msra.mxu0 %v4008
          %4138 = vmatpush.msra.mxu0 %v4005
          %4139 = vmatpush.msra.mxu0 %v4002
          %4140 = vmatmul.f32.gmra.mxu0 %v4088
          %v4141 = vpop.f32.mrf.mxu0
          %v4142 = vadd.f32 %v4108, %v4141
          %4143 = vmatmul.f32.gmra.mxu0 %v4089
          %v4144 = vpop.f32.mrf.mxu0
          %v4145 = vadd.f32 %v4109, %v4144
          %4146 = vmatmul.f32.gmra.mxu0 %v4090
          %v4147 = vpop.f32.mrf.mxu0
          %v4148 = vadd.f32 %v4110, %v4147
          %4149 = vmatmul.f32.gmra.mxu0 %v4091
          %v4150 = vpop.f32.mrf.mxu0
          %v4151 = vadd.f32 %v4111, %v4150
          %4152 = vmatmul.f32.gmra.mxu0 %v4092
          %v4153 = vpop.f32.mrf.mxu0
          %v4154 = vadd.f32 %v4112, %v4153
          %4155 = vmatmul.f32.gmra.mxu0 %v4093
          %v4156 = vpop.f32.mrf.mxu0
          %v4157 = vadd.f32 %v4113, %v4156
          %4158 = vmatmul.f32.gmra.mxu0 %v4094
          %v4159 = vpop.f32.mrf.mxu0
          %v4160 = vadd.f32 %v4114, %v4159
          %4161 = vmatmul.f32.gmra.mxu0 %v4095
          %v4162 = vpop.f32.mrf.mxu0
          %v4163 = vadd.f32 %v4115, %v4162
          %4164 = vmatmul.f32.gmra.mxu0 %v4096
          %v4165 = vpop.f32.mrf.mxu0
          %v4166 = vadd.f32 %v4116, %v4165
          %4167 = vmatmul.f32.gmra.mxu0 %v4097
          %v4168 = vpop.f32.mrf.mxu0
          %v4169 = vadd.f32 %v4117, %v4168
          %4170 = vmatmul.f32.gmra.mxu0 %v4098
          %v4171 = vpop.f32.mrf.mxu0
          %v4172 = vadd.f32 %v4118, %v4171
          %4173 = vmatmul.f32.gmra.mxu0 %v4099
          %v4174 = vpop.f32.mrf.mxu0
          %v4175 = vadd.f32 %v4119, %v4174
          %4176 = vmatmul.f32.gmra.mxu0 %v4100
          %v4177 = vpop.f32.mrf.mxu0
          %v4178 = vadd.f32 %v4120, %v4177
          %4179 = vmatmul.f32.gmra.mxu0 %v4101
          %v4180 = vpop.f32.mrf.mxu0
          %v4181 = vadd.f32 %v4121, %v4180
          %4182 = vmatmul.f32.gmra.mxu0 %v4102
          %v4183 = vpop.f32.mrf.mxu0
          %v4184 = vadd.f32 %v4122, %v4183
          %4185 = vmatmul.f32.gmra.mxu0 %v4103
          %v4186 = vpop.f32.mrf.mxu0
          %v4187 = vadd.f32 %v4123, %v4186
          %4188 = vdwg.mxu0
          %v4189 = vmul.f32 %v4142, %v2739
          %v4190 = vmul.f32 %v4145, %v2740
          %v4191 = vmul.f32 %v4148, %v2741
          %v4192 = vmul.f32 %v4151, %v2742
          %v4193 = vmul.f32 %v4154, %v2743
          %v4194 = vmul.f32 %v4157, %v2744
          %v4195 = vmul.f32 %v4160, %v2745
          %v4196 = vmul.f32 %v4163, %v2746
          %v4197 = vmul.f32 %v4166, %v2747
          %v4198 = vmul.f32 %v4169, %v2748
          %v4199 = vmul.f32 %v4172, %v2749
          %v4200 = vmul.f32 %v4175, %v2750
          %v4201 = vmul.f32 %v4178, %v2751
          %v4202 = vmul.f32 %v4181, %v2752
          %v4203 = vmul.f32 %v4184, %v2753
          %v4204 = vmul.f32 %v4187, %v2754
          %v4205 = vadd.f32 %v4189, %v4190
          %v4206 = vadd.f32 %v4205, %v4191
          %v4207 = vadd.f32 %v4206, %v4192
          %v4208 = vadd.f32 %v4207, %v4193
          %v4209 = vadd.f32 %v4208, %v4194
          %v4210 = vadd.f32 %v4209, %v4195
          %v4211 = vadd.f32 %v4210, %v4196
          %v4212 = vadd.f32 %v4211, %v4197
          %v4213 = vadd.f32 %v4212, %v4198
          %v4214 = vadd.f32 %v4213, %v4199
          %v4215 = vadd.f32 %v4214, %v4200
          %v4216 = vadd.f32 %v4215, %v4201
          %v4217 = vadd.f32 %v4216, %v4202
          %v4218 = vadd.f32 %v4217, %v4203
          %v4219 = vadd.f32 %v4218, %v4204
          %v4220 = vrot.slane %v4219, 4
          %v4221 = vadd.f32 %v4219, %v4220
          %v4222 = vrot.slane %v4221, 2
          %v4223 = vadd.f32 %v4221, %v4222
          %v4224 = vrot.slane %v4223, 1
          %v4225 = vadd.f32 %v4223, %v4224
          %s4226 = sadd.s32 %s3058, 2048
          %s4227 = scalar_lea.vmem [#allocation2], %s4226
          %v4228 = vld [vmem:[%s4227] sm:$0xff]
          %v4229 = vld [vmem:[%s4227 + $0x8] sm:$0xff]
          %v4230 = vld [vmem:[%s4227 + $0x10] sm:$0xff]
          %v4231 = vld [vmem:[%s4227 + $0x18] sm:$0xff]
          %v4232 = vld [vmem:[%s4227 + $0x20] sm:$0xff]
          %v4233 = vld [vmem:[%s4227 + $0x28] sm:$0xff]
          %v4234 = vld [vmem:[%s4227 + $0x30] sm:$0xff]
          %v4235 = vld [vmem:[%s4227 + $0x38] sm:$0xff]
          %v4236 = vld [vmem:[%s4227 + $0x40] sm:$0xff]
          %v4237 = vld [vmem:[%s4227 + $0x48] sm:$0xff]
          %v4238 = vld [vmem:[%s4227 + $0x50] sm:$0xff]
          %v4239 = vld [vmem:[%s4227 + $0x58] sm:$0xff]
          %v4240 = vld [vmem:[%s4227 + $0x60] sm:$0xff]
          %v4241 = vld [vmem:[%s4227 + $0x68] sm:$0xff]
          %v4242 = vld [vmem:[%s4227 + $0x70] sm:$0xff]
          %v4243 = vld [vmem:[%s4227 + $0x78] sm:$0xff]
          %s4244 = sadd.s32 %s3057, 16
          %s4245 = scalar_lea.vmem %s357, %s4244 [#allocation5]
          %v4246 = vld [vmem:[%s4245] sm:$0x1]
          %v4247 = vperm.slane %v4246, 0
          %v4248 = vmul.f32 %v4247, %v2723
          %v4249 = vmul.f32 %v4247, %v2724
          %v4250 = vmul.f32 %v4247, %v2725
          %v4251 = vmul.f32 %v4247, %v2726
          %v4252 = vmul.f32 %v4247, %v2727
          %v4253 = vmul.f32 %v4247, %v2728
          %v4254 = vmul.f32 %v4247, %v2729
          %v4255 = vmul.f32 %v4247, %v2730
          %v4256 = vmul.f32 %v4247, %v2731
          %v4257 = vmul.f32 %v4247, %v2732
          %v4258 = vmul.f32 %v4247, %v2733
          %v4259 = vmul.f32 %v4247, %v2734
          %v4260 = vmul.f32 %v4247, %v2735
          %v4261 = vmul.f32 %v4247, %v2736
          %v4262 = vmul.f32 %v4247, %v2737
          %v4263 = vmul.f32 %v4247, %v2738
          %4264 = vmatpush.msra.mxu0 %v4187
          %4265 = vmatpush.msra.mxu0 %v4184
          %4266 = vmatpush.msra.mxu0 %v4181
          %4267 = vmatpush.msra.mxu0 %v4178
          %4268 = vmatpush.msra.mxu0 %v4175
          %4269 = vmatpush.msra.mxu0 %v4172
          %4270 = vmatpush.msra.mxu0 %v4169
          %4271 = vmatpush.msra.mxu0 %v4166
          %4272 = vmatpush.msra.mxu0 %v4163
          %4273 = vmatpush.msra.mxu0 %v4160
          %4274 = vmatpush.msra.mxu0 %v4157
          %4275 = vmatpush.msra.mxu0 %v4154
          %4276 = vmatpush.msra.mxu0 %v4151
          %4277 = vmatpush.msra.mxu0 %v4148
          %4278 = vmatpush.msra.mxu0 %v4145
          %4279 = vmatpush.msra.mxu0 %v4142
          %4280 = vmatmul.f32.gmra.mxu0 %v4228
          %v4281 = vpop.f32.mrf.mxu0
          %v4282 = vadd.f32 %v4248, %v4281
          %4283 = vmatmul.f32.gmra.mxu0 %v4229
          %v4284 = vpop.f32.mrf.mxu0
          %v4285 = vadd.f32 %v4249, %v4284
          %4286 = vmatmul.f32.gmra.mxu0 %v4230
          %v4287 = vpop.f32.mrf.mxu0
          %v4288 = vadd.f32 %v4250, %v4287
          %4289 = vmatmul.f32.gmra.mxu0 %v4231
          %v4290 = vpop.f32.mrf.mxu0
          %v4291 = vadd.f32 %v4251, %v4290
          %4292 = vmatmul.f32.gmra.mxu0 %v4232
          %v4293 = vpop.f32.mrf.mxu0
          %v4294 = vadd.f32 %v4252, %v4293
          %4295 = vmatmul.f32.gmra.mxu0 %v4233
          %v4296 = vpop.f32.mrf.mxu0
          %v4297 = vadd.f32 %v4253, %v4296
          %4298 = vmatmul.f32.gmra.mxu0 %v4234
          %v4299 = vpop.f32.mrf.mxu0
          %v4300 = vadd.f32 %v4254, %v4299
          %4301 = vmatmul.f32.gmra.mxu0 %v4235
          %v4302 = vpop.f32.mrf.mxu0
          %v4303 = vadd.f32 %v4255, %v4302
          %4304 = vmatmul.f32.gmra.mxu0 %v4236
          %v4305 = vpop.f32.mrf.mxu0
          %v4306 = vadd.f32 %v4256, %v4305
          %4307 = vmatmul.f32.gmra.mxu0 %v4237
          %v4308 = vpop.f32.mrf.mxu0
          %v4309 = vadd.f32 %v4257, %v4308
          %4310 = vmatmul.f32.gmra.mxu0 %v4238
          %v4311 = vpop.f32.mrf.mxu0
          %v4312 = vadd.f32 %v4258, %v4311
          %4313 = vmatmul.f32.gmra.mxu0 %v4239
          %v4314 = vpop.f32.mrf.mxu0
          %v4315 = vadd.f32 %v4259, %v4314
          %4316 = vmatmul.f32.gmra.mxu0 %v4240
          %v4317 = vpop.f32.mrf.mxu0
          %v4318 = vadd.f32 %v4260, %v4317
          %4319 = vmatmul.f32.gmra.mxu0 %v4241
          %v4320 = vpop.f32.mrf.mxu0
          %v4321 = vadd.f32 %v4261, %v4320
          %4322 = vmatmul.f32.gmra.mxu0 %v4242
          %v4323 = vpop.f32.mrf.mxu0
          %v4324 = vadd.f32 %v4262, %v4323
          %4325 = vmatmul.f32.gmra.mxu0 %v4243
          %v4326 = vpop.f32.mrf.mxu0
          %v4327 = vadd.f32 %v4263, %v4326
          %4328 = vdwg.mxu0
          %v4329 = vmul.f32 %v4282, %v2739
          %v4330 = vmul.f32 %v4285, %v2740
          %v4331 = vmul.f32 %v4288, %v2741
          %v4332 = vmul.f32 %v4291, %v2742
          %v4333 = vmul.f32 %v4294, %v2743
          %v4334 = vmul.f32 %v4297, %v2744
          %v4335 = vmul.f32 %v4300, %v2745
          %v4336 = vmul.f32 %v4303, %v2746
          %v4337 = vmul.f32 %v4306, %v2747
          %v4338 = vmul.f32 %v4309, %v2748
          %v4339 = vmul.f32 %v4312, %v2749
          %v4340 = vmul.f32 %v4315, %v2750
          %v4341 = vmul.f32 %v4318, %v2751
          %v4342 = vmul.f32 %v4321, %v2752
          %v4343 = vmul.f32 %v4324, %v2753
          %v4344 = vmul.f32 %v4327, %v2754
          %v4345 = vadd.f32 %v4329, %v4330
          %v4346 = vadd.f32 %v4345, %v4331
          %v4347 = vadd.f32 %v4346, %v4332
          %v4348 = vadd.f32 %v4347, %v4333
          %v4349 = vadd.f32 %v4348, %v4334
          %v4350 = vadd.f32 %v4349, %v4335
          %v4351 = vadd.f32 %v4350, %v4336
          %v4352 = vadd.f32 %v4351, %v4337
          %v4353 = vadd.f32 %v4352, %v4338
          %v4354 = vadd.f32 %v4353, %v4339
          %v4355 = vadd.f32 %v4354, %v4340
          %v4356 = vadd.f32 %v4355, %v4341
          %v4357 = vadd.f32 %v4356, %v4342
          %v4358 = vadd.f32 %v4357, %v4343
          %v4359 = vadd.f32 %v4358, %v4344
          %v4360 = vrot.slane %v4359, 4
          %v4361 = vadd.f32 %v4359, %v4360
          %v4362 = vrot.slane %v4361, 2
          %v4363 = vadd.f32 %v4361, %v4362
          %v4364 = vrot.slane %v4363, 1
          %v4365 = vadd.f32 %v4363, %v4364
          %s4366 = sadd.s32 %s3198, 2048
          %s4367 = scalar_lea.vmem [#allocation2], %s4366
          %v4368 = vld [vmem:[%s4367] sm:$0xff]
          %v4369 = vld [vmem:[%s4367 + $0x8] sm:$0xff]
          %v4370 = vld [vmem:[%s4367 + $0x10] sm:$0xff]
          %v4371 = vld [vmem:[%s4367 + $0x18] sm:$0xff]
          %v4372 = vld [vmem:[%s4367 + $0x20] sm:$0xff]
          %v4373 = vld [vmem:[%s4367 + $0x28] sm:$0xff]
          %v4374 = vld [vmem:[%s4367 + $0x30] sm:$0xff]
          %v4375 = vld [vmem:[%s4367 + $0x38] sm:$0xff]
          %v4376 = vld [vmem:[%s4367 + $0x40] sm:$0xff]
          %v4377 = vld [vmem:[%s4367 + $0x48] sm:$0xff]
          %v4378 = vld [vmem:[%s4367 + $0x50] sm:$0xff]
          %v4379 = vld [vmem:[%s4367 + $0x58] sm:$0xff]
          %v4380 = vld [vmem:[%s4367 + $0x60] sm:$0xff]
          %v4381 = vld [vmem:[%s4367 + $0x68] sm:$0xff]
          %v4382 = vld [vmem:[%s4367 + $0x70] sm:$0xff]
          %v4383 = vld [vmem:[%s4367 + $0x78] sm:$0xff]
          %s4384 = sadd.s32 %s3197, 16
          %s4385 = scalar_lea.vmem %s357, %s4384 [#allocation5]
          %v4386 = vld [vmem:[%s4385] sm:$0x1]
          %v4387 = vperm.slane %v4386, 0
          %v4388 = vmul.f32 %v4387, %v2723
          %v4389 = vmul.f32 %v4387, %v2724
          %v4390 = vmul.f32 %v4387, %v2725
          %v4391 = vmul.f32 %v4387, %v2726
          %v4392 = vmul.f32 %v4387, %v2727
          %v4393 = vmul.f32 %v4387, %v2728
          %v4394 = vmul.f32 %v4387, %v2729
          %v4395 = vmul.f32 %v4387, %v2730
          %v4396 = vmul.f32 %v4387, %v2731
          %v4397 = vmul.f32 %v4387, %v2732
          %v4398 = vmul.f32 %v4387, %v2733
          %v4399 = vmul.f32 %v4387, %v2734
          %v4400 = vmul.f32 %v4387, %v2735
          %v4401 = vmul.f32 %v4387, %v2736
          %v4402 = vmul.f32 %v4387, %v2737
          %v4403 = vmul.f32 %v4387, %v2738
          %4404 = vmatpush.msra.mxu0 %v4327
          %4405 = vmatpush.msra.mxu0 %v4324
          %4406 = vmatpush.msra.mxu0 %v4321
          %4407 = vmatpush.msra.mxu0 %v4318
          %4408 = vmatpush.msra.mxu0 %v4315
          %4409 = vmatpush.msra.mxu0 %v4312
          %4410 = vmatpush.msra.mxu0 %v4309
          %4411 = vmatpush.msra.mxu0 %v4306
          %4412 = vmatpush.msra.mxu0 %v4303
          %4413 = vmatpush.msra.mxu0 %v4300
          %4414 = vmatpush.msra.mxu0 %v4297
          %4415 = vmatpush.msra.mxu0 %v4294
          %4416 = vmatpush.msra.mxu0 %v4291
          %4417 = vmatpush.msra.mxu0 %v4288
          %4418 = vmatpush.msra.mxu0 %v4285
          %4419 = vmatpush.msra.mxu0 %v4282
          %4420 = vmatmul.f32.gmra.mxu0 %v4368
          %v4421 = vpop.f32.mrf.mxu0
          %v4422 = vadd.f32 %v4388, %v4421
          %4423 = vmatmul.f32.gmra.mxu0 %v4369
          %v4424 = vpop.f32.mrf.mxu0
          %v4425 = vadd.f32 %v4389, %v4424
          %4426 = vmatmul.f32.gmra.mxu0 %v4370
          %v4427 = vpop.f32.mrf.mxu0
          %v4428 = vadd.f32 %v4390, %v4427
          %4429 = vmatmul.f32.gmra.mxu0 %v4371
          %v4430 = vpop.f32.mrf.mxu0
          %v4431 = vadd.f32 %v4391, %v4430
          %4432 = vmatmul.f32.gmra.mxu0 %v4372
          %v4433 = vpop.f32.mrf.mxu0
          %v4434 = vadd.f32 %v4392, %v4433
          %4435 = vmatmul.f32.gmra.mxu0 %v4373
          %v4436 = vpop.f32.mrf.mxu0
          %v4437 = vadd.f32 %v4393, %v4436
          %4438 = vmatmul.f32.gmra.mxu0 %v4374
          %v4439 = vpop.f32.mrf.mxu0
          %v4440 = vadd.f32 %v4394, %v4439
          %4441 = vmatmul.f32.gmra.mxu0 %v4375
          %v4442 = vpop.f32.mrf.mxu0
          %v4443 = vadd.f32 %v4395, %v4442
          %4444 = vmatmul.f32.gmra.mxu0 %v4376
          %v4445 = vpop.f32.mrf.mxu0
          %v4446 = vadd.f32 %v4396, %v4445
          %4447 = vmatmul.f32.gmra.mxu0 %v4377
          %v4448 = vpop.f32.mrf.mxu0
          %v4449 = vadd.f32 %v4397, %v4448
          %4450 = vmatmul.f32.gmra.mxu0 %v4378
          %v4451 = vpop.f32.mrf.mxu0
          %v4452 = vadd.f32 %v4398, %v4451
          %4453 = vmatmul.f32.gmra.mxu0 %v4379
          %v4454 = vpop.f32.mrf.mxu0
          %v4455 = vadd.f32 %v4399, %v4454
          %4456 = vmatmul.f32.gmra.mxu0 %v4380
          %v4457 = vpop.f32.mrf.mxu0
          %v4458 = vadd.f32 %v4400, %v4457
          %4459 = vmatmul.f32.gmra.mxu0 %v4381
          %v4460 = vpop.f32.mrf.mxu0
          %v4461 = vadd.f32 %v4401, %v4460
          %4462 = vmatmul.f32.gmra.mxu0 %v4382
          %v4463 = vpop.f32.mrf.mxu0
          %v4464 = vadd.f32 %v4402, %v4463
          %4465 = vmatmul.f32.gmra.mxu0 %v4383
          %v4466 = vpop.f32.mrf.mxu0
          %v4467 = vadd.f32 %v4403, %v4466
          %4468 = vdwg.mxu0
          %v4469 = vmul.f32 %v4422, %v2739
          %v4470 = vmul.f32 %v4425, %v2740
          %v4471 = vmul.f32 %v4428, %v2741
          %v4472 = vmul.f32 %v4431, %v2742
          %v4473 = vmul.f32 %v4434, %v2743
          %v4474 = vmul.f32 %v4437, %v2744
          %v4475 = vmul.f32 %v4440, %v2745
          %v4476 = vmul.f32 %v4443, %v2746
          %v4477 = vmul.f32 %v4446, %v2747
          %v4478 = vmul.f32 %v4449, %v2748
          %v4479 = vmul.f32 %v4452, %v2749
          %v4480 = vmul.f32 %v4455, %v2750
          %v4481 = vmul.f32 %v4458, %v2751
          %v4482 = vmul.f32 %v4461, %v2752
          %v4483 = vmul.f32 %v4464, %v2753
          %v4484 = vmul.f32 %v4467, %v2754
          %v4485 = vadd.f32 %v4469, %v4470
          %v4486 = vadd.f32 %v4485, %v4471
          %v4487 = vadd.f32 %v4486, %v4472
          %v4488 = vadd.f32 %v4487, %v4473
          %v4489 = vadd.f32 %v4488, %v4474
          %v4490 = vadd.f32 %v4489, %v4475
          %v4491 = vadd.f32 %v4490, %v4476
          %v4492 = vadd.f32 %v4491, %v4477
          %v4493 = vadd.f32 %v4492, %v4478
          %v4494 = vadd.f32 %v4493, %v4479
          %v4495 = vadd.f32 %v4494, %v4480
          %v4496 = vadd.f32 %v4495, %v4481
          %v4497 = vadd.f32 %v4496, %v4482
          %v4498 = vadd.f32 %v4497, %v4483
          %v4499 = vadd.f32 %v4498, %v4484
          %v4500 = vrot.slane %v4499, 4
          %v4501 = vadd.f32 %v4499, %v4500
          %v4502 = vrot.slane %v4501, 2
          %v4503 = vadd.f32 %v4501, %v4502
          %v4504 = vrot.slane %v4503, 1
          %v4505 = vadd.f32 %v4503, %v4504
          %s4506 = sadd.s32 %s3338, 2048
          %s4507 = scalar_lea.vmem [#allocation2], %s4506
          %v4508 = vld [vmem:[%s4507] sm:$0xff]
          %v4509 = vld [vmem:[%s4507 + $0x8] sm:$0xff]
          %v4510 = vld [vmem:[%s4507 + $0x10] sm:$0xff]
          %v4511 = vld [vmem:[%s4507 + $0x18] sm:$0xff]
          %v4512 = vld [vmem:[%s4507 + $0x20] sm:$0xff]
          %v4513 = vld [vmem:[%s4507 + $0x28] sm:$0xff]
          %v4514 = vld [vmem:[%s4507 + $0x30] sm:$0xff]
          %v4515 = vld [vmem:[%s4507 + $0x38] sm:$0xff]
          %v4516 = vld [vmem:[%s4507 + $0x40] sm:$0xff]
          %v4517 = vld [vmem:[%s4507 + $0x48] sm:$0xff]
          %v4518 = vld [vmem:[%s4507 + $0x50] sm:$0xff]
          %v4519 = vld [vmem:[%s4507 + $0x58] sm:$0xff]
          %v4520 = vld [vmem:[%s4507 + $0x60] sm:$0xff]
          %v4521 = vld [vmem:[%s4507 + $0x68] sm:$0xff]
          %v4522 = vld [vmem:[%s4507 + $0x70] sm:$0xff]
          %v4523 = vld [vmem:[%s4507 + $0x78] sm:$0xff]
          %s4524 = sadd.s32 %s3337, 16
          %s4525 = scalar_lea.vmem %s357, %s4524 [#allocation5]
          %v4526 = vld [vmem:[%s4525] sm:$0x1]
          %v4527 = vperm.slane %v4526, 0
          %v4528 = vmul.f32 %v4527, %v2723
          %v4529 = vmul.f32 %v4527, %v2724
          %v4530 = vmul.f32 %v4527, %v2725
          %v4531 = vmul.f32 %v4527, %v2726
          %v4532 = vmul.f32 %v4527, %v2727
          %v4533 = vmul.f32 %v4527, %v2728
          %v4534 = vmul.f32 %v4527, %v2729
          %v4535 = vmul.f32 %v4527, %v2730
          %v4536 = vmul.f32 %v4527, %v2731
          %v4537 = vmul.f32 %v4527, %v2732
          %v4538 = vmul.f32 %v4527, %v2733
          %v4539 = vmul.f32 %v4527, %v2734
          %v4540 = vmul.f32 %v4527, %v2735
          %v4541 = vmul.f32 %v4527, %v2736
          %v4542 = vmul.f32 %v4527, %v2737
          %v4543 = vmul.f32 %v4527, %v2738
          %4544 = vmatpush.msra.mxu0 %v4467
          %4545 = vmatpush.msra.mxu0 %v4464
          %4546 = vmatpush.msra.mxu0 %v4461
          %4547 = vmatpush.msra.mxu0 %v4458
          %4548 = vmatpush.msra.mxu0 %v4455
          %4549 = vmatpush.msra.mxu0 %v4452
          %4550 = vmatpush.msra.mxu0 %v4449
          %4551 = vmatpush.msra.mxu0 %v4446
          %4552 = vmatpush.msra.mxu0 %v4443
          %4553 = vmatpush.msra.mxu0 %v4440
          %4554 = vmatpush.msra.mxu0 %v4437
          %4555 = vmatpush.msra.mxu0 %v4434
          %4556 = vmatpush.msra.mxu0 %v4431
          %4557 = vmatpush.msra.mxu0 %v4428
          %4558 = vmatpush.msra.mxu0 %v4425
          %4559 = vmatpush.msra.mxu0 %v4422
          %4560 = vmatmul.f32.gmra.mxu0 %v4508
          %v4561 = vpop.f32.mrf.mxu0
          %v4562 = vadd.f32 %v4528, %v4561
          %4563 = vmatmul.f32.gmra.mxu0 %v4509
          %v4564 = vpop.f32.mrf.mxu0
          %v4565 = vadd.f32 %v4529, %v4564
          %4566 = vmatmul.f32.gmra.mxu0 %v4510
          %v4567 = vpop.f32.mrf.mxu0
          %v4568 = vadd.f32 %v4530, %v4567
          %4569 = vmatmul.f32.gmra.mxu0 %v4511
          %v4570 = vpop.f32.mrf.mxu0
          %v4571 = vadd.f32 %v4531, %v4570
          %4572 = vmatmul.f32.gmra.mxu0 %v4512
          %v4573 = vpop.f32.mrf.mxu0
          %v4574 = vadd.f32 %v4532, %v4573
          %4575 = vmatmul.f32.gmra.mxu0 %v4513
          %v4576 = vpop.f32.mrf.mxu0
          %v4577 = vadd.f32 %v4533, %v4576
          %4578 = vmatmul.f32.gmra.mxu0 %v4514
          %v4579 = vpop.f32.mrf.mxu0
          %v4580 = vadd.f32 %v4534, %v4579
          %4581 = vmatmul.f32.gmra.mxu0 %v4515
          %v4582 = vpop.f32.mrf.mxu0
          %v4583 = vadd.f32 %v4535, %v4582
          %4584 = vmatmul.f32.gmra.mxu0 %v4516
          %v4585 = vpop.f32.mrf.mxu0
          %v4586 = vadd.f32 %v4536, %v4585
          %4587 = vmatmul.f32.gmra.mxu0 %v4517
          %v4588 = vpop.f32.mrf.mxu0
          %v4589 = vadd.f32 %v4537, %v4588
          %4590 = vmatmul.f32.gmra.mxu0 %v4518
          %v4591 = vpop.f32.mrf.mxu0
          %v4592 = vadd.f32 %v4538, %v4591
          %4593 = vmatmul.f32.gmra.mxu0 %v4519
          %v4594 = vpop.f32.mrf.mxu0
          %v4595 = vadd.f32 %v4539, %v4594
          %4596 = vmatmul.f32.gmra.mxu0 %v4520
          %v4597 = vpop.f32.mrf.mxu0
          %v4598 = vadd.f32 %v4540, %v4597
          %4599 = vmatmul.f32.gmra.mxu0 %v4521
          %v4600 = vpop.f32.mrf.mxu0
          %v4601 = vadd.f32 %v4541, %v4600
          %4602 = vmatmul.f32.gmra.mxu0 %v4522
          %v4603 = vpop.f32.mrf.mxu0
          %v4604 = vadd.f32 %v4542, %v4603
          %4605 = vmatmul.f32.gmra.mxu0 %v4523
          %v4606 = vpop.f32.mrf.mxu0
          %v4607 = vadd.f32 %v4543, %v4606
          %4608 = vdwg.mxu0
          %v4609 = vmul.f32 %v4562, %v2739
          %v4610 = vmul.f32 %v4565, %v2740
          %v4611 = vmul.f32 %v4568, %v2741
          %v4612 = vmul.f32 %v4571, %v2742
          %v4613 = vmul.f32 %v4574, %v2743
          %v4614 = vmul.f32 %v4577, %v2744
          %v4615 = vmul.f32 %v4580, %v2745
          %v4616 = vmul.f32 %v4583, %v2746
          %v4617 = vmul.f32 %v4586, %v2747
          %v4618 = vmul.f32 %v4589, %v2748
          %v4619 = vmul.f32 %v4592, %v2749
          %v4620 = vmul.f32 %v4595, %v2750
          %v4621 = vmul.f32 %v4598, %v2751
          %v4622 = vmul.f32 %v4601, %v2752
          %v4623 = vmul.f32 %v4604, %v2753
          %v4624 = vmul.f32 %v4607, %v2754
          %v4625 = vadd.f32 %v4609, %v4610
          %v4626 = vadd.f32 %v4625, %v4611
          %v4627 = vadd.f32 %v4626, %v4612
          %v4628 = vadd.f32 %v4627, %v4613
          %v4629 = vadd.f32 %v4628, %v4614
          %v4630 = vadd.f32 %v4629, %v4615
          %v4631 = vadd.f32 %v4630, %v4616
          %v4632 = vadd.f32 %v4631, %v4617
          %v4633 = vadd.f32 %v4632, %v4618
          %v4634 = vadd.f32 %v4633, %v4619
          %v4635 = vadd.f32 %v4634, %v4620
          %v4636 = vadd.f32 %v4635, %v4621
          %v4637 = vadd.f32 %v4636, %v4622
          %v4638 = vadd.f32 %v4637, %v4623
          %v4639 = vadd.f32 %v4638, %v4624
          %v4640 = vrot.slane %v4639, 4
          %v4641 = vadd.f32 %v4639, %v4640
          %v4642 = vrot.slane %v4641, 2
          %v4643 = vadd.f32 %v4641, %v4642
          %v4644 = vrot.slane %v4643, 1
          %v4645 = vadd.f32 %v4643, %v4644
          %s4646 = sadd.s32 %s3478, 2048
          %s4647 = scalar_lea.vmem [#allocation2], %s4646
          %v4648 = vld [vmem:[%s4647] sm:$0xff]
          %v4649 = vld [vmem:[%s4647 + $0x8] sm:$0xff]
          %v4650 = vld [vmem:[%s4647 + $0x10] sm:$0xff]
          %v4651 = vld [vmem:[%s4647 + $0x18] sm:$0xff]
          %v4652 = vld [vmem:[%s4647 + $0x20] sm:$0xff]
          %v4653 = vld [vmem:[%s4647 + $0x28] sm:$0xff]
          %v4654 = vld [vmem:[%s4647 + $0x30] sm:$0xff]
          %v4655 = vld [vmem:[%s4647 + $0x38] sm:$0xff]
          %v4656 = vld [vmem:[%s4647 + $0x40] sm:$0xff]
          %v4657 = vld [vmem:[%s4647 + $0x48] sm:$0xff]
          %v4658 = vld [vmem:[%s4647 + $0x50] sm:$0xff]
          %v4659 = vld [vmem:[%s4647 + $0x58] sm:$0xff]
          %v4660 = vld [vmem:[%s4647 + $0x60] sm:$0xff]
          %v4661 = vld [vmem:[%s4647 + $0x68] sm:$0xff]
          %v4662 = vld [vmem:[%s4647 + $0x70] sm:$0xff]
          %v4663 = vld [vmem:[%s4647 + $0x78] sm:$0xff]
          %s4664 = sadd.s32 %s3477, 16
          %s4665 = scalar_lea.vmem %s357, %s4664 [#allocation5]
          %v4666 = vld [vmem:[%s4665] sm:$0x1]
          %v4667 = vperm.slane %v4666, 0
          %v4668 = vmul.f32 %v4667, %v2723
          %v4669 = vmul.f32 %v4667, %v2724
          %v4670 = vmul.f32 %v4667, %v2725
          %v4671 = vmul.f32 %v4667, %v2726
          %v4672 = vmul.f32 %v4667, %v2727
          %v4673 = vmul.f32 %v4667, %v2728
          %v4674 = vmul.f32 %v4667, %v2729
          %v4675 = vmul.f32 %v4667, %v2730
          %v4676 = vmul.f32 %v4667, %v2731
          %v4677 = vmul.f32 %v4667, %v2732
          %v4678 = vmul.f32 %v4667, %v2733
          %v4679 = vmul.f32 %v4667, %v2734
          %v4680 = vmul.f32 %v4667, %v2735
          %v4681 = vmul.f32 %v4667, %v2736
          %v4682 = vmul.f32 %v4667, %v2737
          %v4683 = vmul.f32 %v4667, %v2738
          %4684 = vmatpush.msra.mxu0 %v4607
          %4685 = vmatpush.msra.mxu0 %v4604
          %4686 = vmatpush.msra.mxu0 %v4601
          %4687 = vmatpush.msra.mxu0 %v4598
          %4688 = vmatpush.msra.mxu0 %v4595
          %4689 = vmatpush.msra.mxu0 %v4592
          %4690 = vmatpush.msra.mxu0 %v4589
          %4691 = vmatpush.msra.mxu0 %v4586
          %4692 = vmatpush.msra.mxu0 %v4583
          %4693 = vmatpush.msra.mxu0 %v4580
          %4694 = vmatpush.msra.mxu0 %v4577
          %4695 = vmatpush.msra.mxu0 %v4574
          %4696 = vmatpush.msra.mxu0 %v4571
          %4697 = vmatpush.msra.mxu0 %v4568
          %4698 = vmatpush.msra.mxu0 %v4565
          %4699 = vmatpush.msra.mxu0 %v4562
          %4700 = vmatmul.f32.gmra.mxu0 %v4648
          %v4701 = vpop.f32.mrf.mxu0
          %v4702 = vadd.f32 %v4668, %v4701
          %4703 = vmatmul.f32.gmra.mxu0 %v4649
          %v4704 = vpop.f32.mrf.mxu0
          %v4705 = vadd.f32 %v4669, %v4704
          %4706 = vmatmul.f32.gmra.mxu0 %v4650
          %v4707 = vpop.f32.mrf.mxu0
          %v4708 = vadd.f32 %v4670, %v4707
          %4709 = vmatmul.f32.gmra.mxu0 %v4651
          %v4710 = vpop.f32.mrf.mxu0
          %v4711 = vadd.f32 %v4671, %v4710
          %4712 = vmatmul.f32.gmra.mxu0 %v4652
          %v4713 = vpop.f32.mrf.mxu0
          %v4714 = vadd.f32 %v4672, %v4713
          %4715 = vmatmul.f32.gmra.mxu0 %v4653
          %v4716 = vpop.f32.mrf.mxu0
          %v4717 = vadd.f32 %v4673, %v4716
          %4718 = vmatmul.f32.gmra.mxu0 %v4654
          %v4719 = vpop.f32.mrf.mxu0
          %v4720 = vadd.f32 %v4674, %v4719
          %4721 = vmatmul.f32.gmra.mxu0 %v4655
          %v4722 = vpop.f32.mrf.mxu0
          %v4723 = vadd.f32 %v4675, %v4722
          %4724 = vmatmul.f32.gmra.mxu0 %v4656
          %v4725 = vpop.f32.mrf.mxu0
          %v4726 = vadd.f32 %v4676, %v4725
          %4727 = vmatmul.f32.gmra.mxu0 %v4657
          %v4728 = vpop.f32.mrf.mxu0
          %v4729 = vadd.f32 %v4677, %v4728
          %4730 = vmatmul.f32.gmra.mxu0 %v4658
          %v4731 = vpop.f32.mrf.mxu0
          %v4732 = vadd.f32 %v4678, %v4731
          %4733 = vmatmul.f32.gmra.mxu0 %v4659
          %v4734 = vpop.f32.mrf.mxu0
          %v4735 = vadd.f32 %v4679, %v4734
          %4736 = vmatmul.f32.gmra.mxu0 %v4660
          %v4737 = vpop.f32.mrf.mxu0
          %v4738 = vadd.f32 %v4680, %v4737
          %4739 = vmatmul.f32.gmra.mxu0 %v4661
          %v4740 = vpop.f32.mrf.mxu0
          %v4741 = vadd.f32 %v4681, %v4740
          %4742 = vmatmul.f32.gmra.mxu0 %v4662
          %v4743 = vpop.f32.mrf.mxu0
          %v4744 = vadd.f32 %v4682, %v4743
          %4745 = vmatmul.f32.gmra.mxu0 %v4663
          %v4746 = vpop.f32.mrf.mxu0
          %v4747 = vadd.f32 %v4683, %v4746
          %4748 = vdwg.mxu0
          %v4749 = vmul.f32 %v4702, %v2739
          %v4750 = vmul.f32 %v4705, %v2740
          %v4751 = vmul.f32 %v4708, %v2741
          %v4752 = vmul.f32 %v4711, %v2742
          %v4753 = vmul.f32 %v4714, %v2743
          %v4754 = vmul.f32 %v4717, %v2744
          %v4755 = vmul.f32 %v4720, %v2745
          %v4756 = vmul.f32 %v4723, %v2746
          %v4757 = vmul.f32 %v4726, %v2747
          %v4758 = vmul.f32 %v4729, %v2748
          %v4759 = vmul.f32 %v4732, %v2749
          %v4760 = vmul.f32 %v4735, %v2750
          %v4761 = vmul.f32 %v4738, %v2751
          %v4762 = vmul.f32 %v4741, %v2752
          %v4763 = vmul.f32 %v4744, %v2753
          %v4764 = vmul.f32 %v4747, %v2754
          %v4765 = vadd.f32 %v4749, %v4750
          %v4766 = vadd.f32 %v4765, %v4751
          %v4767 = vadd.f32 %v4766, %v4752
          %v4768 = vadd.f32 %v4767, %v4753
          %v4769 = vadd.f32 %v4768, %v4754
          %v4770 = vadd.f32 %v4769, %v4755
          %v4771 = vadd.f32 %v4770, %v4756
          %v4772 = vadd.f32 %v4771, %v4757
          %v4773 = vadd.f32 %v4772, %v4758
          %v4774 = vadd.f32 %v4773, %v4759
          %v4775 = vadd.f32 %v4774, %v4760
          %v4776 = vadd.f32 %v4775, %v4761
          %v4777 = vadd.f32 %v4776, %v4762
          %v4778 = vadd.f32 %v4777, %v4763
          %v4779 = vadd.f32 %v4778, %v4764
          %v4780 = vrot.slane %v4779, 4
          %v4781 = vadd.f32 %v4779, %v4780
          %v4782 = vrot.slane %v4781, 2
          %v4783 = vadd.f32 %v4781, %v4782
          %v4784 = vrot.slane %v4783, 1
          %v4785 = vadd.f32 %v4783, %v4784
          %s4786 = sadd.s32 %s3618, 2048
          %s4787 = scalar_lea.vmem [#allocation2], %s4786
          %v4788 = vld [vmem:[%s4787] sm:$0xff]
          %v4789 = vld [vmem:[%s4787 + $0x8] sm:$0xff]
          %v4790 = vld [vmem:[%s4787 + $0x10] sm:$0xff]
          %v4791 = vld [vmem:[%s4787 + $0x18] sm:$0xff]
          %v4792 = vld [vmem:[%s4787 + $0x20] sm:$0xff]
          %v4793 = vld [vmem:[%s4787 + $0x28] sm:$0xff]
          %v4794 = vld [vmem:[%s4787 + $0x30] sm:$0xff]
          %v4795 = vld [vmem:[%s4787 + $0x38] sm:$0xff]
          %v4796 = vld [vmem:[%s4787 + $0x40] sm:$0xff]
          %v4797 = vld [vmem:[%s4787 + $0x48] sm:$0xff]
          %v4798 = vld [vmem:[%s4787 + $0x50] sm:$0xff]
          %v4799 = vld [vmem:[%s4787 + $0x58] sm:$0xff]
          %v4800 = vld [vmem:[%s4787 + $0x60] sm:$0xff]
          %v4801 = vld [vmem:[%s4787 + $0x68] sm:$0xff]
          %v4802 = vld [vmem:[%s4787 + $0x70] sm:$0xff]
          %v4803 = vld [vmem:[%s4787 + $0x78] sm:$0xff]
          %s4804 = sadd.s32 %s3617, 16
          %s4805 = scalar_lea.vmem %s357, %s4804 [#allocation5]
          %v4806 = vld [vmem:[%s4805] sm:$0x1]
          %v4807 = vperm.slane %v4806, 0
          %v4808 = vmul.f32 %v4807, %v2723
          %v4809 = vmul.f32 %v4807, %v2724
          %v4810 = vmul.f32 %v4807, %v2725
          %v4811 = vmul.f32 %v4807, %v2726
          %v4812 = vmul.f32 %v4807, %v2727
          %v4813 = vmul.f32 %v4807, %v2728
          %v4814 = vmul.f32 %v4807, %v2729
          %v4815 = vmul.f32 %v4807, %v2730
          %v4816 = vmul.f32 %v4807, %v2731
          %v4817 = vmul.f32 %v4807, %v2732
          %v4818 = vmul.f32 %v4807, %v2733
          %v4819 = vmul.f32 %v4807, %v2734
          %v4820 = vmul.f32 %v4807, %v2735
          %v4821 = vmul.f32 %v4807, %v2736
          %v4822 = vmul.f32 %v4807, %v2737
          %v4823 = vmul.f32 %v4807, %v2738
          %4824 = vmatpush.msra.mxu0 %v4747
          %4825 = vmatpush.msra.mxu0 %v4744
          %4826 = vmatpush.msra.mxu0 %v4741
          %4827 = vmatpush.msra.mxu0 %v4738
          %4828 = vmatpush.msra.mxu0 %v4735
          %4829 = vmatpush.msra.mxu0 %v4732
          %4830 = vmatpush.msra.mxu0 %v4729
          %4831 = vmatpush.msra.mxu0 %v4726
          %4832 = vmatpush.msra.mxu0 %v4723
          %4833 = vmatpush.msra.mxu0 %v4720
          %4834 = vmatpush.msra.mxu0 %v4717
          %4835 = vmatpush.msra.mxu0 %v4714
          %4836 = vmatpush.msra.mxu0 %v4711
          %4837 = vmatpush.msra.mxu0 %v4708
          %4838 = vmatpush.msra.mxu0 %v4705
          %4839 = vmatpush.msra.mxu0 %v4702
          %4840 = vmatmul.f32.gmra.mxu0 %v4788
          %v4841 = vpop.f32.mrf.mxu0
          %v4842 = vadd.f32 %v4808, %v4841
          %4843 = vmatmul.f32.gmra.mxu0 %v4789
          %v4844 = vpop.f32.mrf.mxu0
          %v4845 = vadd.f32 %v4809, %v4844
          %4846 = vmatmul.f32.gmra.mxu0 %v4790
          %v4847 = vpop.f32.mrf.mxu0
          %v4848 = vadd.f32 %v4810, %v4847
          %4849 = vmatmul.f32.gmra.mxu0 %v4791
          %v4850 = vpop.f32.mrf.mxu0
          %v4851 = vadd.f32 %v4811, %v4850
          %4852 = vmatmul.f32.gmra.mxu0 %v4792
          %v4853 = vpop.f32.mrf.mxu0
          %v4854 = vadd.f32 %v4812, %v4853
          %4855 = vmatmul.f32.gmra.mxu0 %v4793
          %v4856 = vpop.f32.mrf.mxu0
          %v4857 = vadd.f32 %v4813, %v4856
          %4858 = vmatmul.f32.gmra.mxu0 %v4794
          %v4859 = vpop.f32.mrf.mxu0
          %v4860 = vadd.f32 %v4814, %v4859
          %4861 = vmatmul.f32.gmra.mxu0 %v4795
          %v4862 = vpop.f32.mrf.mxu0
          %v4863 = vadd.f32 %v4815, %v4862
          %4864 = vmatmul.f32.gmra.mxu0 %v4796
          %v4865 = vpop.f32.mrf.mxu0
          %v4866 = vadd.f32 %v4816, %v4865
          %4867 = vmatmul.f32.gmra.mxu0 %v4797
          %v4868 = vpop.f32.mrf.mxu0
          %v4869 = vadd.f32 %v4817, %v4868
          %4870 = vmatmul.f32.gmra.mxu0 %v4798
          %v4871 = vpop.f32.mrf.mxu0
          %v4872 = vadd.f32 %v4818, %v4871
          %4873 = vmatmul.f32.gmra.mxu0 %v4799
          %v4874 = vpop.f32.mrf.mxu0
          %v4875 = vadd.f32 %v4819, %v4874
          %4876 = vmatmul.f32.gmra.mxu0 %v4800
          %v4877 = vpop.f32.mrf.mxu0
          %v4878 = vadd.f32 %v4820, %v4877
          %4879 = vmatmul.f32.gmra.mxu0 %v4801
          %v4880 = vpop.f32.mrf.mxu0
          %v4881 = vadd.f32 %v4821, %v4880
          %4882 = vmatmul.f32.gmra.mxu0 %v4802
          %v4883 = vpop.f32.mrf.mxu0
          %v4884 = vadd.f32 %v4822, %v4883
          %4885 = vmatmul.f32.gmra.mxu0 %v4803
          %v4886 = vpop.f32.mrf.mxu0
          %v4887 = vadd.f32 %v4823, %v4886
          %4888 = vdwg.mxu0
          %v4889 = vmul.f32 %v4842, %v2739
          %v4890 = vmul.f32 %v4845, %v2740
          %v4891 = vmul.f32 %v4848, %v2741
          %v4892 = vmul.f32 %v4851, %v2742
          %v4893 = vmul.f32 %v4854, %v2743
          %v4894 = vmul.f32 %v4857, %v2744
          %v4895 = vmul.f32 %v4860, %v2745
          %v4896 = vmul.f32 %v4863, %v2746
          %v4897 = vmul.f32 %v4866, %v2747
          %v4898 = vmul.f32 %v4869, %v2748
          %v4899 = vmul.f32 %v4872, %v2749
          %v4900 = vmul.f32 %v4875, %v2750
          %v4901 = vmul.f32 %v4878, %v2751
          %v4902 = vmul.f32 %v4881, %v2752
          %v4903 = vmul.f32 %v4884, %v2753
          %v4904 = vmul.f32 %v4887, %v2754
          %v4905 = vadd.f32 %v4889, %v4890
          %v4906 = vadd.f32 %v4905, %v4891
          %v4907 = vadd.f32 %v4906, %v4892
          %v4908 = vadd.f32 %v4907, %v4893
          %v4909 = vadd.f32 %v4908, %v4894
          %v4910 = vadd.f32 %v4909, %v4895
          %v4911 = vadd.f32 %v4910, %v4896
          %v4912 = vadd.f32 %v4911, %v4897
          %v4913 = vadd.f32 %v4912, %v4898
          %v4914 = vadd.f32 %v4913, %v4899
          %v4915 = vadd.f32 %v4914, %v4900
          %v4916 = vadd.f32 %v4915, %v4901
          %v4917 = vadd.f32 %v4916, %v4902
          %v4918 = vadd.f32 %v4917, %v4903
          %v4919 = vadd.f32 %v4918, %v4904
          %v4920 = vrot.slane %v4919, 4
          %v4921 = vadd.f32 %v4919, %v4920
          %v4922 = vrot.slane %v4921, 2
          %v4923 = vadd.f32 %v4921, %v4922
          %v4924 = vrot.slane %v4923, 1
          %v4925 = vadd.f32 %v4923, %v4924
          %s4926 = sadd.s32 %s3758, 2048
          %s4927 = scalar_lea.vmem [#allocation2], %s4926
          %v4928 = vld [vmem:[%s4927] sm:$0xff]
          %v4929 = vld [vmem:[%s4927 + $0x8] sm:$0xff]
          %v4930 = vld [vmem:[%s4927 + $0x10] sm:$0xff]
          %v4931 = vld [vmem:[%s4927 + $0x18] sm:$0xff]
          %v4932 = vld [vmem:[%s4927 + $0x20] sm:$0xff]
          %v4933 = vld [vmem:[%s4927 + $0x28] sm:$0xff]
          %v4934 = vld [vmem:[%s4927 + $0x30] sm:$0xff]
          %v4935 = vld [vmem:[%s4927 + $0x38] sm:$0xff]
          %v4936 = vld [vmem:[%s4927 + $0x40] sm:$0xff]
          %v4937 = vld [vmem:[%s4927 + $0x48] sm:$0xff]
          %v4938 = vld [vmem:[%s4927 + $0x50] sm:$0xff]
          %v4939 = vld [vmem:[%s4927 + $0x58] sm:$0xff]
          %v4940 = vld [vmem:[%s4927 + $0x60] sm:$0xff]
          %v4941 = vld [vmem:[%s4927 + $0x68] sm:$0xff]
          %v4942 = vld [vmem:[%s4927 + $0x70] sm:$0xff]
          %v4943 = vld [vmem:[%s4927 + $0x78] sm:$0xff]
          %s4944 = sadd.s32 %s3757, 16
          %s4945 = scalar_lea.vmem %s357, %s4944 [#allocation5]
          %v4946 = vld [vmem:[%s4945] sm:$0x1]
          %v4947 = vperm.slane %v4946, 0
          %v4948 = vmul.f32 %v4947, %v2723
          %v4949 = vmul.f32 %v4947, %v2724
          %v4950 = vmul.f32 %v4947, %v2725
          %v4951 = vmul.f32 %v4947, %v2726
          %v4952 = vmul.f32 %v4947, %v2727
          %v4953 = vmul.f32 %v4947, %v2728
          %v4954 = vmul.f32 %v4947, %v2729
          %v4955 = vmul.f32 %v4947, %v2730
          %v4956 = vmul.f32 %v4947, %v2731
          %v4957 = vmul.f32 %v4947, %v2732
          %v4958 = vmul.f32 %v4947, %v2733
          %v4959 = vmul.f32 %v4947, %v2734
          %v4960 = vmul.f32 %v4947, %v2735
          %v4961 = vmul.f32 %v4947, %v2736
          %v4962 = vmul.f32 %v4947, %v2737
          %v4963 = vmul.f32 %v4947, %v2738
          %4964 = vmatpush.msra.mxu0 %v4887
          %4965 = vmatpush.msra.mxu0 %v4884
          %4966 = vmatpush.msra.mxu0 %v4881
          %4967 = vmatpush.msra.mxu0 %v4878
          %4968 = vmatpush.msra.mxu0 %v4875
          %4969 = vmatpush.msra.mxu0 %v4872
          %4970 = vmatpush.msra.mxu0 %v4869
          %4971 = vmatpush.msra.mxu0 %v4866
          %4972 = vmatpush.msra.mxu0 %v4863
          %4973 = vmatpush.msra.mxu0 %v4860
          %4974 = vmatpush.msra.mxu0 %v4857
          %4975 = vmatpush.msra.mxu0 %v4854
          %4976 = vmatpush.msra.mxu0 %v4851
          %4977 = vmatpush.msra.mxu0 %v4848
          %4978 = vmatpush.msra.mxu0 %v4845
          %4979 = vmatpush.msra.mxu0 %v4842
          %4980 = vmatmul.f32.gmra.mxu0 %v4928
          %v4981 = vpop.f32.mrf.mxu0
          %v4982 = vadd.f32 %v4948, %v4981
          %4983 = vmatmul.f32.gmra.mxu0 %v4929
          %v4984 = vpop.f32.mrf.mxu0
          %v4985 = vadd.f32 %v4949, %v4984
          %4986 = vmatmul.f32.gmra.mxu0 %v4930
          %v4987 = vpop.f32.mrf.mxu0
          %v4988 = vadd.f32 %v4950, %v4987
          %4989 = vmatmul.f32.gmra.mxu0 %v4931
          %v4990 = vpop.f32.mrf.mxu0
          %v4991 = vadd.f32 %v4951, %v4990
          %4992 = vmatmul.f32.gmra.mxu0 %v4932
          %v4993 = vpop.f32.mrf.mxu0
          %v4994 = vadd.f32 %v4952, %v4993
          %4995 = vmatmul.f32.gmra.mxu0 %v4933
          %v4996 = vpop.f32.mrf.mxu0
          %v4997 = vadd.f32 %v4953, %v4996
          %4998 = vmatmul.f32.gmra.mxu0 %v4934
          %v4999 = vpop.f32.mrf.mxu0
          %v5000 = vadd.f32 %v4954, %v4999
          %5001 = vmatmul.f32.gmra.mxu0 %v4935
          %v5002 = vpop.f32.mrf.mxu0
          %v5003 = vadd.f32 %v4955, %v5002
          %5004 = vmatmul.f32.gmra.mxu0 %v4936
          %v5005 = vpop.f32.mrf.mxu0
          %v5006 = vadd.f32 %v4956, %v5005
          %5007 = vmatmul.f32.gmra.mxu0 %v4937
          %v5008 = vpop.f32.mrf.mxu0
          %v5009 = vadd.f32 %v4957, %v5008
          %5010 = vmatmul.f32.gmra.mxu0 %v4938
          %v5011 = vpop.f32.mrf.mxu0
          %v5012 = vadd.f32 %v4958, %v5011
          %5013 = vmatmul.f32.gmra.mxu0 %v4939
          %v5014 = vpop.f32.mrf.mxu0
          %v5015 = vadd.f32 %v4959, %v5014
          %5016 = vmatmul.f32.gmra.mxu0 %v4940
          %v5017 = vpop.f32.mrf.mxu0
          %v5018 = vadd.f32 %v4960, %v5017
          %5019 = vmatmul.f32.gmra.mxu0 %v4941
          %v5020 = vpop.f32.mrf.mxu0
          %v5021 = vadd.f32 %v4961, %v5020
          %5022 = vmatmul.f32.gmra.mxu0 %v4942
          %v5023 = vpop.f32.mrf.mxu0
          %v5024 = vadd.f32 %v4962, %v5023
          %5025 = vmatmul.f32.gmra.mxu0 %v4943
          %v5026 = vpop.f32.mrf.mxu0
          %v5027 = vadd.f32 %v4963, %v5026
          %5028 = vdwg.mxu0
          %v5029 = vmul.f32 %v4982, %v2739
          %v5030 = vmul.f32 %v4985, %v2740
          %v5031 = vmul.f32 %v4988, %v2741
          %v5032 = vmul.f32 %v4991, %v2742
          %v5033 = vmul.f32 %v4994, %v2743
          %v5034 = vmul.f32 %v4997, %v2744
          %v5035 = vmul.f32 %v5000, %v2745
          %v5036 = vmul.f32 %v5003, %v2746
          %v5037 = vmul.f32 %v5006, %v2747
          %v5038 = vmul.f32 %v5009, %v2748
          %v5039 = vmul.f32 %v5012, %v2749
          %v5040 = vmul.f32 %v5015, %v2750
          %v5041 = vmul.f32 %v5018, %v2751
          %v5042 = vmul.f32 %v5021, %v2752
          %v5043 = vmul.f32 %v5024, %v2753
          %v5044 = vmul.f32 %v5027, %v2754
          %v5045 = vadd.f32 %v5029, %v5030
          %v5046 = vadd.f32 %v5045, %v5031
          %v5047 = vadd.f32 %v5046, %v5032
          %v5048 = vadd.f32 %v5047, %v5033
          %v5049 = vadd.f32 %v5048, %v5034
          %v5050 = vadd.f32 %v5049, %v5035
          %v5051 = vadd.f32 %v5050, %v5036
          %v5052 = vadd.f32 %v5051, %v5037
          %v5053 = vadd.f32 %v5052, %v5038
          %v5054 = vadd.f32 %v5053, %v5039
          %v5055 = vadd.f32 %v5054, %v5040
          %v5056 = vadd.f32 %v5055, %v5041
          %v5057 = vadd.f32 %v5056, %v5042
          %v5058 = vadd.f32 %v5057, %v5043
          %v5059 = vadd.f32 %v5058, %v5044
          %v5060 = vrot.slane %v5059, 4
          %v5061 = vadd.f32 %v5059, %v5060
          %v5062 = vrot.slane %v5061, 2
          %v5063 = vadd.f32 %v5061, %v5062
          %v5064 = vrot.slane %v5063, 1
          %v5065 = vadd.f32 %v5063, %v5064
          %5066 = vst [vmem:[%s3929] sm:$0xff] %v4982
          %5067 = vst [vmem:[%s3929 + $0x8] sm:$0xff] %v4985
          %5068 = vst [vmem:[%s3929 + $0x10] sm:$0xff] %v4988
          %5069 = vst [vmem:[%s3929 + $0x18] sm:$0xff] %v4991
          %5070 = vst [vmem:[%s3929 + $0x20] sm:$0xff] %v4994
          %5071 = vst [vmem:[%s3929 + $0x28] sm:$0xff] %v4997
          %5072 = vst [vmem:[%s3929 + $0x30] sm:$0xff] %v5000
          %5073 = vst [vmem:[%s3929 + $0x38] sm:$0xff] %v5003
          %5074 = vst [vmem:[%s3929 + $0x40] sm:$0xff] %v5006
          %5075 = vst [vmem:[%s3929 + $0x48] sm:$0xff] %v5009
          %5076 = vst [vmem:[%s3929 + $0x50] sm:$0xff] %v5012
          %5077 = vst [vmem:[%s3929 + $0x58] sm:$0xff] %v5015
          %5078 = vst [vmem:[%s3929 + $0x60] sm:$0xff] %v5018
          %5079 = vst [vmem:[%s3929 + $0x68] sm:$0xff] %v5021
          %5080 = vst [vmem:[%s3929 + $0x70] sm:$0xff] %v5024
          %5081 = vst [vmem:[%s3929 + $0x78] sm:$0xff] %v5027
          %v5082 = vsel %vm3913, %v4085, %v4225
          %v5083 = vsel %vm3915, %v5082, %v4365
          %v5084 = vsel %vm3917, %v5083, %v4505
          %v5085 = vsel %vm3919, %v5084, %v4645
          %v5086 = vsel %vm3921, %v5085, %v4785
          %v5087 = vsel %vm3923, %v5086, %v4925
          %v5088 = vsel %vm3925, %v5087, %v5065
          %s5089 = scalar_lea.vmem [#allocation4], %s3964
          %5090 = vst [vmem:[%s5089] sm:$0xff] %v5088
        $region77: #{tpu_custom_call.1} parent=47 // loop_footer
          %s2760 = sadd.s32 1, %s2756
        $region78: #{tpu_custom_call.1} parent=47 // loop_footer_branch
          %2755 = sbr.rel target = $region74
        $region79: #{tpu_custom_call.1} parent=47 // loop_exit
          _
        %v5091 = vld [vmem:[#allocation4] sm:$0xff]
        %v5092 = vld [vmem:[#allocation4 + $0x8] sm:$0xff]
        %v5093 = vld [vmem:[#allocation4 + $0x10] sm:$0xff]
        %v5094 = vld [vmem:[#allocation4 + $0x18] sm:$0xff]
        %v5095 = vld [vmem:[%s6] sm:$0x1]
        %v5097 = vperm.slane %v5095, 0
        %v5099 = vmul.f32 %v449, %v5097
        %v5100 = vmul.f32 %v450, %v5097
        %v5101 = vmul.f32 %v451, %v5097
        %v5102 = vmul.f32 %v452, %v5097
        %v5103 = vadd.f32 %v5091, %v5099
        %v5104 = vadd.f32 %v5092, %v5100
        %v5105 = vadd.f32 %v5093, %v5101
        %v5106 = vadd.f32 %v5094, %v5102
        %5107 = vst [vmem:[%s408] sm:$0xff] %v5103
        %5108 = vst [vmem:[%s408 + $0x8] sm:$0xff] %v5104
        %5109 = vst [vmem:[%s408 + $0x10] sm:$0xff] %v5105
        %5110 = vst [vmem:[%s408 + $0x18] sm:$0xff] %v5106
        %s5111 = sand.u32 %s202, 1
        %s5112 = scalar_lea.sflag [#allocation7], %s5111
        %s5113 = sand.u32 %s202, 1
        %s5114 = smul.addr %s5113, 32
        %s5115 = scalar_lea.vmem [#allocation14], %s5114
        // Predicated region
        $region80: #{tpu_custom_call.1} parent=47 // pred_check
          %p5116 = pneg %p212
        $region81: #{tpu_custom_call.1} parent=47 // pred_check_branch
          %5118 = sbr.rel (%p5116) target = $region83
        $region82: #{tpu_custom_call.1} parent=47 // pred_region
          #allocation18 [shape = 'u32[6]{0}', space=smem, size = 0x18, scoped, tag = 'DMA stride descriptor']
          %s5119 = smul.u32 2, %s30
          %s5120 = smul.u32 2, %s31
          %5122 = vsyncadd %s5112, 0
          %s5123 = smul.addr %s5119, 4
          %s5124 = sadd.s32 %s5120, %s5123
          %s5125 = smul.addr %s5124, 8
          %s5126 = scalar_lea.hbm %s7, %s5125
          %s5128 = sshll.u32 1, 14
          %s5129 = sxor.u32 4294967295, %s5128
          %s5132 = sshll.u32 7, 18
          %s5133 = sxor.u32 4294967295, %s5132
          %s5134 = sand.u32 0, %s5133
          %s5136 = sor.u32 %s5134, 0
          %s5137 = sshll.u32 %s5115, 4
          %s5138 = int_to_ptr.vmem [resolvable:$true] %s5137
          %s5139 = sshll.u32 %s5126, 4
          %s5140 = int_to_ptr.hbm [resolvable:$true] %s5139
          %5146 = sst [smem:[#allocation18]] 256
          %s5147 = scalar_lea.smem [#allocation18], 1
          %5148 = sst [smem:[%s5147]] 512
          %s5149 = scalar_lea.smem [#allocation18], 2
          %5150 = sst [smem:[%s5149]] 2
          %s5151 = scalar_lea.smem [#allocation18], 3
          %5152 = sst [smem:[%s5151]] 128
          %s5153 = scalar_lea.smem [#allocation18], 4
          %5154 = sst [smem:[%s5153]] 128
          %s5155 = scalar_lea.smem [#allocation18], 5
          %5156 = sst [smem:[%s5155]] 8
          %5158 = dma.general %s5138, 512, %s5140, %s5112, [#allocation17], [#allocation18], %s5136, 0
        $region83: #{tpu_custom_call.1} parent=47 // pred_fallthru
          _
      $region48: #{tpu_custom_call.1} parent=5 // pred_fallthru
        _
      %p5159 = scmp.le.s32.totalorder 2, %s21
      // Predicated region
      $region84: #{tpu_custom_call.1} parent=5 // pred_check
        %p5160 = pneg %p5159
      $region85: #{tpu_custom_call.1} parent=5 // pred_check_branch
        %5162 = sbr.rel (%p5160) target = $region87
      $region86: #{tpu_custom_call.1} parent=5 // pred_region
        %s5163 = ssub.s32 %s21, 2
        // Predicated region
        $region88: #{tpu_custom_call.1} parent=86 // pred_check
          %p5164 = pneg %p218
        $region89: #{tpu_custom_call.1} parent=86 // pred_check_branch
          %5166 = sbr.rel (%p5164) target = $region91
        $region90: #{tpu_custom_call.1} parent=86 // pred_region
          %s5167 = sand.u32 %s203, 1
          %s5168 = scalar_lea.sflag [#allocation7], %s5167
          %s5169 = sand.u32 %s203, 1
          %s5170 = smul.addr %s5169, 32
          %s5171 = scalar_lea.vmem [#allocation14], %s5170
          %5173 = dma.done %s5168, 512
        $region91: #{tpu_custom_call.1} parent=86 // pred_fallthru
          _
      $region87: #{tpu_custom_call.1} parent=5 // pred_fallthru
        _
    $region6: #{tpu_custom_call.1} parent=1 // loop_footer
      %s25 = sadd.s32 1, %s21
    $region7: #{tpu_custom_call.1} parent=1 // loop_footer_branch
      %20 = sbr.rel target = $region3
    $region8: #{tpu_custom_call.1} parent=1 // loop_exit
      _
    %5174 = vsyncpa [#allocation6], 1
    %s5175 = scalar_lea.sflag [#allocation6], 1
    %5176 = vsyncpa %s5175, 1
    %5177 = vsyncpa [#allocation9], 1
    %5178 = vsyncpa [#allocation12], 1
    %5179 = vsyncpa [#allocation7], 1
    %s5180 = scalar_lea.sflag [#allocation7], 1
    %5181 = vsyncpa %s5180, 1

</llo_original>
